<compile_context>
chip_gen: v5e
topology: v5e:2x2
jax: 0.10.0
libtpu: 0.0.40
codegen_flags: <defaults>
</compile_context>

<pallas_src>
import functools

import jax
import jax.numpy as jnp
import numpy as np
from jax.experimental import pallas as pl
from jax.experimental.pallas import tpu as pltpu

EPS = 1e-5
LANE = 128
# Explicit scoped-VMEM budget: safe on v5e/v6e (128 MiB phys) and v7x (64 MiB
# phys); the tiles chosen below stay a couple of MiB even double-buffered.
VMEM_LIMIT = 32 * 1024 * 1024


def _round_up(x, m):
    return ((x + m - 1) // m) * m


def _pick_tile(total, target, multiple=1):
    """Largest divisor of `total` <= target that is a multiple of `multiple`;
    falls back to `total` (a full-extent block is always legal)."""
    best = None
    for d in range(1, total + 1):
        if total % d == 0 and d <= target and d % multiple == 0:
            best = d
    return best if best is not None else total


def _cparams():
    return pltpu.CompilerParams(
        dimension_semantics=("parallel", "parallel"),
        vmem_limit_bytes=VMEM_LIMIT)


# ---- Pass A: deconv matmul + in-VMEM 2x2 scatter + BN1 partial stats --------
# out[n, 2h+ki, 2w+kj, c] = sum_ci x[n,h,w,ci] * W[ci, (ki,kj,c)] + b[c]
def _deconv_scatter_kernel(x_ref, w_ref, b_ref, y_ref, psum_ref, psq_ref):
    _, TH, W, Kp = x_ref.shape
    Cp = y_ref.shape[3]
    x = x_ref[0].reshape(TH * W, Kp)
    y = jnp.dot(x, w_ref[...], preferred_element_type=jnp.float32) + b_ref[...]
    # Columns are ordered (ki, kj, c).  Scatter to the 2x upsampled grid
    # entirely in VMEM (lane-aligned slices + reshapes + leading-dim concat).
    h0 = y[:, :2 * Cp].reshape(TH, W, 2, Cp)       # ki = 0 taps: [th, w, kj, c]
    h1 = y[:, 2 * Cp:].reshape(TH, W, 2, Cp)       # ki = 1 taps
    r0 = h0.reshape(TH, 1, 2 * W, Cp)              # rows 2*th + 0
    r1 = h1.reshape(TH, 1, 2 * W, Cp)              # rows 2*th + 1
    ys = jnp.concatenate([r0, r1], axis=1).reshape(2 * TH, 2 * W, Cp)
    y_ref[0] = ys
    # BN1 partial statistics for this tile (f32; padded channels stay zero).
    psum_ref[0] = jnp.sum(jnp.sum(ys, axis=0), axis=0, keepdims=True)
    psq_ref[0] = jnp.sum(jnp.sum(ys * ys, axis=0), axis=0, keepdims=True)


# ---- Pass B: BN1(prologue)+ReLU -> 3x3 conv -> BN2 partial stats ------------
def _conv_bn_kernel(ym_ref, yt_ref, yb_ref, s1_ref, h1_ref, w_ref,
                    o_ref, psum_ref, psq_ref):
    i = pl.program_id(1)
    n_tiles = pl.num_programs(1)
    _, TR, W2, Cp = ym_ref.shape

    s1 = s1_ref[...].reshape(1, 1, Cp)
    h1 = h1_ref[...].reshape(1, 1, Cp)

    def bn1_relu(v):
        return jnp.maximum(v * s1 + h1, 0.0)

    main = bn1_relu(ym_ref[0])                      # (TR, W2, Cp)
    top = bn1_relu(yt_ref[0])                       # (1,  W2, Cp) halo row above
    bot = bn1_relu(yb_ref[0])                       # (1,  W2, Cp) halo row below
    # Conv zero-padding applies *after* BN+ReLU -> zero the halos at the edges.
    top = jnp.where(i == 0, 0.0, top)
    bot = jnp.where(i == n_tiles - 1, 0.0, bot)
    xin = jnp.concatenate([top, main, bot], axis=0)  # (TR+2, W2, Cp)

    # Horizontal taps x[w-1], x[w], x[w+1] with zero padding at the W edges.
    # (jnp.roll lowers to slice+concat; pltpu.roll would use the XLU rotate.)
    col = jax.lax.broadcasted_iota(jnp.int32, (TR + 2, W2, Cp), 1)
    x_m1 = jnp.where(col >= 1, jnp.roll(xin, 1, axis=1), 0.0)
    x_p1 = jnp.where(col <= W2 - 2, jnp.roll(xin, -1, axis=1), 0.0)
    taps = (x_m1, xin, x_p1)                         # indexed by dw = 0,1,2

    mm_dtype = w_ref.dtype
    acc = jnp.zeros((TR * W2, Cp), jnp.float32)
    for dr in range(3):            # static unroll: 9 matmuls, each K = Cp >= 128
        for dw in range(3):
            xs = taps[dw][dr:dr + TR]                # cheap leading-dim slice
            acc = acc + jnp.dot(xs.reshape(TR * W2, Cp).astype(mm_dtype),
                                w_ref[dr * 3 + dw],
                                preferred_element_type=jnp.float32)

    o_ref[0] = acc.reshape(TR, W2, Cp)
    # BN2 partial statistics over this tile's output pixels.
    psum_ref[0] = jnp.sum(acc, axis=0, keepdims=True)
    psq_ref[0] = jnp.sum(acc * acc, axis=0, keepdims=True)


# ---- Pass C: BN2 normalize + ReLU + transpose straight to NCHW --------------
def _bn_relu_nchw_kernel(z_ref, s_ref, h_ref, o_ref):
    cout = o_ref.shape[1]
    z = z_ref[0]                                     # (TP, Cp)
    v = jnp.maximum(z * s_ref[...] + h_ref[...], 0.0)
    # In-VMEM 2-D transpose + channel un-padding; store is lane-dense (TP|128).
    o_ref[0] = jnp.transpose(v)[:cout, :]            # (Cout, TP)


# ---- Module forward ----------------------------------------------------------
def dconv_block_forward(x_nchw, params, *, tile_h=None, conv_tile_rows=None,
                        out_tile_pix=None, matmul_dtype=jnp.float32):
    """DconvBlock forward (training-mode BatchNorm statistics).

    matmul_dtype=jnp.bfloat16 halves MXU/HBM cost on v6e/v7x (BN math stays
    f32); default f32 keeps bit-tight agreement with the f32 reference.
    """
    N, Cin, H, W = x_nchw.shape
    Cout = params["deconv_w"].shape[1]
    Kp = _round_up(Cin, LANE)
    Cp = _round_up(Cout, LANE)
    H2, W2 = 2 * H, 2 * W
    f32 = jnp.float32

    # Small XLA glue on the weights and the (smallest) input tensor.
    # TODO(synk): the NCHW->NHWC transpose of x cannot be expressed in a
    # BlockSpec; it is left to XLA since x is ~16x smaller than the upsampled
    # activation.
    x_p = jnp.pad(jnp.transpose(x_nchw, (0, 2, 3, 1)).astype(f32),
                  ((0, 0), (0, 0), (0, 0), (0, Kp - Cin))).astype(matmul_dtype)

    wd = jnp.transpose(params["deconv_w"], (0, 2, 3, 1))        # (Cin,2,2,Cout)
    wd = jnp.pad(wd, ((0, Kp - Cin), (0, 0), (0, 0), (0, Cp - Cout)))
    w2d = wd.reshape(Kp, 4 * Cp).astype(matmul_dtype)           # cols = (ki,kj,c)
    b4 = jnp.tile(jnp.pad(params["deconv_b"], (0, Cp - Cout)), 4).reshape(1, 4 * Cp)

    wc = jnp.transpose(params["conv_w"], (2, 3, 1, 0))          # (3,3,Cin,Cout)
    wc = jnp.pad(wc, ((0, 0), (0, 0), (0, Cp - Cout), (0, Cp - Cout)))
    wc = wc.reshape(9, Cp, Cp).astype(matmul_dtype)

    g1 = jnp.pad(params["bn1_g"], (0, Cp - Cout))
    be1 = jnp.pad(params["bn1_b"], (0, Cp - Cout))
    g2 = jnp.pad(params["bn2_g"], (0, Cp - Cout))
    be2 = jnp.pad(params["bn2_b"], (0, Cp - Cout))

    # ---- Pass A -------------------------------------------------------------
    if tile_h and H % tile_h == 0:
        TH = tile_h
    else:
        TH = _pick_tile(H, max(1, (1 << 21) // (16 * W * Cp)))   # ~2 MiB out tile
    nA = H // TH
    y, ps1, pq1 = pl.pallas_call(
        _deconv_scatter_kernel,
        out_shape=(jax.ShapeDtypeStruct((N, H2, W2, Cp), f32),
                   jax.ShapeDtypeStruct((N * nA, 1, Cp), f32),
                   jax.ShapeDtypeStruct((N * nA, 1, Cp), f32)),
        grid=(N, nA),
        in_specs=[pl.BlockSpec((1, TH, W, Kp), lambda n, i: (n, i, 0, 0)),
                  pl.BlockSpec((Kp, 4 * Cp), lambda n, i: (0, 0)),
                  pl.BlockSpec((1, 4 * Cp), lambda n, i: (0, 0))],
        out_specs=(pl.BlockSpec((1, 2 * TH, W2, Cp), lambda n, i: (n, i, 0, 0)),
                   pl.BlockSpec((1, 1, Cp), lambda n, i: (n * nA + i, 0, 0)),
                   pl.BlockSpec((1, 1, Cp), lambda n, i: (n * nA + i, 0, 0))),
        compiler_params=_cparams(),
    )(x_p, w2d, b4)

    count = float(N * H2 * W2)
    mean1 = jnp.sum(ps1[:, 0, :], axis=0) / count
    var1 = jnp.maximum(jnp.sum(pq1[:, 0, :], axis=0) / count - mean1 * mean1, 0.0)
    sc1 = g1 * jax.lax.rsqrt(var1 + EPS)
    scale1 = sc1.reshape(1, Cp)
    shift1 = (be1 - mean1 * sc1).reshape(1, Cp)

    # ---- Pass B -------------------------------------------------------------
    if conv_tile_rows and H2 % conv_tile_rows == 0:
        TR = conv_tile_rows
    else:
        TR = _pick_tile(H2, max(1, (1 << 21) // (4 * W2 * Cp)))
    nB = H2 // TR
    z, ps2, pq2 = pl.pallas_call(
        _conv_bn_kernel,
        out_shape=(jax.ShapeDtypeStruct((N, H2, W2, Cp), f32),
                   jax.ShapeDtypeStruct((N * nB, 1, Cp), f32),
                   jax.ShapeDtypeStruct((N * nB, 1, Cp), f32)),
        grid=(N, nB),
        in_specs=[
            pl.BlockSpec((1, TR, W2, Cp), lambda n, i: (n, i, 0, 0)),
            # one halo row above / below (clamped at the image edges; the
            # kernel zeroes them when the tile touches the boundary)
            pl.BlockSpec((1, 1, W2, Cp),
                         lambda n, i: (n, jnp.maximum(i * TR - 1, 0), 0, 0)),
            pl.BlockSpec((1, 1, W2, Cp),
                         lambda n, i: (n, jnp.minimum(i * TR + TR, H2 - 1), 0, 0)),
            pl.BlockSpec((1, Cp), lambda n, i: (0, 0)),
            pl.BlockSpec((1, Cp), lambda n, i: (0, 0)),
            pl.BlockSpec((9, Cp, Cp), lambda n, i: (0, 0, 0)),
        ],
        out_specs=(pl.BlockSpec((1, TR, W2, Cp), lambda n, i: (n, i, 0, 0)),
                   pl.BlockSpec((1, 1, Cp), lambda n, i: (n * nB + i, 0, 0)),
                   pl.BlockSpec((1, 1, Cp), lambda n, i: (n * nB + i, 0, 0))),
        compiler_params=_cparams(),
    )(y, y, y, scale1, shift1, wc)

    mean2 = jnp.sum(ps2[:, 0, :], axis=0) / count
    var2 = jnp.maximum(jnp.sum(pq2[:, 0, :], axis=0) / count - mean2 * mean2, 0.0)
    sc2 = g2 * jax.lax.rsqrt(var2 + EPS)
    scale2 = sc2.reshape(1, Cp)
    shift2 = (be2 - mean2 * sc2).reshape(1, Cp)

    # ---- Pass C -------------------------------------------------------------
    PP = H2 * W2
    if out_tile_pix and PP % out_tile_pix == 0 and out_tile_pix % LANE == 0:
        TP = out_tile_pix
    else:
        TP = _pick_tile(PP, 2048, multiple=LANE)
    nC = PP // TP
    out = pl.pallas_call(
        _bn_relu_nchw_kernel,
        out_shape=jax.ShapeDtypeStruct((N, Cout, PP), f32),
        grid=(N, nC),
        in_specs=[pl.BlockSpec((1, TP, Cp), lambda n, i: (n, i, 0)),
                  pl.BlockSpec((1, Cp), lambda n, i: (0, 0)),
                  pl.BlockSpec((1, Cp), lambda n, i: (0, 0))],
        out_specs=pl.BlockSpec((1, Cout, TP), lambda n, i: (n, 0, i)),
        compiler_params=_cparams(),
    )(z.reshape(N, PP, Cp), scale2, shift2)

    return out.reshape(N, Cout, H2, W2)


# ---- Pure-JAX reference (same math, no Pallas) for validation ----------------
def _reference_forward(x, p):
    N, Cin, H, W = x.shape
    Cout = p["deconv_w"].shape[1]
    t = jnp.einsum('nihw,iokl->nohkwl', x, p["deconv_w"])
    y = t.reshape(N, Cout, 2 * H, 2 * W) + p["deconv_b"][None, :, None, None]

    def bn_relu(v, g, b):
        m = jnp.mean(v, axis=(0, 2, 3), keepdims=True)
        s = jnp.mean(jnp.square(v - m), axis=(0, 2, 3), keepdims=True)
        v = (v - m) * jax.lax.rsqrt(s + EPS)
        v = v * g[None, :, None, None] + b[None, :, None, None]
        return jnp.maximum(v, 0.0)

    y = bn_relu(y, p["bn1_g"], p["bn1_b"])
    z = jax.lax.conv_general_dilated(
        y, p["conv_w"], window_strides=(1, 1), padding=((1, 1), (1, 1)),
        dimension_numbers=('NCHW', 'OIHW', 'NCHW'))
    return bn_relu(z, p["bn2_g"], p["bn2_b"])


def init_params(key, in_channels, out_channels):
    k1, k2, k3 = jax.random.split(key, 3)
    return {
        # ConvTranspose2d weight: (Cin, Cout, 2, 2), bias: (Cout,)
        "deconv_w": 0.1 * jax.random.normal(
            k1, (in_channels, out_channels, 2, 2), jnp.float32),
        "deconv_b": 0.1 * jax.random.normal(k2, (out_channels,), jnp.float32),
        # BatchNorm defaults: gamma=1, beta=0
        "bn1_g": jnp.ones((out_channels,), jnp.float32),
        "bn1_b": jnp.zeros((out_channels,), jnp.float32),
        # Conv2d weight: (Cout, Cin=Cout, 3, 3), no bias
        "conv_w": 0.1 * jax.random.normal(
            k3, (out_channels, out_channels, 3, 3), jnp.float32),
        "bn2_g": jnp.ones((out_channels,), jnp.float32),
        "bn2_b": jnp.zeros((out_channels,), jnp.float32),
    }


if __name__ == "__main__":
    key = jax.random.PRNGKey(0)
    kx, kp = jax.random.split(key)

    N, Cin, Cout, H, W = 2, 4, 8, 16, 16
    x = jax.random.normal(kx, (N, Cin, H, W), jnp.float32)
    params = init_params(kp, Cin, Cout)

    # Small explicit tiles so the test exercises multi-tile grids, interior
    # halo rows, and the partial-stat reductions.
    fwd = jax.jit(functools.partial(dconv_block_forward,
                                    tile_h=4, conv_tile_rows=8,
                                    out_tile_pix=256))
    out = jax.block_until_ready(fwd(x, params))
    assert out.shape == (N, Cout, 2 * H, 2 * W), out.shape

    ref = jax.block_until_ready(_reference_forward(x, params))
    np.testing.assert_allclose(np.asarray(out), np.asarray(ref),
                               rtol=2e-4, atol=2e-4)

    print("KERNEL_OK")
</pallas_src>

<mosaic_0001>
module attributes {stable_mosaic.version = 11 : i64} {
  func.func @_deconv_scatter_kernel(%arg0: i32, %arg1: i32, %arg2: memref<1x4x16x128xf32, #tpu.memory_space<vmem>>, %arg3: memref<128x512xf32, #tpu.memory_space<vmem>>, %arg4: memref<1x512xf32, #tpu.memory_space<vmem>>, %arg5: memref<1x8x32x128xf32, #tpu.memory_space<vmem>>, %arg6: memref<1x1x128xf32, #tpu.memory_space<vmem>>, %arg7: memref<1x1x128xf32, #tpu.memory_space<vmem>>) attributes {dimension_semantics = [#tpu.dimension_semantics<parallel>, #tpu.dimension_semantics<parallel>], iteration_bounds = array<i64: 2, 4>, scalar_prefetch = 0 : i64, scratch_operands = 0 : i64, tpu.core_type = #tpu.core_type<tc>, window_params = [{transform_indices = @transform_0, window_bounds = array<i64: 1, 4, 16, 128>}, {pipeline_mode = #tpu.pipeline_mode<synchronous>, transform_indices = @transform_1, window_bounds = array<i64: 128, 512>}, {pipeline_mode = #tpu.pipeline_mode<synchronous>, transform_indices = @transform_2, window_bounds = array<i64: 1, 512>}, {transform_indices = @transform_3, window_bounds = array<i64: 1, 8, 32, 128>}, {transform_indices = @transform_4, window_bounds = array<i64: 1, 1, 128>}, {transform_indices = @transform_5, window_bounds = array<i64: 1, 1, 128>}]} {
    %c0 = arith.constant 0 : index
    %c0_0 = arith.constant 0 : index
    %c0_1 = arith.constant 0 : index
    %c0_2 = arith.constant 0 : index
    %0 = vector.load %arg2[%c0, %c0_0, %c0_1, %c0_2] : memref<1x4x16x128xf32, #tpu.memory_space<vmem>>, vector<1x4x16x128xf32>
    %1 = vector.shape_cast %0 : vector<1x4x16x128xf32> to vector<4x16x128xf32>
    %2 = vector.shape_cast %1 : vector<4x16x128xf32> to vector<64x128xf32>
    %c0_3 = arith.constant 0 : index
    %c0_4 = arith.constant 0 : index
    %3 = vector.load %arg3[%c0_3, %c0_4] : memref<128x512xf32, #tpu.memory_space<vmem>>, vector<128x512xf32>
    %cst = arith.constant dense<0.000000e+00> : vector<64x512xf32>
    %4 = tpu.matmul %2, %3, %cst {dimension_numbers = #tpu.dot_dimension_numbers<[1], [0], [0], [1], [0, 0, 1, 1], [], []>} : vector<64x128xf32>, vector<128x512xf32>, vector<64x512xf32> -> vector<64x512xf32>
    %c0_5 = arith.constant 0 : index
    %c0_6 = arith.constant 0 : index
    %5 = vector.load %arg4[%c0_5, %c0_6] : memref<1x512xf32, #tpu.memory_space<vmem>>, vector<1x512xf32>
    %6 = vector.broadcast %5 : vector<1x512xf32> to vector<64x512xf32>
    %7 = arith.addf %4, %6 : vector<64x512xf32>
    %8 = vector.extract_strided_slice %7 {offsets = [0, 0], sizes = [64, 256], strides = [1, 1]} : vector<64x512xf32> to vector<64x256xf32>
    %9 = vector.shape_cast %8 : vector<64x256xf32> to vector<4x16x2x128xf32>
    %10 = vector.extract_strided_slice %7 {offsets = [0, 256], sizes = [64, 256], strides = [1, 1]} : vector<64x512xf32> to vector<64x256xf32>
    %11 = vector.shape_cast %10 : vector<64x256xf32> to vector<4x16x2x128xf32>
    %12 = vector.shape_cast %9 : vector<4x16x2x128xf32> to vector<4x1x32x128xf32>
    %13 = vector.shape_cast %11 : vector<4x16x2x128xf32> to vector<4x1x32x128xf32>
    %14 = tpu.concatenate %12, %13 in 1 : vector<4x1x32x128xf32>, vector<4x1x32x128xf32> -> vector<4x2x32x128xf32>
    %15 = vector.shape_cast %14 : vector<4x2x32x128xf32> to vector<8x32x128xf32>
    %c0_7 = arith.constant 0 : index
    %c0_8 = arith.constant 0 : index
    %c0_9 = arith.constant 0 : index
    %c0_10 = arith.constant 0 : index
    %16 = vector.load %arg5[%c0_7, %c0_8, %c0_9, %c0_10] : memref<1x8x32x128xf32, #tpu.memory_space<vmem>>, vector<1x8x32x128xf32>
    %17 = vector.shape_cast %16 : vector<1x8x32x128xf32> to vector<8x32x128xf32>
    %18 = vector.shape_cast %15 : vector<8x32x128xf32> to vector<1x8x32x128xf32>
    tpu.vector_store %arg5[%c0_7, %c0_8, %c0_9, %c0_10], %18 {strides = array<i32>} : memref<1x8x32x128xf32, #tpu.memory_space<vmem>>, vector<1x8x32x128xf32>,
    %cst_11 = arith.constant dense<0.000000e+00> : vector<32x128xf32>
    %19 = vector.multi_reduction <add>, %15, %cst_11 [0] : vector<8x32x128xf32> to vector<32x128xf32>
    %cst_12 = arith.constant dense<0.000000e+00> : vector<128xf32>
    %20 = vector.multi_reduction <add>, %19, %cst_12 [0] : vector<32x128xf32> to vector<128xf32>
    %21 = vector.shape_cast %20 : vector<128xf32> to vector<1x128xf32>
    %c0_13 = arith.constant 0 : index
    %c0_14 = arith.constant 0 : index
    %c0_15 = arith.constant 0 : index
    %22 = vector.load %arg6[%c0_13, %c0_14, %c0_15] : memref<1x1x128xf32, #tpu.memory_space<vmem>>, vector<1x1x128xf32>
    %23 = vector.shape_cast %22 : vector<1x1x128xf32> to vector<1x128xf32>
    %24 = vector.shape_cast %21 : vector<1x128xf32> to vector<1x1x128xf32>
    tpu.vector_store %arg6[%c0_13, %c0_14, %c0_15], %24 {strides = array<i32>} : memref<1x1x128xf32, #tpu.memory_space<vmem>>, vector<1x1x128xf32>,
    %25 = arith.mulf %15, %15 : vector<8x32x128xf32>
    %cst_16 = arith.constant dense<0.000000e+00> : vector<32x128xf32>
    %26 = vector.multi_reduction <add>, %25, %cst_16 [0] : vector<8x32x128xf32> to vector<32x128xf32>
    %cst_17 = arith.constant dense<0.000000e+00> : vector<128xf32>
    %27 = vector.multi_reduction <add>, %26, %cst_17 [0] : vector<32x128xf32> to vector<128xf32>
    %28 = vector.shape_cast %27 : vector<128xf32> to vector<1x128xf32>
    %c0_18 = arith.constant 0 : index
    %c0_19 = arith.constant 0 : index
    %c0_20 = arith.constant 0 : index
    %29 = vector.load %arg7[%c0_18, %c0_19, %c0_20] : memref<1x1x128xf32, #tpu.memory_space<vmem>>, vector<1x1x128xf32>
    %30 = vector.shape_cast %29 : vector<1x1x128xf32> to vector<1x128xf32>
    %31 = vector.shape_cast %28 : vector<1x128xf32> to vector<1x1x128xf32>
    tpu.vector_store %arg7[%c0_18, %c0_19, %c0_20], %31 {strides = array<i32>} : memref<1x1x128xf32, #tpu.memory_space<vmem>>, vector<1x1x128xf32>,
    return
  }
  func.func @transform_0(%arg0: i32, %arg1: i32) -> (i32, i32, i32, i32) {
    %c0_i32 = arith.constant 0 : i32
    %c0_i32_0 = arith.constant 0 : i32
    %c0_i32_1 = arith.constant 0 : i32
    return %arg0, %arg1, %c0_i32, %c0_i32_0 : i32, i32, i32, i32
  }
  func.func @transform_1(%arg0: i32, %arg1: i32) -> (i32, i32) {
    %c0_i32 = arith.constant 0 : i32
    %c0_i32_0 = arith.constant 0 : i32
    %c0_i32_1 = arith.constant 0 : i32
    return %c0_i32, %c0_i32_0 : i32, i32
  }
  func.func @transform_2(%arg0: i32, %arg1: i32) -> (i32, i32) {
    %c0_i32 = arith.constant 0 : i32
    %c0_i32_0 = arith.constant 0 : i32
    %c0_i32_1 = arith.constant 0 : i32
    return %c0_i32, %c0_i32_0 : i32, i32
  }
  func.func @transform_3(%arg0: i32, %arg1: i32) -> (i32, i32, i32, i32) {
    %c0_i32 = arith.constant 0 : i32
    %c0_i32_0 = arith.constant 0 : i32
    %c0_i32_1 = arith.constant 0 : i32
    return %arg0, %arg1, %c0_i32, %c0_i32_0 : i32, i32, i32, i32
  }
  func.func @transform_4(%arg0: i32, %arg1: i32) -> (i32, i32, i32) {
    %c4_i32 = arith.constant 4 : i32
    %0 = arith.muli %arg0, %c4_i32 : i32
    %1 = arith.addi %0, %arg1 : i32
    %c0_i32 = arith.constant 0 : i32
    %c0_i32_0 = arith.constant 0 : i32
    %c0_i32_1 = arith.constant 0 : i32
    return %1, %c0_i32, %c0_i32_0 : i32, i32, i32
  }
  func.func @transform_5(%arg0: i32, %arg1: i32) -> (i32, i32, i32) {
    %c4_i32 = arith.constant 4 : i32
    %0 = arith.muli %arg0, %c4_i32 : i32
    %1 = arith.addi %0, %arg1 : i32
    %c0_i32 = arith.constant 0 : i32
    %c0_i32_0 = arith.constant 0 : i32
    %c0_i32_1 = arith.constant 0 : i32
    return %1, %c0_i32, %c0_i32_0 : i32, i32, i32
  }
}

module attributes {stable_mosaic.version = 11 : i64} {
  func.func @_conv_bn_kernel(%arg0: i32, %arg1: i32, %arg2: memref<1x8x32x128xf32, #tpu.memory_space<vmem>>, %arg3: memref<1x1x32x128xf32, #tpu.memory_space<vmem>>, %arg4: memref<1x1x32x128xf32, #tpu.memory_space<vmem>>, %arg5: memref<1x128xf32, #tpu.memory_space<vmem>>, %arg6: memref<1x128xf32, #tpu.memory_space<vmem>>, %arg7: memref<9x128x128xf32, #tpu.memory_space<vmem>>, %arg8: memref<1x8x32x128xf32, #tpu.memory_space<vmem>>, %arg9: memref<1x1x128xf32, #tpu.memory_space<vmem>>, %arg10: memref<1x1x128xf32, #tpu.memory_space<vmem>>) attributes {dimension_semantics = [#tpu.dimension_semantics<parallel>, #tpu.dimension_semantics<parallel>], iteration_bounds = array<i64: 2, 4>, scalar_prefetch = 0 : i64, scratch_operands = 0 : i64, tpu.core_type = #tpu.core_type<tc>, window_params = [{transform_indices = @transform_0, window_bounds = array<i64: 1, 8, 32, 128>}, {transform_indices = @transform_1, window_bounds = array<i64: 1, 1, 32, 128>}, {transform_indices = @transform_2, window_bounds = array<i64: 1, 1, 32, 128>}, {pipeline_mode = #tpu.pipeline_mode<synchronous>, transform_indices = @transform_3, window_bounds = array<i64: 1, 128>}, {pipeline_mode = #tpu.pipeline_mode<synchronous>, transform_indices = @transform_4, window_bounds = array<i64: 1, 128>}, {pipeline_mode = #tpu.pipeline_mode<synchronous>, transform_indices = @transform_5, window_bounds = array<i64: 9, 128, 128>}, {transform_indices = @transform_6, window_bounds = array<i64: 1, 8, 32, 128>}, {transform_indices = @transform_7, window_bounds = array<i64: 1, 1, 128>}, {transform_indices = @transform_8, window_bounds = array<i64: 1, 1, 128>}]} {
    %c0 = arith.constant 0 : index
    %c0_0 = arith.constant 0 : index
    %0 = vector.load %arg5[%c0, %c0_0] : memref<1x128xf32, #tpu.memory_space<vmem>>, vector<1x128xf32>
    %1 = vector.shape_cast %0 : vector<1x128xf32> to vector<1x1x128xf32>
    %c0_1 = arith.constant 0 : index
    %c0_2 = arith.constant 0 : index
    %2 = vector.load %arg6[%c0_1, %c0_2] : memref<1x128xf32, #tpu.memory_space<vmem>>, vector<1x128xf32>
    %3 = vector.shape_cast %2 : vector<1x128xf32> to vector<1x1x128xf32>
    %c0_3 = arith.constant 0 : index
    %c0_4 = arith.constant 0 : index
    %c0_5 = arith.constant 0 : index
    %c0_6 = arith.constant 0 : index
    %4 = vector.load %arg2[%c0_3, %c0_4, %c0_5, %c0_6] : memref<1x8x32x128xf32, #tpu.memory_space<vmem>>, vector<1x8x32x128xf32>
    %5 = vector.shape_cast %4 : vector<1x8x32x128xf32> to vector<8x32x128xf32>
    %6 = vector.broadcast %1 : vector<1x1x128xf32> to vector<8x32x128xf32>
    %7 = arith.mulf %5, %6 : vector<8x32x128xf32>
    %8 = vector.broadcast %3 : vector<1x1x128xf32> to vector<8x32x128xf32>
    %9 = arith.addf %7, %8 : vector<8x32x128xf32>
    %cst = arith.constant 0.000000e+00 : f32
    %10 = vector.broadcast %cst : f32 to vector<8x32x128xf32>
    %11 = arith.maximumf %9, %10 : vector<8x32x128xf32>
    %c0_7 = arith.constant 0 : index
    %c0_8 = arith.constant 0 : index
    %c0_9 = arith.constant 0 : index
    %c0_10 = arith.constant 0 : index
    %12 = vector.load %arg3[%c0_7, %c0_8, %c0_9, %c0_10] : memref<1x1x32x128xf32, #tpu.memory_space<vmem>>, vector<1x1x32x128xf32>
    %13 = vector.shape_cast %12 : vector<1x1x32x128xf32> to vector<1x32x128xf32>
    %14 = vector.broadcast %1 : vector<1x1x128xf32> to vector<1x32x128xf32>
    %15 = arith.mulf %13, %14 : vector<1x32x128xf32>
    %16 = vector.broadcast %3 : vector<1x1x128xf32> to vector<1x32x128xf32>
    %17 = arith.addf %15, %16 : vector<1x32x128xf32>
    %cst_11 = arith.constant 0.000000e+00 : f32
    %18 = vector.broadcast %cst_11 : f32 to vector<1x32x128xf32>
    %19 = arith.maximumf %17, %18 : vector<1x32x128xf32>
    %c0_12 = arith.constant 0 : index
    %c0_13 = arith.constant 0 : index
    %c0_14 = arith.constant 0 : index
    %c0_15 = arith.constant 0 : index
    %20 = vector.load %arg4[%c0_12, %c0_13, %c0_14, %c0_15] : memref<1x1x32x128xf32, #tpu.memory_space<vmem>>, vector<1x1x32x128xf32>
    %21 = vector.shape_cast %20 : vector<1x1x32x128xf32> to vector<1x32x128xf32>
    %22 = vector.broadcast %1 : vector<1x1x128xf32> to vector<1x32x128xf32>
    %23 = arith.mulf %21, %22 : vector<1x32x128xf32>
    %24 = vector.broadcast %3 : vector<1x1x128xf32> to vector<1x32x128xf32>
    %25 = arith.addf %23, %24 : vector<1x32x128xf32>
    %cst_16 = arith.constant 0.000000e+00 : f32
    %26 = vector.broadcast %cst_16 : f32 to vector<1x32x128xf32>
    %27 = arith.maximumf %25, %26 : vector<1x32x128xf32>
    %c0_i32 = arith.constant 0 : i32
    %28 = arith.cmpi eq, %arg1, %c0_i32 : i32
    %cst_17 = arith.constant 0.000000e+00 : f32
    %29 = vector.broadcast %cst_17 : f32 to vector<1x32x128xf32>
    %30 = arith.select %28, %29, %19 : vector<1x32x128xf32>
    %c3_i32 = arith.constant 3 : i32
    %31 = arith.cmpi eq, %arg1, %c3_i32 : i32
    %cst_18 = arith.constant 0.000000e+00 : f32
    %32 = vector.broadcast %cst_18 : f32 to vector<1x32x128xf32>
    %33 = arith.select %31, %32, %27 : vector<1x32x128xf32>
    %34 = tpu.concatenate %30, %11, %33 in 0 : vector<1x32x128xf32>, vector<8x32x128xf32>, vector<1x32x128xf32> -> vector<10x32x128xf32>
    %35 = tpu.iota {dimensions = array<i32: 1>} : vector<10x32x128xi32>
    %c1_i32 = arith.constant 1 : i32
    %36 = vector.broadcast %c1_i32 : i32 to vector<10x32x128xi32>
    %37 = arith.cmpi sge, %35, %36 : vector<10x32x128xi32>
    %38 = vector.extract_strided_slice %34 {offsets = [0, 31, 0], sizes = [10, 1, 128], strides = [1, 1, 1]} : vector<10x32x128xf32> to vector<10x1x128xf32>
    %39 = vector.extract_strided_slice %34 {offsets = [0, 0, 0], sizes = [10, 31, 128], strides = [1, 1, 1]} : vector<10x32x128xf32> to vector<10x31x128xf32>
    %40 = tpu.concatenate %38, %39 in 1 : vector<10x1x128xf32>, vector<10x31x128xf32> -> vector<10x32x128xf32>
    %cst_19 = arith.constant 0.000000e+00 : f32
    %41 = vector.broadcast %cst_19 : f32 to vector<10x32x128xf32>
    %42 = arith.select %37, %40, %41 : vector<10x32x128xi1>, vector<10x32x128xf32>
    %c30_i32 = arith.constant 30 : i32
    %43 = vector.broadcast %c30_i32 : i32 to vector<10x32x128xi32>
    %44 = arith.cmpi sle, %35, %43 : vector<10x32x128xi32>
    %45 = vector.extract_strided_slice %34 {offsets = [0, 1, 0], sizes = [10, 31, 128], strides = [1, 1, 1]} : vector<10x32x128xf32> to vector<10x31x128xf32>
    %46 = vector.extract_strided_slice %34 {offsets = [0, 0, 0], sizes = [10, 1, 128], strides = [1, 1, 1]} : vector<10x32x128xf32> to vector<10x1x128xf32>
    %47 = tpu.concatenate %45, %46 in 1 : vector<10x31x128xf32>, vector<10x1x128xf32> -> vector<10x32x128xf32>
    %cst_20 = arith.constant 0.000000e+00 : f32
    %48 = vector.broadcast %cst_20 : f32 to vector<10x32x128xf32>
    %49 = arith.select %44, %47, %48 : vector<10x32x128xi1>, vector<10x32x128xf32>
    %cst_21 = arith.constant 0.000000e+00 : f32
    %50 = vector.broadcast %cst_21 : f32 to vector<256x128xf32>
    %51 = vector.extract_strided_slice %42 {offsets = [0, 0, 0], sizes = [8, 32, 128], strides = [1, 1, 1]} : vector<10x32x128xf32> to vector<8x32x128xf32>
    %52 = vector.shape_cast %51 : vector<8x32x128xf32> to vector<256x128xf32>
    %c0_22 = arith.constant 0 : index
    %c0_23 = arith.constant 0 : index
    %c0_24 = arith.constant 0 : index
    %53 = vector.load %arg7[%c0_22, %c0_23, %c0_24] : memref<9x128x128xf32, #tpu.memory_space<vmem>>, vector<1x128x128xf32>
    %54 = vector.shape_cast %53 : vector<1x128x128xf32> to vector<128x128xf32>
    %cst_25 = arith.constant dense<0.000000e+00> : vector<256x128xf32>
    %55 = tpu.matmul %52, %54, %cst_25 {dimension_numbers = #tpu.dot_dimension_numbers<[1], [0], [0], [1], [0, 0, 1, 1], [], []>} : vector<256x128xf32>, vector<128x128xf32>, vector<256x128xf32> -> vector<256x128xf32>
    %56 = arith.addf %50, %55 : vector<256x128xf32>
    %57 = vector.extract_strided_slice %34 {offsets = [0, 0, 0], sizes = [8, 32, 128], strides = [1, 1, 1]} : vector<10x32x128xf32> to vector<8x32x128xf32>
    %58 = vector.shape_cast %57 : vector<8x32x128xf32> to vector<256x128xf32>
    %c1 = arith.constant 1 : index
    %c0_26 = arith.constant 0 : index
    %c0_27 = arith.constant 0 : index
    %59 = vector.load %arg7[%c1, %c0_26, %c0_27] : memref<9x128x128xf32, #tpu.memory_space<vmem>>, vector<1x128x128xf32>
    %60 = vector.shape_cast %59 : vector<1x128x128xf32> to vector<128x128xf32>
    %cst_28 = arith.constant dense<0.000000e+00> : vector<256x128xf32>
    %61 = tpu.matmul %58, %60, %cst_28 {dimension_numbers = #tpu.dot_dimension_numbers<[1], [0], [0], [1], [0, 0, 1, 1], [], []>} : vector<256x128xf32>, vector<128x128xf32>, vector<256x128xf32> -> vector<256x128xf32>
    %62 = arith.addf %56, %61 : vector<256x128xf32>
    %63 = vector.extract_strided_slice %49 {offsets = [0, 0, 0], sizes = [8, 32, 128], strides = [1, 1, 1]} : vector<10x32x128xf32> to vector<8x32x128xf32>
    %64 = vector.shape_cast %63 : vector<8x32x128xf32> to vector<256x128xf32>
    %c2 = arith.constant 2 : index
    %c0_29 = arith.constant 0 : index
    %c0_30 = arith.constant 0 : index
    %65 = vector.load %arg7[%c2, %c0_29, %c0_30] : memref<9x128x128xf32, #tpu.memory_space<vmem>>, vector<1x128x128xf32>
    %66 = vector.shape_cast %65 : vector<1x128x128xf32> to vector<128x128xf32>
    %cst_31 = arith.constant dense<0.000000e+00> : vector<256x128xf32>
    %67 = tpu.matmul %64, %66, %cst_31 {dimension_numbers = #tpu.dot_dimension_numbers<[1], [0], [0], [1], [0, 0, 1, 1], [], []>} : vector<256x128xf32>, vector<128x128xf32>, vector<256x128xf32> -> vector<256x128xf32>
    %68 = arith.addf %62, %67 : vector<256x128xf32>
    %69 = vector.extract_strided_slice %42 {offsets = [1, 0, 0], sizes = [8, 32, 128], strides = [1, 1, 1]} : vector<10x32x128xf32> to vector<8x32x128xf32>
    %70 = vector.shape_cast %69 : vector<8x32x128xf32> to vector<256x128xf32>
    %c3 = arith.constant 3 : index
    %c0_32 = arith.constant 0 : index
    %c0_33 = arith.constant 0 : index
    %71 = vector.load %arg7[%c3, %c0_32, %c0_33] : memref<9x128x128xf32, #tpu.memory_space<vmem>>, vector<1x128x128xf32>
    %72 = vector.shape_cast %71 : vector<1x128x128xf32> to vector<128x128xf32>
    %cst_34 = arith.constant dense<0.000000e+00> : vector<256x128xf32>
    %73 = tpu.matmul %70, %72, %cst_34 {dimension_numbers = #tpu.dot_dimension_numbers<[1], [0], [0], [1], [0, 0, 1, 1], [], []>} : vector<256x128xf32>, vector<128x128xf32>, vector<256x128xf32> -> vector<256x128xf32>
    %74 = arith.addf %68, %73 : vector<256x128xf32>
    %75 = vector.extract_strided_slice %34 {offsets = [1, 0, 0], sizes = [8, 32, 128], strides = [1, 1, 1]} : vector<10x32x128xf32> to vector<8x32x128xf32>
    %76 = vector.shape_cast %75 : vector<8x32x128xf32> to vector<256x128xf32>
    %c4 = arith.constant 4 : index
    %c0_35 = arith.constant 0 : index
    %c0_36 = arith.constant 0 : index
    %77 = vector.load %arg7[%c4, %c0_35, %c0_36] : memref<9x128x128xf32, #tpu.memory_space<vmem>>, vector<1x128x128xf32>
    %78 = vector.shape_cast %77 : vector<1x128x128xf32> to vector<128x128xf32>
    %cst_37 = arith.constant dense<0.000000e+00> : vector<256x128xf32>
    %79 = tpu.matmul %76, %78, %cst_37 {dimension_numbers = #tpu.dot_dimension_numbers<[1], [0], [0], [1], [0, 0, 1, 1], [], []>} : vector<256x128xf32>, vector<128x128xf32>, vector<256x128xf32> -> vector<256x128xf32>
    %80 = arith.addf %74, %79 : vector<256x128xf32>
    %81 = vector.extract_strided_slice %49 {offsets = [1, 0, 0], sizes = [8, 32, 128], strides = [1, 1, 1]} : vector<10x32x128xf32> to vector<8x32x128xf32>
    %82 = vector.shape_cast %81 : vector<8x32x128xf32> to vector<256x128xf32>
    %c5 = arith.constant 5 : index
    %c0_38 = arith.constant 0 : index
    %c0_39 = arith.constant 0 : index
    %83 = vector.load %arg7[%c5, %c0_38, %c0_39] : memref<9x128x128xf32, #tpu.memory_space<vmem>>, vector<1x128x128xf32>
    %84 = vector.shape_cast %83 : vector<1x128x128xf32> to vector<128x128xf32>
    %cst_40 = arith.constant dense<0.000000e+00> : vector<256x128xf32>
    %85 = tpu.matmul %82, %84, %cst_40 {dimension_numbers = #tpu.dot_dimension_numbers<[1], [0], [0], [1], [0, 0, 1, 1], [], []>} : vector<256x128xf32>, vector<128x128xf32>, vector<256x128xf32> -> vector<256x128xf32>
    %86 = arith.addf %80, %85 : vector<256x128xf32>
    %87 = vector.extract_strided_slice %42 {offsets = [2, 0, 0], sizes = [8, 32, 128], strides = [1, 1, 1]} : vector<10x32x128xf32> to vector<8x32x128xf32>
    %88 = vector.shape_cast %87 : vector<8x32x128xf32> to vector<256x128xf32>
    %c6 = arith.constant 6 : index
    %c0_41 = arith.constant 0 : index
    %c0_42 = arith.constant 0 : index
    %89 = vector.load %arg7[%c6, %c0_41, %c0_42] : memref<9x128x128xf32, #tpu.memory_space<vmem>>, vector<1x128x128xf32>
    %90 = vector.shape_cast %89 : vector<1x128x128xf32> to vector<128x128xf32>
    %cst_43 = arith.constant dense<0.000000e+00> : vector<256x128xf32>
    %91 = tpu.matmul %88, %90, %cst_43 {dimension_numbers = #tpu.dot_dimension_numbers<[1], [0], [0], [1], [0, 0, 1, 1], [], []>} : vector<256x128xf32>, vector<128x128xf32>, vector<256x128xf32> -> vector<256x128xf32>
    %92 = arith.addf %86, %91 : vector<256x128xf32>
    %93 = vector.extract_strided_slice %34 {offsets = [2, 0, 0], sizes = [8, 32, 128], strides = [1, 1, 1]} : vector<10x32x128xf32> to vector<8x32x128xf32>
    %94 = vector.shape_cast %93 : vector<8x32x128xf32> to vector<256x128xf32>
    %c7 = arith.constant 7 : index
    %c0_44 = arith.constant 0 : index
    %c0_45 = arith.constant 0 : index
    %95 = vector.load %arg7[%c7, %c0_44, %c0_45] : memref<9x128x128xf32, #tpu.memory_space<vmem>>, vector<1x128x128xf32>
    %96 = vector.shape_cast %95 : vector<1x128x128xf32> to vector<128x128xf32>
    %cst_46 = arith.constant dense<0.000000e+00> : vector<256x128xf32>
    %97 = tpu.matmul %94, %96, %cst_46 {dimension_numbers = #tpu.dot_dimension_numbers<[1], [0], [0], [1], [0, 0, 1, 1], [], []>} : vector<256x128xf32>, vector<128x128xf32>, vector<256x128xf32> -> vector<256x128xf32>
    %98 = arith.addf %92, %97 : vector<256x128xf32>
    %99 = vector.extract_strided_slice %49 {offsets = [2, 0, 0], sizes = [8, 32, 128], strides = [1, 1, 1]} : vector<10x32x128xf32> to vector<8x32x128xf32>
    %100 = vector.shape_cast %99 : vector<8x32x128xf32> to vector<256x128xf32>
    %c8 = arith.constant 8 : index
    %c0_47 = arith.constant 0 : index
    %c0_48 = arith.constant 0 : index
    %101 = vector.load %arg7[%c8, %c0_47, %c0_48] : memref<9x128x128xf32, #tpu.memory_space<vmem>>, vector<1x128x128xf32>
    %102 = vector.shape_cast %101 : vector<1x128x128xf32> to vector<128x128xf32>
    %cst_49 = arith.constant dense<0.000000e+00> : vector<256x128xf32>
    %103 = tpu.matmul %100, %102, %cst_49 {dimension_numbers = #tpu.dot_dimension_numbers<[1], [0], [0], [1], [0, 0, 1, 1], [], []>} : vector<256x128xf32>, vector<128x128xf32>, vector<256x128xf32> -> vector<256x128xf32>
    %104 = arith.addf %98, %103 : vector<256x128xf32>
    %105 = vector.shape_cast %104 : vector<256x128xf32> to vector<8x32x128xf32>
    %c0_50 = arith.constant 0 : index
    %c0_51 = arith.constant 0 : index
    %c0_52 = arith.constant 0 : index
    %c0_53 = arith.constant 0 : index
    %106 = vector.load %arg8[%c0_50, %c0_51, %c0_52, %c0_53] : memref<1x8x32x128xf32, #tpu.memory_space<vmem>>, vector<1x8x32x128xf32>
    %107 = vector.shape_cast %106 : vector<1x8x32x128xf32> to vector<8x32x128xf32>
    %108 = vector.shape_cast %105 : vector<8x32x128xf32> to vector<1x8x32x128xf32>
    tpu.vector_store %arg8[%c0_50, %c0_51, %c0_52, %c0_53], %108 {strides = array<i32>} : memref<1x8x32x128xf32, #tpu.memory_space<vmem>>, vector<1x8x32x128xf32>,
    %cst_54 = arith.constant dense<0.000000e+00> : vector<128xf32>
    %109 = vector.multi_reduction <add>, %104, %cst_54 [0] : vector<256x128xf32> to vector<128xf32>
    %110 = vector.shape_cast %109 : vector<128xf32> to vector<1x128xf32>
    %c0_55 = arith.constant 0 : index
    %c0_56 = arith.constant 0 : index
    %c0_57 = arith.constant 0 : index
    %111 = vector.load %arg9[%c0_55, %c0_56, %c0_57] : memref<1x1x128xf32, #tpu.memory_space<vmem>>, vector<1x1x128xf32>
    %112 = vector.shape_cast %111 : vector<1x1x128xf32> to vector<1x128xf32>
    %113 = vector.shape_cast %110 : vector<1x128xf32> to vector<1x1x128xf32>
    tpu.vector_store %arg9[%c0_55, %c0_56, %c0_57], %113 {strides = array<i32>} : memref<1x1x128xf32, #tpu.memory_space<vmem>>, vector<1x1x128xf32>,
    %114 = arith.mulf %104, %104 : vector<256x128xf32>
    %cst_58 = arith.constant dense<0.000000e+00> : vector<128xf32>
    %115 = vector.multi_reduction <add>, %114, %cst_58 [0] : vector<256x128xf32> to vector<128xf32>
    %116 = vector.shape_cast %115 : vector<128xf32> to vector<1x128xf32>
    %c0_59 = arith.constant 0 : index
    %c0_60 = arith.constant 0 : index
    %c0_61 = arith.constant 0 : index
    %117 = vector.load %arg10[%c0_59, %c0_60, %c0_61] : memref<1x1x128xf32, #tpu.memory_space<vmem>>, vector<1x1x128xf32>
    %118 = vector.shape_cast %117 : vector<1x1x128xf32> to vector<1x128xf32>
    %119 = vector.shape_cast %116 : vector<1x128xf32> to vector<1x1x128xf32>
    tpu.vector_store %arg10[%c0_59, %c0_60, %c0_61], %119 {strides = array<i32>} : memref<1x1x128xf32, #tpu.memory_space<vmem>>, vector<1x1x128xf32>,
    return
  }
  func.func @transform_0(%arg0: i32, %arg1: i32) -> (i32, i32, i32, i32) {
    %c0_i32 = arith.constant 0 : i32
    %c0_i32_0 = arith.constant 0 : i32
    %c0_i32_1 = arith.constant 0 : i32
    return %arg0, %arg1, %c0_i32, %c0_i32_0 : i32, i32, i32, i32
  }
  func.func @transform_1(%arg0: i32, %arg1: i32) -> (i32, i32, i32, i32) {
    %c8_i32 = arith.constant 8 : i32
    %0 = arith.muli %arg1, %c8_i32 : i32
    %c1_i32 = arith.constant 1 : i32
    %1 = arith.subi %0, %c1_i32 : i32
    %c0_i32 = arith.constant 0 : i32
    %2 = arith.maxsi %1, %c0_i32 : i32
    %c0_i32_0 = arith.constant 0 : i32
    %c0_i32_1 = arith.constant 0 : i32
    %c0_i32_2 = arith.constant 0 : i32
    return %arg0, %2, %c0_i32_0, %c0_i32_1 : i32, i32, i32, i32
  }
  func.func @transform_2(%arg0: i32, %arg1: i32) -> (i32, i32, i32, i32) {
    %c8_i32 = arith.constant 8 : i32
    %0 = arith.muli %arg1, %c8_i32 : i32
    %c8_i32_0 = arith.constant 8 : i32
    %1 = arith.addi %0, %c8_i32_0 : i32
    %c31_i32 = arith.constant 31 : i32
    %2 = arith.minsi %1, %c31_i32 : i32
    %c0_i32 = arith.constant 0 : i32
    %c0_i32_1 = arith.constant 0 : i32
    %c0_i32_2 = arith.constant 0 : i32
    return %arg0, %2, %c0_i32, %c0_i32_1 : i32, i32, i32, i32
  }
  func.func @transform_3(%arg0: i32, %arg1: i32) -> (i32, i32) {
    %c0_i32 = arith.constant 0 : i32
    %c0_i32_0 = arith.constant 0 : i32
    %c0_i32_1 = arith.constant 0 : i32
    return %c0_i32, %c0_i32_0 : i32, i32
  }
  func.func @transform_4(%arg0: i32, %arg1: i32) -> (i32, i32) {
    %c0_i32 = arith.constant 0 : i32
    %c0_i32_0 = arith.constant 0 : i32
    %c0_i32_1 = arith.constant 0 : i32
    return %c0_i32, %c0_i32_0 : i32, i32
  }
  func.func @transform_5(%arg0: i32, %arg1: i32) -> (i32, i32, i32) {
    %c0_i32 = arith.constant 0 : i32
    %c0_i32_0 = arith.constant 0 : i32
    %c0_i32_1 = arith.constant 0 : i32
    %c0_i32_2 = arith.constant 0 : i32
    return %c0_i32, %c0_i32_0, %c0_i32_1 : i32, i32, i32
  }
  func.func @transform_6(%arg0: i32, %arg1: i32) -> (i32, i32, i32, i32) {
    %c0_i32 = arith.constant 0 : i32
    %c0_i32_0 = arith.constant 0 : i32
    %c0_i32_1 = arith.constant 0 : i32
    return %arg0, %arg1, %c0_i32, %c0_i32_0 : i32, i32, i32, i32
  }
  func.func @transform_7(%arg0: i32, %arg1: i32) -> (i32, i32, i32) {
    %c4_i32 = arith.constant 4 : i32
    %0 = arith.muli %arg0, %c4_i32 : i32
    %1 = arith.addi %0, %arg1 : i32
    %c0_i32 = arith.constant 0 : i32
    %c0_i32_0 = arith.constant 0 : i32
    %c0_i32_1 = arith.constant 0 : i32
    return %1, %c0_i32, %c0_i32_0 : i32, i32, i32
  }
  func.func @transform_8(%arg0: i32, %arg1: i32) -> (i32, i32, i32) {
    %c4_i32 = arith.constant 4 : i32
    %0 = arith.muli %arg0, %c4_i32 : i32
    %1 = arith.addi %0, %arg1 : i32
    %c0_i32 = arith.constant 0 : i32
    %c0_i32_0 = arith.constant 0 : i32
    %c0_i32_1 = arith.constant 0 : i32
    return %1, %c0_i32, %c0_i32_0 : i32, i32, i32
  }
}

module attributes {stable_mosaic.version = 11 : i64} {
  func.func @_bn_relu_nchw_kernel(%arg0: i32, %arg1: i32, %arg2: memref<1x256x128xf32, #tpu.memory_space<vmem>>, %arg3: memref<1x128xf32, #tpu.memory_space<vmem>>, %arg4: memref<1x128xf32, #tpu.memory_space<vmem>>, %arg5: memref<1x8x256xf32, #tpu.memory_space<vmem>>) attributes {dimension_semantics = [#tpu.dimension_semantics<parallel>, #tpu.dimension_semantics<parallel>], iteration_bounds = array<i64: 2, 4>, scalar_prefetch = 0 : i64, scratch_operands = 0 : i64, tpu.core_type = #tpu.core_type<tc>, window_params = [{transform_indices = @transform_0, window_bounds = array<i64: 1, 256, 128>}, {pipeline_mode = #tpu.pipeline_mode<synchronous>, transform_indices = @transform_1, window_bounds = array<i64: 1, 128>}, {pipeline_mode = #tpu.pipeline_mode<synchronous>, transform_indices = @transform_2, window_bounds = array<i64: 1, 128>}, {transform_indices = @transform_3, window_bounds = array<i64: 1, 8, 256>}]} {
    %c0 = arith.constant 0 : index
    %c0_0 = arith.constant 0 : index
    %c0_1 = arith.constant 0 : index
    %0 = vector.load %arg2[%c0, %c0_0, %c0_1] : memref<1x256x128xf32, #tpu.memory_space<vmem>>, vector<1x256x128xf32>
    %1 = vector.shape_cast %0 : vector<1x256x128xf32> to vector<256x128xf32>
    %c0_2 = arith.constant 0 : index
    %c0_3 = arith.constant 0 : index
    %2 = vector.load %arg3[%c0_2, %c0_3] : memref<1x128xf32, #tpu.memory_space<vmem>>, vector<1x128xf32>
    %3 = vector.broadcast %2 : vector<1x128xf32> to vector<256x128xf32>
    %4 = arith.mulf %1, %3 : vector<256x128xf32>
    %c0_4 = arith.constant 0 : index
    %c0_5 = arith.constant 0 : index
    %5 = vector.load %arg4[%c0_4, %c0_5] : memref<1x128xf32, #tpu.memory_space<vmem>>, vector<1x128xf32>
    %6 = vector.broadcast %5 : vector<1x128xf32> to vector<256x128xf32>
    %7 = arith.addf %4, %6 : vector<256x128xf32>
    %cst = arith.constant 0.000000e+00 : f32
    %8 = vector.broadcast %cst : f32 to vector<256x128xf32>
    %9 = arith.maximumf %7, %8 : vector<256x128xf32>
    %10 = tpu.transpose %9, [1, 0] : vector<256x128xf32> -> vector<128x256xf32>
    %11 = vector.extract_strided_slice %10 {offsets = [0, 0], sizes = [8, 256], strides = [1, 1]} : vector<128x256xf32> to vector<8x256xf32>
    %c0_6 = arith.constant 0 : index
    %c0_7 = arith.constant 0 : index
    %c0_8 = arith.constant 0 : index
    %12 = vector.load %arg5[%c0_6, %c0_7, %c0_8] : memref<1x8x256xf32, #tpu.memory_space<vmem>>, vector<1x8x256xf32>
    %13 = vector.shape_cast %12 : vector<1x8x256xf32> to vector<8x256xf32>
    %14 = vector.shape_cast %11 : vector<8x256xf32> to vector<1x8x256xf32>
    tpu.vector_store %arg5[%c0_6, %c0_7, %c0_8], %14 {strides = array<i32>} : memref<1x8x256xf32, #tpu.memory_space<vmem>>, vector<1x8x256xf32>,
    return
  }
  func.func @transform_0(%arg0: i32, %arg1: i32) -> (i32, i32, i32) {
    %c0_i32 = arith.constant 0 : i32
    %c0_i32_0 = arith.constant 0 : i32
    return %arg0, %arg1, %c0_i32 : i32, i32, i32
  }
  func.func @transform_1(%arg0: i32, %arg1: i32) -> (i32, i32) {
    %c0_i32 = arith.constant 0 : i32
    %c0_i32_0 = arith.constant 0 : i32
    %c0_i32_1 = arith.constant 0 : i32
    return %c0_i32, %c0_i32_0 : i32, i32
  }
  func.func @transform_2(%arg0: i32, %arg1: i32) -> (i32, i32) {
    %c0_i32 = arith.constant 0 : i32
    %c0_i32_0 = arith.constant 0 : i32
    %c0_i32_1 = arith.constant 0 : i32
    return %c0_i32, %c0_i32_0 : i32, i32
  }
  func.func @transform_3(%arg0: i32, %arg1: i32) -> (i32, i32, i32) {
    %c0_i32 = arith.constant 0 : i32
    %c0_i32_0 = arith.constant 0 : i32
    return %arg0, %c0_i32, %arg1 : i32, i32, i32
  }
}

</mosaic_0001>

<llo_original>
// kernel: tile.8
$region0: #{tile.8}
  #allocation0 [shape = 's32[1]{0}', space=sflag, size = 0x4, scoped, tag = 'scoped memory for tile.8']
  %s0 = inlined_call_operand.vmem [shape: f32[128], index: 0, kind: input, shape index: {}]
  %s1 = inlined_call_operand.vmem [shape: f32[4,128], index: 1, kind: output, shape index: {}]
  // Predicated region
  $region2: #{tile.8} parent=0 // pred_check
    _
  $region3: #{tile.8} parent=0 // pred_check_branch
    %3 = sbr.rel (0) target = $region5
  $region4: #{tile.8} parent=0 // pred_region
    _
  $region5: #{tile.8} parent=0 // pred_fallthru
    _
  %v4 = vld [vmem:[%s0] ss:$0 sm:$0xff]
  %5 = vst [vmem:[%s1] sm:$0xf] %v4

// kernel: dconv_block_forward.5
$region0: #{dconv_block_forward.5}
  #allocation0 [shape = 'u32[]', space=smem, size = 0x4, offset = 0x4, fixed_abs, tag = 'smem constant byte address 0x4 - core index']
  #allocation1 [shape = 'u32[72,128]{1,0:T(1,128)}', space=vmem, size = 0x9000, scoped, tag = 'internal scratch']
  %s0 = inlined_call_operand.vmem [shape: f32[2,1024,128], index: 0, kind: input, shape index: {}]
  %s1 = inlined_call_operand.vmem [shape: f32[1,128], index: 1, kind: input, shape index: {}]
  %s2 = inlined_call_operand.vmem [shape: f32[1,128], index: 2, kind: input, shape index: {}]
  %s3 = inlined_call_operand.vmem [shape: f32[2,8,1024], index: 3, kind: output, shape index: {}]
  %s4 = sld [smem:[#allocation0]]
  $region45: #{dconv_block_forward.5} parent=0
    _
  %s6 = ssub.s32 1, %s4
  %s7 = scalar_select 0, %s6, %s4
  loop: start=0, step=1, limit=10
  $region2: #{dconv_block_forward.5} parent=0 // loop_pre_header
    _
  $region3: #{dconv_block_forward.5} parent=0 // loop_header
    %s9 = sphi 0, %s13
    %p10 = scmp.ge.s32.totalorder %s9, 10
    %s16 = sphi 0, %s28
    %s17 = sphi 0, %s24
    %s18 = sphi 0, %s16
    %s19 = sphi 0, %s17
    %s20 = sphi 0, %s18
    %s21 = sphi 0, %s19
    %s33 = sphi 0, %s35
    %s36 = sphi 0, %s33
    %s37 = sphi 0, %s36
    %s53 = sphi 0, %s37
    %s57 = sphi 0, %s57
    %s59 = sphi 0, %s57
    %s60 = sphi 0, %s59
    %s74 = sphi 0, %s60
    %s78 = sphi 0, %s78
    %s80 = sphi 0, %s78
    %s81 = sphi 0, %s80
    %s95 = sphi 0, %s81
    %s103 = sphi 0, %s105
    %s106 = sphi 0, %s103
    %s107 = sphi 0, %s106
    %s123 = sphi 0, %s107
  $region4: #{dconv_block_forward.5} parent=0 // loop_header_branch
    %12 = sbr.rel (%p10) target = $region8
  $region5: #{dconv_block_forward.5} parent=0 // loop_body
    %s14 = ssub.s32 %s9, 1
    %s15 = ssub.s32 %s9, 2
    %s22 = sadd.s32 1, %s17
    %p23 = scmp.ge.s32.totalorder %s22, 4
    %s24 = scalar_select %p23, 0, %s22
    %s25 = sadd.s32 1, %s16
    %s26 = scalar_select %p23, %s25, %s16
    %p27 = scmp.ge.s32.totalorder %s26, 2
    %s28 = scalar_select %p27, 0, %s26
    %s29 = ssub.s32 %s16, %s28
    %s30 = ssub.s32 %s17, %s24
    %s31 = sor.u32 %s29, %s30
    %p32 = scmp.eq.s32.totalorder %s31, 0
    %s34 = sadd.s32 %s33, 1
    %s35 = scalar_select %p32, %s33, %s34
    %p38 = pneg %p32
    %p39 = scmp.eq.s32.totalorder %s9, 7
    %p40 = por %p38, %p39
    %p41 = scmp.ne.s32.totalorder %s33, %s36
    %p42 = scmp.eq.s32.totalorder %s9, 0
    %p43 = por %p41, %p42
    %p44 = scmp.ne.s32.totalorder %s33, %s36
    %p45 = scmp.eq.s32.totalorder %s14, 7
    %p46 = por %p44, %p45
    %p47 = scmp.ne.s32.totalorder %s36, %s37
    %p48 = scmp.eq.s32.totalorder %s14, 0
    %p49 = por %p47, %p48
    %p50 = scmp.ne.s32.totalorder %s36, %s37
    %p51 = scmp.eq.s32.totalorder %s15, 7
    %p52 = por %p50, %p51
    %p54 = scmp.ne.s32.totalorder %s37, %s53
    %p55 = scmp.eq.s32.totalorder %s15, 0
    %p56 = por %p54, %p55
    %s58 = sadd.s32 %s57, 1
    %p61 = scmp.eq.s32.totalorder %s9, 7
    %p62 = scmp.ne.s32.totalorder %s57, %s59
    %p63 = scmp.eq.s32.totalorder %s9, 0
    %p64 = por %p62, %p63
    %p65 = scmp.ne.s32.totalorder %s57, %s59
    %p66 = scmp.eq.s32.totalorder %s14, 7
    %p67 = por %p65, %p66
    %p68 = scmp.ne.s32.totalorder %s59, %s60
    %p69 = scmp.eq.s32.totalorder %s14, 0
    %p70 = por %p68, %p69
    %p71 = scmp.ne.s32.totalorder %s59, %s60
    %p72 = scmp.eq.s32.totalorder %s15, 7
    %p73 = por %p71, %p72
    %p75 = scmp.ne.s32.totalorder %s60, %s74
    %p76 = scmp.eq.s32.totalorder %s15, 0
    %p77 = por %p75, %p76
    %s79 = sadd.s32 %s78, 1
    %p82 = scmp.eq.s32.totalorder %s9, 7
    %p83 = scmp.ne.s32.totalorder %s78, %s80
    %p84 = scmp.eq.s32.totalorder %s9, 0
    %p85 = por %p83, %p84
    %p86 = scmp.ne.s32.totalorder %s78, %s80
    %p87 = scmp.eq.s32.totalorder %s14, 7
    %p88 = por %p86, %p87
    %p89 = scmp.ne.s32.totalorder %s80, %s81
    %p90 = scmp.eq.s32.totalorder %s14, 0
    %p91 = por %p89, %p90
    %p92 = scmp.ne.s32.totalorder %s80, %s81
    %p93 = scmp.eq.s32.totalorder %s15, 7
    %p94 = por %p92, %p93
    %p96 = scmp.ne.s32.totalorder %s81, %s95
    %p97 = scmp.eq.s32.totalorder %s15, 0
    %p98 = por %p96, %p97
    %s99 = ssub.s32 %s16, %s28
    %s100 = ssub.s32 %s17, %s24
    %s101 = sor.u32 %s99, %s100
    %p102 = scmp.eq.s32.totalorder %s101, 0
    %s104 = sadd.s32 %s103, 1
    %s105 = scalar_select %p102, %s103, %s104
    %p108 = pneg %p102
    %p109 = scmp.eq.s32.totalorder %s9, 7
    %p110 = por %p108, %p109
    %p111 = scmp.ne.s32.totalorder %s103, %s106
    %p112 = scmp.eq.s32.totalorder %s9, 0
    %p113 = por %p111, %p112
    %p114 = scmp.ne.s32.totalorder %s103, %s106
    %p115 = scmp.eq.s32.totalorder %s14, 7
    %p116 = por %p114, %p115
    %p117 = scmp.ne.s32.totalorder %s106, %s107
    %p118 = scmp.eq.s32.totalorder %s14, 0
    %p119 = por %p117, %p118
    %p120 = scmp.ne.s32.totalorder %s106, %s107
    %p121 = scmp.eq.s32.totalorder %s15, 7
    %p122 = por %p120, %p121
    %p124 = scmp.ne.s32.totalorder %s107, %s123
    %p125 = scmp.eq.s32.totalorder %s15, 0
    %p126 = por %p124, %p125
    %p127 = scmp.le.s32.totalorder 1, %s9
    %p128 = scmp.lt.s32.totalorder %s9, 9
    %p129 = pnand %p127, %p128
    %p130 = pneg %p129
    // Predicated region
    $region9: #{dconv_block_forward.5} parent=5 // pred_check
      _
    $region10: #{dconv_block_forward.5} parent=5 // pred_check_branch
      %132 = sbr.rel (%p129) target = $region12
    $region11: #{dconv_block_forward.5} parent=5 // pred_region
      %s133 = ssub.s32 %s9, 1
      // Predicated region
      $region13: #{dconv_block_forward.5} parent=11 // pred_check
        %p134 = pneg %p70
      $region14: #{dconv_block_forward.5} parent=11 // pred_check_branch
        %136 = sbr.rel (%p134) target = $region16
      $region15: #{dconv_block_forward.5} parent=11 // pred_region
        _
      $region16: #{dconv_block_forward.5} parent=11 // pred_fallthru
        _
      // Predicated region
      $region17: #{dconv_block_forward.5} parent=11 // pred_check
        %p137 = pneg %p91
      $region18: #{dconv_block_forward.5} parent=11 // pred_check_branch
        %139 = sbr.rel (%p137) target = $region20
      $region19: #{dconv_block_forward.5} parent=11 // pred_region
        _
      $region20: #{dconv_block_forward.5} parent=11 // pred_fallthru
        _
    $region12: #{dconv_block_forward.5} parent=5 // pred_fallthru
      _
    %p140 = scmp.lt.s32.totalorder %s9, 8
    // Predicated region
    $region21: #{dconv_block_forward.5} parent=5 // pred_check
      %p141 = pneg %p140
    $region22: #{dconv_block_forward.5} parent=5 // pred_check_branch
      %143 = sbr.rel (%p141) target = $region24
    $region23: #{dconv_block_forward.5} parent=5 // pred_region
      // Predicated region
      $region25: #{dconv_block_forward.5} parent=23 // pred_check
        %p144 = pneg %p43
      $region26: #{dconv_block_forward.5} parent=23 // pred_check_branch
        %146 = sbr.rel (%p144) target = $region28
      $region27: #{dconv_block_forward.5} parent=23 // pred_region
        %s147 = smul.u32 32, %s17
        %p148 = scmp.lt.s32.totalorder %s16, 1
        %s149 = scalar_select %p148, %s16, 1
        %p150 = scmp.lt.s32.totalorder %s147, 127
        %s151 = scalar_select %p150, %s147, 127
        %s152 = smul.addr %s149, 128
        %s153 = sadd.s32 %s151, %s152
        %s154 = smul.addr %s153, 8
        %s155 = scalar_lea.vmem %s0, %s154
        %s156 = smul.u32 32, %s17
      $region28: #{dconv_block_forward.5} parent=23 // pred_fallthru
        _
    $region24: #{dconv_block_forward.5} parent=5 // pred_fallthru
      _
    %p157 = scmp.le.s32.totalorder 1, %s9
    %p158 = scmp.lt.s32.totalorder %s9, 9
    %p159 = pnand %p157, %p158
    %p160 = pneg %p159
    // Predicated region
    $region29: #{dconv_block_forward.5} parent=5 // pred_check
      _
    $region30: #{dconv_block_forward.5} parent=5 // pred_check_branch
      %162 = sbr.rel (%p159) target = $region32
    $region31: #{dconv_block_forward.5} parent=5 // pred_region
      %s163 = ssub.s32 %s9, 1
      %s164 = smul.u32 32, %s19
      %p165 = scmp.lt.s32.totalorder %s18, 1
      %s166 = scalar_select %p165, %s18, 1
      %p167 = scmp.lt.s32.totalorder %s164, 127
      %s168 = scalar_select %p167, %s164, 127
      %s169 = smul.addr %s166, 128
      %s170 = sadd.s32 %s168, %s169
      %s171 = smul.addr %s170, 8
      %s172 = scalar_lea.vmem %s0, %s171
      %p173 = pneg %p49
      %p174 = pneg %p46
      %p175 = pneg %p70
      %p176 = pneg %p67
      %p177 = pneg %p91
      %p178 = pneg %p88
      %p179 = pneg %p119
      %p180 = pneg %p116
      %s181 = smul.u32 2, %s19
      %p182 = scmp.lt.s32.totalorder %s18, 1
      %s183 = scalar_select %p182, %s18, 1
      %p184 = scmp.lt.s32.totalorder %s181, 7
      %s185 = scalar_select %p184, %s181, 7
      %s186 = smul.addr %s183, 8
      %s187 = sadd.s32 %s185, %s186
      %s188 = smul.addr %s187, 8
      %s189 = scalar_lea.vmem %s3, %s188
      %s190 = smul.u32 32, %s19
      %p191 = scmp.lt.s32.totalorder %s18, 1
      %s192 = scalar_select %p191, %s18, 1
      %p193 = scmp.lt.s32.totalorder %s190, 127
      %s194 = scalar_select %p193, %s190, 127
      %s195 = smul.addr %s192, 128
      %s196 = sadd.s32 %s194, %s195
      %s197 = smul.addr %s196, 8
      %s198 = scalar_lea.vmem %s0, %s197
      %s199 = smul.u32 32, %s19
      %s200 = smul.u32 2, %s19
      %p201 = scmp.lt.s32.totalorder %s18, 1
      %s202 = scalar_select %p201, %s18, 1
      %p203 = scmp.lt.s32.totalorder %s200, 7
      %s204 = scalar_select %p203, %s200, 7
      %s205 = smul.addr %s202, 8
      %s206 = sadd.s32 %s204, %s205
      %s207 = smul.addr %s206, 8
      %s208 = scalar_lea.vmem %s3, %s207
      %s209 = smul.u32 2, %s19
      %v210 = vld [vmem:[%s198] sm:$0xff]
      %v211 = vld [vmem:[%s198 + $0x8] sm:$0xff]
      %v212 = vld [vmem:[%s198 + $0x10] sm:$0xff]
      %v213 = vld [vmem:[%s198 + $0x18] sm:$0xff]
      %v214 = vld [vmem:[%s198 + $0x20] sm:$0xff]
      %v215 = vld [vmem:[%s198 + $0x28] sm:$0xff]
      %v216 = vld [vmem:[%s198 + $0x30] sm:$0xff]
      %v217 = vld [vmem:[%s198 + $0x38] sm:$0xff]
      %v218 = vld [vmem:[%s198 + $0x40] sm:$0xff]
      %v219 = vld [vmem:[%s198 + $0x48] sm:$0xff]
      %v220 = vld [vmem:[%s198 + $0x50] sm:$0xff]
      %v221 = vld [vmem:[%s198 + $0x58] sm:$0xff]
      %v222 = vld [vmem:[%s198 + $0x60] sm:$0xff]
      %v223 = vld [vmem:[%s198 + $0x68] sm:$0xff]
      %v224 = vld [vmem:[%s198 + $0x70] sm:$0xff]
      %v225 = vld [vmem:[%s198 + $0x78] sm:$0xff]
      %v226 = vld [vmem:[%s198 + $0x80] sm:$0xff]
      %v227 = vld [vmem:[%s198 + $0x88] sm:$0xff]
      %v228 = vld [vmem:[%s198 + $0x90] sm:$0xff]
      %v229 = vld [vmem:[%s198 + $0x98] sm:$0xff]
      %v230 = vld [vmem:[%s198 + $0xa0] sm:$0xff]
      %v231 = vld [vmem:[%s198 + $0xa8] sm:$0xff]
      %v232 = vld [vmem:[%s198 + $0xb0] sm:$0xff]
      %v233 = vld [vmem:[%s198 + $0xb8] sm:$0xff]
      %v234 = vld [vmem:[%s198 + $0xc0] sm:$0xff]
      %v235 = vld [vmem:[%s198 + $0xc8] sm:$0xff]
      %v236 = vld [vmem:[%s198 + $0xd0] sm:$0xff]
      %v237 = vld [vmem:[%s198 + $0xd8] sm:$0xff]
      %v238 = vld [vmem:[%s198 + $0xe0] sm:$0xff]
      %v239 = vld [vmem:[%s198 + $0xe8] sm:$0xff]
      %v240 = vld [vmem:[%s198 + $0xf0] sm:$0xff]
      %v241 = vld [vmem:[%s198 + $0xf8] sm:$0xff]
      %v242 = vld [vmem:[%s1] sm:$0x1]
      %v244 = vperm.slane %v242, 0
      %v246 = vmul.f32 %v210, %v244
      %v247 = vmul.f32 %v211, %v244
      %v248 = vmul.f32 %v212, %v244
      %v249 = vmul.f32 %v213, %v244
      %v250 = vmul.f32 %v214, %v244
      %v251 = vmul.f32 %v215, %v244
      %v252 = vmul.f32 %v216, %v244
      %v253 = vmul.f32 %v217, %v244
      %v254 = vmul.f32 %v218, %v244
      %v255 = vmul.f32 %v219, %v244
      %v256 = vmul.f32 %v220, %v244
      %v257 = vmul.f32 %v221, %v244
      %v258 = vmul.f32 %v222, %v244
      %v259 = vmul.f32 %v223, %v244
      %v260 = vmul.f32 %v224, %v244
      %v261 = vmul.f32 %v225, %v244
      %v262 = vmul.f32 %v226, %v244
      %v263 = vmul.f32 %v227, %v244
      %v264 = vmul.f32 %v228, %v244
      %v265 = vmul.f32 %v229, %v244
      %v266 = vmul.f32 %v230, %v244
      %v267 = vmul.f32 %v231, %v244
      %v268 = vmul.f32 %v232, %v244
      %v269 = vmul.f32 %v233, %v244
      %v270 = vmul.f32 %v234, %v244
      %v271 = vmul.f32 %v235, %v244
      %v272 = vmul.f32 %v236, %v244
      %v273 = vmul.f32 %v237, %v244
      %v274 = vmul.f32 %v238, %v244
      %v275 = vmul.f32 %v239, %v244
      %v276 = vmul.f32 %v240, %v244
      %v277 = vmul.f32 %v241, %v244
      %v278 = vld [vmem:[%s2] sm:$0x1]
      %v280 = vperm.slane %v278, 0
      %v282 = vadd.f32 %v246, %v280
      %v283 = vadd.f32 %v247, %v280
      %v284 = vadd.f32 %v248, %v280
      %v285 = vadd.f32 %v249, %v280
      %v286 = vadd.f32 %v250, %v280
      %v287 = vadd.f32 %v251, %v280
      %v288 = vadd.f32 %v252, %v280
      %v289 = vadd.f32 %v253, %v280
      %v290 = vadd.f32 %v254, %v280
      %v291 = vadd.f32 %v255, %v280
      %v292 = vadd.f32 %v256, %v280
      %v293 = vadd.f32 %v257, %v280
      %v294 = vadd.f32 %v258, %v280
      %v295 = vadd.f32 %v259, %v280
      %v296 = vadd.f32 %v260, %v280
      %v297 = vadd.f32 %v261, %v280
      %v298 = vadd.f32 %v262, %v280
      %v299 = vadd.f32 %v263, %v280
      %v300 = vadd.f32 %v264, %v280
      %v301 = vadd.f32 %v265, %v280
      %v302 = vadd.f32 %v266, %v280
      %v303 = vadd.f32 %v267, %v280
      %v304 = vadd.f32 %v268, %v280
      %v305 = vadd.f32 %v269, %v280
      %v306 = vadd.f32 %v270, %v280
      %v307 = vadd.f32 %v271, %v280
      %v308 = vadd.f32 %v272, %v280
      %v309 = vadd.f32 %v273, %v280
      %v310 = vadd.f32 %v274, %v280
      %v311 = vadd.f32 %v275, %v280
      %v312 = vadd.f32 %v276, %v280
      %v313 = vadd.f32 %v277, %v280
      %v314 = vmax.f32 %v282, 0.0
      %v315 = vmax.f32 %v283, 0.0
      %v316 = vmax.f32 %v284, 0.0
      %v317 = vmax.f32 %v285, 0.0
      %v318 = vmax.f32 %v286, 0.0
      %v319 = vmax.f32 %v287, 0.0
      %v320 = vmax.f32 %v288, 0.0
      %v321 = vmax.f32 %v289, 0.0
      %v322 = vmax.f32 %v290, 0.0
      %v323 = vmax.f32 %v291, 0.0
      %v324 = vmax.f32 %v292, 0.0
      %v325 = vmax.f32 %v293, 0.0
      %v326 = vmax.f32 %v294, 0.0
      %v327 = vmax.f32 %v295, 0.0
      %v328 = vmax.f32 %v296, 0.0
      %v329 = vmax.f32 %v297, 0.0
      %v330 = vmax.f32 %v298, 0.0
      %v331 = vmax.f32 %v299, 0.0
      %v332 = vmax.f32 %v300, 0.0
      %v333 = vmax.f32 %v301, 0.0
      %v334 = vmax.f32 %v302, 0.0
      %v335 = vmax.f32 %v303, 0.0
      %v336 = vmax.f32 %v304, 0.0
      %v337 = vmax.f32 %v305, 0.0
      %v338 = vmax.f32 %v306, 0.0
      %v339 = vmax.f32 %v307, 0.0
      %v340 = vmax.f32 %v308, 0.0
      %v341 = vmax.f32 %v309, 0.0
      %v342 = vmax.f32 %v310, 0.0
      %v343 = vmax.f32 %v311, 0.0
      %v344 = vmax.f32 %v312, 0.0
      %v345 = vmax.f32 %v313, 0.0
      %346 = vxpose.xlu0.b32.start [1/16] %v314, 128
      %347 = vxpose.xlu0.b32.cont [2/16] %v315, 128
      %348 = vxpose.xlu0.b32.cont [3/16] %v316, 128
      %349 = vxpose.xlu0.b32.cont [4/16] %v317, 128
      %350 = vxpose.xlu0.b32.cont [5/16] %v318, 128
      %351 = vxpose.xlu0.b32.cont [6/16] %v319, 128
      %352 = vxpose.xlu0.b32.cont [7/16] %v320, 128
      %353 = vxpose.xlu0.b32.cont [8/16] %v321, 128
      %354 = vxpose.xlu0.b32.cont [9/16] %v322, 128
      %355 = vxpose.xlu0.b32.cont [10/16] %v323, 128
      %356 = vxpose.xlu0.b32.cont [11/16] %v324, 128
      %357 = vxpose.xlu0.b32.cont [12/16] %v325, 128
      %358 = vxpose.xlu0.b32.cont [13/16] %v326, 128
      %359 = vxpose.xlu0.b32.cont [14/16] %v327, 128
      %360 = vxpose.xlu0.b32.cont [15/16] %v328, 128
      %361 = vxpose.xlu0.b32.end [16/16] %v329, 128
      %v362 = vpop.trf.xlu0
      %v363 = vpop.trf.xlu0
      %v364 = vpop.trf.xlu0
      %v365 = vpop.trf.xlu0
      %v366 = vpop.trf.xlu0
      %v367 = vpop.trf.xlu0
      %v368 = vpop.trf.xlu0
      %v369 = vpop.trf.xlu0
      %v370 = vpop.trf.xlu0
      %v371 = vpop.trf.xlu0
      %v372 = vpop.trf.xlu0
      %v373 = vpop.trf.xlu0
      %v374 = vpop.trf.xlu0
      %v375 = vpop.trf.xlu0
      %v376 = vpop.trf.xlu0
      %v377 = vpop.trf.xlu0
      %378 = vxpose.xlu0.b32.start [1/16] %v330, 128
      %379 = vxpose.xlu0.b32.cont [2/16] %v331, 128
      %380 = vxpose.xlu0.b32.cont [3/16] %v332, 128
      %381 = vxpose.xlu0.b32.cont [4/16] %v333, 128
      %382 = vxpose.xlu0.b32.cont [5/16] %v334, 128
      %383 = vxpose.xlu0.b32.cont [6/16] %v335, 128
      %384 = vxpose.xlu0.b32.cont [7/16] %v336, 128
      %385 = vxpose.xlu0.b32.cont [8/16] %v337, 128
      %386 = vxpose.xlu0.b32.cont [9/16] %v338, 128
      %387 = vxpose.xlu0.b32.cont [10/16] %v339, 128
      %388 = vxpose.xlu0.b32.cont [11/16] %v340, 128
      %389 = vxpose.xlu0.b32.cont [12/16] %v341, 128
      %390 = vxpose.xlu0.b32.cont [13/16] %v342, 128
      %391 = vxpose.xlu0.b32.cont [14/16] %v343, 128
      %392 = vxpose.xlu0.b32.cont [15/16] %v344, 128
      %393 = vxpose.xlu0.b32.end [16/16] %v345, 128
      %v394 = vpop.trf.xlu0
      %v395 = vpop.trf.xlu0
      %v396 = vpop.trf.xlu0
      %v397 = vpop.trf.xlu0
      %v398 = vpop.trf.xlu0
      %v399 = vpop.trf.xlu0
      %v400 = vpop.trf.xlu0
      %v401 = vpop.trf.xlu0
      %v402 = vpop.trf.xlu0
      %v403 = vpop.trf.xlu0
      %v404 = vpop.trf.xlu0
      %v405 = vpop.trf.xlu0
      %v406 = vpop.trf.xlu0
      %v407 = vpop.trf.xlu0
      %v408 = vpop.trf.xlu0
      %v409 = vpop.trf.xlu0
      %410 = vst [vmem:[%s208] sm:$0xff] %v362
      %411 = vst [vmem:[%s208 + $0x8] sm:$0xff] %v394
      %s412 = smul.u32 2, %s19
      %p413 = scmp.lt.s32.totalorder %s18, 1
      %s414 = scalar_select %p413, %s18, 1
      %p415 = scmp.lt.s32.totalorder %s412, 7
      %s416 = scalar_select %p415, %s412, 7
      %s417 = smul.addr %s414, 8
      %s418 = sadd.s32 %s416, %s417
      %s419 = smul.addr %s418, 8
      %s420 = scalar_lea.vmem %s3, %s419
      // Predicated region
      $region33: #{dconv_block_forward.5} parent=31 // pred_check
        %p421 = pneg %p116
      $region34: #{dconv_block_forward.5} parent=31 // pred_check_branch
        %423 = sbr.rel (%p421) target = $region36
      $region35: #{dconv_block_forward.5} parent=31 // pred_region
        %s424 = smul.u32 2, %s19
      $region36: #{dconv_block_forward.5} parent=31 // pred_fallthru
        _
    $region32: #{dconv_block_forward.5} parent=5 // pred_fallthru
      _
    %p425 = scmp.le.s32.totalorder 2, %s9
    // Predicated region
    $region37: #{dconv_block_forward.5} parent=5 // pred_check
      %p426 = pneg %p425
    $region38: #{dconv_block_forward.5} parent=5 // pred_check_branch
      %428 = sbr.rel (%p426) target = $region40
    $region39: #{dconv_block_forward.5} parent=5 // pred_region
      %s429 = ssub.s32 %s9, 2
      // Predicated region
      $region41: #{dconv_block_forward.5} parent=39 // pred_check
        %p430 = pneg %p122
      $region42: #{dconv_block_forward.5} parent=39 // pred_check_branch
        %432 = sbr.rel (%p430) target = $region44
      $region43: #{dconv_block_forward.5} parent=39 // pred_region
        %s433 = smul.u32 2, %s21
        %p434 = scmp.lt.s32.totalorder %s20, 1
        %s435 = scalar_select %p434, %s20, 1
        %p436 = scmp.lt.s32.totalorder %s433, 7
        %s437 = scalar_select %p436, %s433, 7
        %s438 = smul.addr %s435, 8
        %s439 = sadd.s32 %s437, %s438
        %s440 = smul.addr %s439, 8
        %s441 = scalar_lea.vmem %s3, %s440
      $region44: #{dconv_block_forward.5} parent=39 // pred_fallthru
        _
    $region40: #{dconv_block_forward.5} parent=5 // pred_fallthru
      _
  $region6: #{dconv_block_forward.5} parent=0 // loop_footer
    %s13 = sadd.s32 1, %s9
  $region7: #{dconv_block_forward.5} parent=0 // loop_footer_branch
    %8 = sbr.rel target = $region3
  $region8: #{dconv_block_forward.5} parent=0 // loop_exit
    _

// kernel: dconv_block_forward.3
$region0: #{dconv_block_forward.3}
  #allocation0 [shape = 'u32[]', space=smem, size = 0x4, offset = 0x4, fixed_abs, tag = 'smem constant byte address 0x4 - core index']
  #allocation1 [shape = 'u32[72,128]{1,0:T(1,128)}', space=vmem, size = 0x9000, scoped, tag = 'internal scratch']
  %s0 = inlined_call_operand.vmem [shape: f32[2,16,16,128], index: 0, kind: input, shape index: {}]
  %s1 = inlined_call_operand.vmem [shape: f32[128,512], index: 1, kind: input, shape index: {}]
  %s2 = inlined_call_operand.vmem [shape: f32[1,512], index: 2, kind: input, shape index: {}]
  %s3 = inlined_call_operand.vmem [shape: f32[2,32,32,128], index: 3, kind: output, shape index: {0}]
  %s4 = inlined_call_operand.vmem [shape: f32[8,1,128], index: 4, kind: output, shape index: {1}]
  %s5 = inlined_call_operand.vmem [shape: f32[8,1,128], index: 5, kind: output, shape index: {2}]
  %6 = xla_tuple %s3, %s4, %s5
  %s7 = sld [smem:[#allocation0]]
  $region61: #{dconv_block_forward.3} parent=0
    _
  %s9 = ssub.s32 1, %s7
  %s10 = scalar_select 0, %s9, %s7
  loop: start=0, step=1, limit=10
  $region2: #{dconv_block_forward.3} parent=0 // loop_pre_header
    _
  $region3: #{dconv_block_forward.3} parent=0 // loop_header
    %s12 = sphi 0, %s16
    %p13 = scmp.ge.s32.totalorder %s12, 10
    %s19 = sphi 0, %s31
    %s20 = sphi 0, %s27
    %s21 = sphi 0, %s19
    %s22 = sphi 0, %s20
    %s23 = sphi 0, %s21
    %s24 = sphi 0, %s22
    %s36 = sphi 0, %s38
    %s39 = sphi 0, %s36
    %s40 = sphi 0, %s39
    %s56 = sphi 0, %s40
    %s60 = sphi 0, %s60
    %s62 = sphi 0, %s60
    %s63 = sphi 0, %s62
    %s77 = sphi 0, %s63
    %s81 = sphi 0, %s81
    %s83 = sphi 0, %s81
    %s84 = sphi 0, %s83
    %s98 = sphi 0, %s84
    %s106 = sphi 0, %s108
    %s109 = sphi 0, %s106
    %s110 = sphi 0, %s109
    %s126 = sphi 0, %s110
    %s136 = sphi 0, %s138
    %s139 = sphi 0, %s136
    %s140 = sphi 0, %s139
    %s156 = sphi 0, %s140
    %s166 = sphi 0, %s168
    %s169 = sphi 0, %s166
    %s170 = sphi 0, %s169
    %s186 = sphi 0, %s170
  $region4: #{dconv_block_forward.3} parent=0 // loop_header_branch
    %15 = sbr.rel (%p13) target = $region8
  $region5: #{dconv_block_forward.3} parent=0 // loop_body
    %s17 = ssub.s32 %s12, 1
    %s18 = ssub.s32 %s12, 2
    %s25 = sadd.s32 1, %s20
    %p26 = scmp.ge.s32.totalorder %s25, 4
    %s27 = scalar_select %p26, 0, %s25
    %s28 = sadd.s32 1, %s19
    %s29 = scalar_select %p26, %s28, %s19
    %p30 = scmp.ge.s32.totalorder %s29, 2
    %s31 = scalar_select %p30, 0, %s29
    %s32 = ssub.s32 %s19, %s31
    %s33 = ssub.s32 %s20, %s27
    %s34 = sor.u32 %s32, %s33
    %p35 = scmp.eq.s32.totalorder %s34, 0
    %s37 = sadd.s32 %s36, 1
    %s38 = scalar_select %p35, %s36, %s37
    %p41 = pneg %p35
    %p42 = scmp.eq.s32.totalorder %s12, 7
    %p43 = por %p41, %p42
    %p44 = scmp.ne.s32.totalorder %s36, %s39
    %p45 = scmp.eq.s32.totalorder %s12, 0
    %p46 = por %p44, %p45
    %p47 = scmp.ne.s32.totalorder %s36, %s39
    %p48 = scmp.eq.s32.totalorder %s17, 7
    %p49 = por %p47, %p48
    %p50 = scmp.ne.s32.totalorder %s39, %s40
    %p51 = scmp.eq.s32.totalorder %s17, 0
    %p52 = por %p50, %p51
    %p53 = scmp.ne.s32.totalorder %s39, %s40
    %p54 = scmp.eq.s32.totalorder %s18, 7
    %p55 = por %p53, %p54
    %p57 = scmp.ne.s32.totalorder %s40, %s56
    %p58 = scmp.eq.s32.totalorder %s18, 0
    %p59 = por %p57, %p58
    %s61 = sadd.s32 %s60, 1
    %p64 = scmp.eq.s32.totalorder %s12, 7
    %p65 = scmp.ne.s32.totalorder %s60, %s62
    %p66 = scmp.eq.s32.totalorder %s12, 0
    %p67 = por %p65, %p66
    %p68 = scmp.ne.s32.totalorder %s60, %s62
    %p69 = scmp.eq.s32.totalorder %s17, 7
    %p70 = por %p68, %p69
    %p71 = scmp.ne.s32.totalorder %s62, %s63
    %p72 = scmp.eq.s32.totalorder %s17, 0
    %p73 = por %p71, %p72
    %p74 = scmp.ne.s32.totalorder %s62, %s63
    %p75 = scmp.eq.s32.totalorder %s18, 7
    %p76 = por %p74, %p75
    %p78 = scmp.ne.s32.totalorder %s63, %s77
    %p79 = scmp.eq.s32.totalorder %s18, 0
    %p80 = por %p78, %p79
    %s82 = sadd.s32 %s81, 1
    %p85 = scmp.eq.s32.totalorder %s12, 7
    %p86 = scmp.ne.s32.totalorder %s81, %s83
    %p87 = scmp.eq.s32.totalorder %s12, 0
    %p88 = por %p86, %p87
    %p89 = scmp.ne.s32.totalorder %s81, %s83
    %p90 = scmp.eq.s32.totalorder %s17, 7
    %p91 = por %p89, %p90
    %p92 = scmp.ne.s32.totalorder %s83, %s84
    %p93 = scmp.eq.s32.totalorder %s17, 0
    %p94 = por %p92, %p93
    %p95 = scmp.ne.s32.totalorder %s83, %s84
    %p96 = scmp.eq.s32.totalorder %s18, 7
    %p97 = por %p95, %p96
    %p99 = scmp.ne.s32.totalorder %s84, %s98
    %p100 = scmp.eq.s32.totalorder %s18, 0
    %p101 = por %p99, %p100
    %s102 = ssub.s32 %s19, %s31
    %s103 = ssub.s32 %s20, %s27
    %s104 = sor.u32 %s102, %s103
    %p105 = scmp.eq.s32.totalorder %s104, 0
    %s107 = sadd.s32 %s106, 1
    %s108 = scalar_select %p105, %s106, %s107
    %p111 = pneg %p105
    %p112 = scmp.eq.s32.totalorder %s12, 7
    %p113 = por %p111, %p112
    %p114 = scmp.ne.s32.totalorder %s106, %s109
    %p115 = scmp.eq.s32.totalorder %s12, 0
    %p116 = por %p114, %p115
    %p117 = scmp.ne.s32.totalorder %s106, %s109
    %p118 = scmp.eq.s32.totalorder %s17, 7
    %p119 = por %p117, %p118
    %p120 = scmp.ne.s32.totalorder %s109, %s110
    %p121 = scmp.eq.s32.totalorder %s17, 0
    %p122 = por %p120, %p121
    %p123 = scmp.ne.s32.totalorder %s109, %s110
    %p124 = scmp.eq.s32.totalorder %s18, 7
    %p125 = por %p123, %p124
    %p127 = scmp.ne.s32.totalorder %s110, %s126
    %p128 = scmp.eq.s32.totalorder %s18, 0
    %p129 = por %p127, %p128
    %s130 = smul.u32 %s19, 4
    %s131 = sadd.s32 %s130, %s20
    %s132 = smul.u32 %s31, 4
    %s133 = sadd.s32 %s132, %s27
    %s134 = ssub.s32 %s131, %s133
    %p135 = scmp.eq.s32.totalorder %s134, 0
    %s137 = sadd.s32 %s136, 1
    %s138 = scalar_select %p135, %s136, %s137
    %p141 = pneg %p135
    %p142 = scmp.eq.s32.totalorder %s12, 7
    %p143 = por %p141, %p142
    %p144 = scmp.ne.s32.totalorder %s136, %s139
    %p145 = scmp.eq.s32.totalorder %s12, 0
    %p146 = por %p144, %p145
    %p147 = scmp.ne.s32.totalorder %s136, %s139
    %p148 = scmp.eq.s32.totalorder %s17, 7
    %p149 = por %p147, %p148
    %p150 = scmp.ne.s32.totalorder %s139, %s140
    %p151 = scmp.eq.s32.totalorder %s17, 0
    %p152 = por %p150, %p151
    %p153 = scmp.ne.s32.totalorder %s139, %s140
    %p154 = scmp.eq.s32.totalorder %s18, 7
    %p155 = por %p153, %p154
    %p157 = scmp.ne.s32.totalorder %s140, %s156
    %p158 = scmp.eq.s32.totalorder %s18, 0
    %p159 = por %p157, %p158
    %s160 = smul.u32 %s19, 4
    %s161 = sadd.s32 %s160, %s20
    %s162 = smul.u32 %s31, 4
    %s163 = sadd.s32 %s162, %s27
    %s164 = ssub.s32 %s161, %s163
    %p165 = scmp.eq.s32.totalorder %s164, 0
    %s167 = sadd.s32 %s166, 1
    %s168 = scalar_select %p165, %s166, %s167
    %p171 = pneg %p165
    %p172 = scmp.eq.s32.totalorder %s12, 7
    %p173 = por %p171, %p172
    %p174 = scmp.ne.s32.totalorder %s166, %s169
    %p175 = scmp.eq.s32.totalorder %s12, 0
    %p176 = por %p174, %p175
    %p177 = scmp.ne.s32.totalorder %s166, %s169
    %p178 = scmp.eq.s32.totalorder %s17, 7
    %p179 = por %p177, %p178
    %p180 = scmp.ne.s32.totalorder %s169, %s170
    %p181 = scmp.eq.s32.totalorder %s17, 0
    %p182 = por %p180, %p181
    %p183 = scmp.ne.s32.totalorder %s169, %s170
    %p184 = scmp.eq.s32.totalorder %s18, 7
    %p185 = por %p183, %p184
    %p187 = scmp.ne.s32.totalorder %s170, %s186
    %p188 = scmp.eq.s32.totalorder %s18, 0
    %p189 = por %p187, %p188
    %p190 = scmp.le.s32.totalorder 1, %s12
    %p191 = scmp.lt.s32.totalorder %s12, 9
    %p192 = pnand %p190, %p191
    %p193 = pneg %p192
    // Predicated region
    $region9: #{dconv_block_forward.3} parent=5 // pred_check
      _
    $region10: #{dconv_block_forward.3} parent=5 // pred_check_branch
      %195 = sbr.rel (%p192) target = $region12
    $region11: #{dconv_block_forward.3} parent=5 // pred_region
      %s196 = ssub.s32 %s12, 1
      // Predicated region
      $region13: #{dconv_block_forward.3} parent=11 // pred_check
        %p197 = pneg %p73
      $region14: #{dconv_block_forward.3} parent=11 // pred_check_branch
        %199 = sbr.rel (%p197) target = $region16
      $region15: #{dconv_block_forward.3} parent=11 // pred_region
        _
      $region16: #{dconv_block_forward.3} parent=11 // pred_fallthru
        _
      // Predicated region
      $region17: #{dconv_block_forward.3} parent=11 // pred_check
        %p200 = pneg %p94
      $region18: #{dconv_block_forward.3} parent=11 // pred_check_branch
        %202 = sbr.rel (%p200) target = $region20
      $region19: #{dconv_block_forward.3} parent=11 // pred_region
        _
      $region20: #{dconv_block_forward.3} parent=11 // pred_fallthru
        _
    $region12: #{dconv_block_forward.3} parent=5 // pred_fallthru
      _
    %p203 = scmp.lt.s32.totalorder %s12, 8
    // Predicated region
    $region21: #{dconv_block_forward.3} parent=5 // pred_check
      %p204 = pneg %p203
    $region22: #{dconv_block_forward.3} parent=5 // pred_check_branch
      %206 = sbr.rel (%p204) target = $region24
    $region23: #{dconv_block_forward.3} parent=5 // pred_region
      // Predicated region
      $region25: #{dconv_block_forward.3} parent=23 // pred_check
        %p207 = pneg %p46
      $region26: #{dconv_block_forward.3} parent=23 // pred_check_branch
        %209 = sbr.rel (%p207) target = $region28
      $region27: #{dconv_block_forward.3} parent=23 // pred_region
        %s210 = smul.u32 4, %s20
        %p211 = scmp.lt.s32.totalorder %s19, 1
        %s212 = scalar_select %p211, %s19, 1
        %p213 = scmp.lt.s32.totalorder %s210, 15
        %s214 = scalar_select %p213, %s210, 15
        %s215 = smul.addr %s214, 2
        %s216 = smul.addr %s212, 32
        %s217 = sadd.s32 %s215, %s216
        %s218 = smul.addr %s217, 8
        %s219 = scalar_lea.vmem %s0, %s218
        %s220 = smul.u32 4, %s20
      $region28: #{dconv_block_forward.3} parent=23 // pred_fallthru
        _
    $region24: #{dconv_block_forward.3} parent=5 // pred_fallthru
      _
    %p221 = scmp.le.s32.totalorder 1, %s12
    %p222 = scmp.lt.s32.totalorder %s12, 9
    %p223 = pnand %p221, %p222
    %p224 = pneg %p223
    // Predicated region
    $region29: #{dconv_block_forward.3} parent=5 // pred_check
      _
    $region30: #{dconv_block_forward.3} parent=5 // pred_check_branch
      %226 = sbr.rel (%p223) target = $region32
    $region31: #{dconv_block_forward.3} parent=5 // pred_region
      %s227 = ssub.s32 %s12, 1
      %s228 = smul.u32 4, %s22
      %p229 = scmp.lt.s32.totalorder %s21, 1
      %s230 = scalar_select %p229, %s21, 1
      %p231 = scmp.lt.s32.totalorder %s228, 15
      %s232 = scalar_select %p231, %s228, 15
      %s233 = smul.addr %s232, 2
      %s234 = smul.addr %s230, 32
      %s235 = sadd.s32 %s233, %s234
      %s236 = smul.addr %s235, 8
      %s237 = scalar_lea.vmem %s0, %s236
      %p238 = pneg %p52
      %p239 = pneg %p49
      %p240 = pneg %p73
      %p241 = pneg %p70
      %p242 = pneg %p94
      %p243 = pneg %p91
      %p244 = pneg %p122
      %p245 = pneg %p119
      %s246 = smul.u32 8, %s22
      %p247 = scmp.lt.s32.totalorder %s21, 1
      %s248 = scalar_select %p247, %s21, 1
      %p249 = scmp.lt.s32.totalorder %s246, 31
      %s250 = scalar_select %p249, %s246, 31
      %s251 = smul.addr %s250, 4
      %s252 = smul.addr %s248, 128
      %s253 = sadd.s32 %s251, %s252
      %s254 = smul.addr %s253, 8
      %s255 = scalar_lea.vmem %s3, %s254
      %p256 = pneg %p152
      %p257 = pneg %p149
      %s258 = smul.u32 %s21, 4
      %s259 = sadd.s32 %s258, %s22
      %p260 = scmp.lt.s32.totalorder %s259, 7
      %s261 = scalar_select %p260, %s259, 7
      %s262 = scalar_lea.vmem %s4, %s261
      %p263 = pneg %p182
      %p264 = pneg %p179
      %s265 = smul.u32 %s21, 4
      %s266 = sadd.s32 %s265, %s22
      %p267 = scmp.lt.s32.totalorder %s266, 7
      %s268 = scalar_select %p267, %s266, 7
      %s269 = scalar_lea.vmem %s5, %s268
      %s270 = smul.u32 4, %s22
      %p271 = scmp.lt.s32.totalorder %s21, 1
      %s272 = scalar_select %p271, %s21, 1
      %p273 = scmp.lt.s32.totalorder %s270, 15
      %s274 = scalar_select %p273, %s270, 15
      %s275 = smul.addr %s274, 2
      %s276 = smul.addr %s272, 32
      %s277 = sadd.s32 %s275, %s276
      %s278 = smul.addr %s277, 8
      %s279 = scalar_lea.vmem %s0, %s278
      %s280 = smul.u32 4, %s22
      %s281 = smul.u32 8, %s22
      %p282 = scmp.lt.s32.totalorder %s21, 1
      %s283 = scalar_select %p282, %s21, 1
      %p284 = scmp.lt.s32.totalorder %s281, 31
      %s285 = scalar_select %p284, %s281, 31
      %s286 = smul.addr %s285, 4
      %s287 = smul.addr %s283, 128
      %s288 = sadd.s32 %s286, %s287
      %s289 = smul.addr %s288, 8
      %s290 = scalar_lea.vmem %s3, %s289
      %s291 = smul.u32 8, %s22
      %s292 = smul.u32 %s21, 4
      %s293 = sadd.s32 %s292, %s22
      %p294 = scmp.lt.s32.totalorder %s293, 7
      %s295 = scalar_select %p294, %s293, 7
      %s296 = scalar_lea.vmem %s4, %s295
      %s297 = smul.u32 %s21, 4
      %s298 = sadd.s32 %s297, %s22
      %s299 = smul.u32 %s21, 4
      %s300 = sadd.s32 %s299, %s22
      %p301 = scmp.lt.s32.totalorder %s300, 7
      %s302 = scalar_select %p301, %s300, 7
      %s303 = scalar_lea.vmem %s5, %s302
      %s304 = smul.u32 %s21, 4
      %s305 = sadd.s32 %s304, %s22
      %v306 = vld [vmem:[%s279] sm:$0xff]
      %v307 = vld [vmem:[%s279 + $0x8] sm:$0xff]
      %v308 = vld [vmem:[%s279 + $0x10] sm:$0xff]
      %v309 = vld [vmem:[%s279 + $0x18] sm:$0xff]
      %v310 = vld [vmem:[%s279 + $0x20] sm:$0xff]
      %v311 = vld [vmem:[%s279 + $0x28] sm:$0xff]
      %v312 = vld [vmem:[%s279 + $0x30] sm:$0xff]
      %v313 = vld [vmem:[%s279 + $0x38] sm:$0xff]
      %v314 = vld [vmem:[%s1] sm:$0xff]
      %v315 = vld [vmem:[%s1 + $0x8] sm:$0xff]
      %v316 = vld [vmem:[%s1 + $0x10] sm:$0xff]
      %v317 = vld [vmem:[%s1 + $0x18] sm:$0xff]
      %v318 = vld [vmem:[%s1 + $0x20] sm:$0xff]
      %v319 = vld [vmem:[%s1 + $0x28] sm:$0xff]
      %v320 = vld [vmem:[%s1 + $0x30] sm:$0xff]
      %v321 = vld [vmem:[%s1 + $0x38] sm:$0xff]
      %v322 = vld [vmem:[%s1 + $0x40] sm:$0xff]
      %v323 = vld [vmem:[%s1 + $0x48] sm:$0xff]
      %v324 = vld [vmem:[%s1 + $0x50] sm:$0xff]
      %v325 = vld [vmem:[%s1 + $0x58] sm:$0xff]
      %v326 = vld [vmem:[%s1 + $0x60] sm:$0xff]
      %v327 = vld [vmem:[%s1 + $0x68] sm:$0xff]
      %v328 = vld [vmem:[%s1 + $0x70] sm:$0xff]
      %v329 = vld [vmem:[%s1 + $0x78] sm:$0xff]
      %v330 = vld [vmem:[%s1 + $0x80] sm:$0xff]
      %v331 = vld [vmem:[%s1 + $0x88] sm:$0xff]
      %v332 = vld [vmem:[%s1 + $0x90] sm:$0xff]
      %v333 = vld [vmem:[%s1 + $0x98] sm:$0xff]
      %v334 = vld [vmem:[%s1 + $0xa0] sm:$0xff]
      %v335 = vld [vmem:[%s1 + $0xa8] sm:$0xff]
      %v336 = vld [vmem:[%s1 + $0xb0] sm:$0xff]
      %v337 = vld [vmem:[%s1 + $0xb8] sm:$0xff]
      %v338 = vld [vmem:[%s1 + $0xc0] sm:$0xff]
      %v339 = vld [vmem:[%s1 + $0xc8] sm:$0xff]
      %v340 = vld [vmem:[%s1 + $0xd0] sm:$0xff]
      %v341 = vld [vmem:[%s1 + $0xd8] sm:$0xff]
      %v342 = vld [vmem:[%s1 + $0xe0] sm:$0xff]
      %v343 = vld [vmem:[%s1 + $0xe8] sm:$0xff]
      %v344 = vld [vmem:[%s1 + $0xf0] sm:$0xff]
      %v345 = vld [vmem:[%s1 + $0xf8] sm:$0xff]
      %v346 = vld [vmem:[%s1 + $0x100] sm:$0xff]
      %v347 = vld [vmem:[%s1 + $0x108] sm:$0xff]
      %v348 = vld [vmem:[%s1 + $0x110] sm:$0xff]
      %v349 = vld [vmem:[%s1 + $0x118] sm:$0xff]
      %v350 = vld [vmem:[%s1 + $0x120] sm:$0xff]
      %v351 = vld [vmem:[%s1 + $0x128] sm:$0xff]
      %v352 = vld [vmem:[%s1 + $0x130] sm:$0xff]
      %v353 = vld [vmem:[%s1 + $0x138] sm:$0xff]
      %v354 = vld [vmem:[%s1 + $0x140] sm:$0xff]
      %v355 = vld [vmem:[%s1 + $0x148] sm:$0xff]
      %v356 = vld [vmem:[%s1 + $0x150] sm:$0xff]
      %v357 = vld [vmem:[%s1 + $0x158] sm:$0xff]
      %v358 = vld [vmem:[%s1 + $0x160] sm:$0xff]
      %v359 = vld [vmem:[%s1 + $0x168] sm:$0xff]
      %v360 = vld [vmem:[%s1 + $0x170] sm:$0xff]
      %v361 = vld [vmem:[%s1 + $0x178] sm:$0xff]
      %v362 = vld [vmem:[%s1 + $0x180] sm:$0xff]
      %v363 = vld [vmem:[%s1 + $0x188] sm:$0xff]
      %v364 = vld [vmem:[%s1 + $0x190] sm:$0xff]
      %v365 = vld [vmem:[%s1 + $0x198] sm:$0xff]
      %v366 = vld [vmem:[%s1 + $0x1a0] sm:$0xff]
      %v367 = vld [vmem:[%s1 + $0x1a8] sm:$0xff]
      %v368 = vld [vmem:[%s1 + $0x1b0] sm:$0xff]
      %v369 = vld [vmem:[%s1 + $0x1b8] sm:$0xff]
      %v370 = vld [vmem:[%s1 + $0x1c0] sm:$0xff]
      %v371 = vld [vmem:[%s1 + $0x1c8] sm:$0xff]
      %v372 = vld [vmem:[%s1 + $0x1d0] sm:$0xff]
      %v373 = vld [vmem:[%s1 + $0x1d8] sm:$0xff]
      %v374 = vld [vmem:[%s1 + $0x1e0] sm:$0xff]
      %v375 = vld [vmem:[%s1 + $0x1e8] sm:$0xff]
      %v376 = vld [vmem:[%s1 + $0x1f0] sm:$0xff]
      %v377 = vld [vmem:[%s1 + $0x1f8] sm:$0xff]
      %v378 = vld [vmem:[%s2] sm:$0xf]
      %v380 = vperm.slane %v378, 0
      %v381 = vperm.slane %v378, 1
      %v382 = vperm.slane %v378, 2
      %v383 = vperm.slane %v378, 3
      %388 = vmatpush.msra.mxu0 %v374
      %389 = vmatpush.msra.mxu0 %v370
      %390 = vmatpush.msra.mxu0 %v366
      %391 = vmatpush.msra.mxu0 %v362
      %392 = vmatpush.msra.mxu0 %v358
      %393 = vmatpush.msra.mxu0 %v354
      %394 = vmatpush.msra.mxu0 %v350
      %395 = vmatpush.msra.mxu0 %v346
      %396 = vmatpush.msra.mxu0 %v342
      %397 = vmatpush.msra.mxu0 %v338
      %398 = vmatpush.msra.mxu0 %v334
      %399 = vmatpush.msra.mxu0 %v330
      %400 = vmatpush.msra.mxu0 %v326
      %401 = vmatpush.msra.mxu0 %v322
      %402 = vmatpush.msra.mxu0 %v318
      %403 = vmatpush.msra.mxu0 %v314
      %404 = vmatmul.f32.gmra.mxu0 %v306
      %v405 = vpop.f32.mrf.mxu0
      %v406 = vadd.f32 %v380, %v405
      %407 = vmatmul.f32.gmra.mxu0 %v307
      %v408 = vpop.f32.mrf.mxu0
      %v409 = vadd.f32 %v380, %v408
      %410 = vmatmul.f32.gmra.mxu0 %v308
      %v411 = vpop.f32.mrf.mxu0
      %v412 = vadd.f32 %v380, %v411
      %413 = vmatmul.f32.gmra.mxu0 %v309
      %v414 = vpop.f32.mrf.mxu0
      %v415 = vadd.f32 %v380, %v414
      %416 = vmatmul.f32.gmra.mxu0 %v310
      %v417 = vpop.f32.mrf.mxu0
      %v418 = vadd.f32 %v380, %v417
      %419 = vmatmul.f32.gmra.mxu0 %v311
      %v420 = vpop.f32.mrf.mxu0
      %v421 = vadd.f32 %v380, %v420
      %422 = vmatmul.f32.gmra.mxu0 %v312
      %v423 = vpop.f32.mrf.mxu0
      %v424 = vadd.f32 %v380, %v423
      %425 = vmatmul.f32.gmra.mxu0 %v313
      %v426 = vpop.f32.mrf.mxu0
      %v427 = vadd.f32 %v380, %v426
      %428 = vdwg.mxu0
      %429 = vmatpush.msra.mxu0 %v375
      %430 = vmatpush.msra.mxu0 %v371
      %431 = vmatpush.msra.mxu0 %v367
      %432 = vmatpush.msra.mxu0 %v363
      %433 = vmatpush.msra.mxu0 %v359
      %434 = vmatpush.msra.mxu0 %v355
      %435 = vmatpush.msra.mxu0 %v351
      %436 = vmatpush.msra.mxu0 %v347
      %437 = vmatpush.msra.mxu0 %v343
      %438 = vmatpush.msra.mxu0 %v339
      %439 = vmatpush.msra.mxu0 %v335
      %440 = vmatpush.msra.mxu0 %v331
      %441 = vmatpush.msra.mxu0 %v327
      %442 = vmatpush.msra.mxu0 %v323
      %443 = vmatpush.msra.mxu0 %v319
      %444 = vmatpush.msra.mxu0 %v315
      %445 = vmatmul.f32.gmra.mxu0 %v306
      %v446 = vpop.f32.mrf.mxu0
      %v447 = vadd.f32 %v381, %v446
      %448 = vmatmul.f32.gmra.mxu0 %v307
      %v449 = vpop.f32.mrf.mxu0
      %v450 = vadd.f32 %v381, %v449
      %451 = vmatmul.f32.gmra.mxu0 %v308
      %v452 = vpop.f32.mrf.mxu0
      %v453 = vadd.f32 %v381, %v452
      %454 = vmatmul.f32.gmra.mxu0 %v309
      %v455 = vpop.f32.mrf.mxu0
      %v456 = vadd.f32 %v381, %v455
      %457 = vmatmul.f32.gmra.mxu0 %v310
      %v458 = vpop.f32.mrf.mxu0
      %v459 = vadd.f32 %v381, %v458
      %460 = vmatmul.f32.gmra.mxu0 %v311
      %v461 = vpop.f32.mrf.mxu0
      %v462 = vadd.f32 %v381, %v461
      %463 = vmatmul.f32.gmra.mxu0 %v312
      %v464 = vpop.f32.mrf.mxu0
      %v465 = vadd.f32 %v381, %v464
      %466 = vmatmul.f32.gmra.mxu0 %v313
      %v467 = vpop.f32.mrf.mxu0
      %v468 = vadd.f32 %v381, %v467
      %469 = vdwg.mxu0
      %470 = vmatpush.msra.mxu0 %v376
      %471 = vmatpush.msra.mxu0 %v372
      %472 = vmatpush.msra.mxu0 %v368
      %473 = vmatpush.msra.mxu0 %v364
      %474 = vmatpush.msra.mxu0 %v360
      %475 = vmatpush.msra.mxu0 %v356
      %476 = vmatpush.msra.mxu0 %v352
      %477 = vmatpush.msra.mxu0 %v348
      %478 = vmatpush.msra.mxu0 %v344
      %479 = vmatpush.msra.mxu0 %v340
      %480 = vmatpush.msra.mxu0 %v336
      %481 = vmatpush.msra.mxu0 %v332
      %482 = vmatpush.msra.mxu0 %v328
      %483 = vmatpush.msra.mxu0 %v324
      %484 = vmatpush.msra.mxu0 %v320
      %485 = vmatpush.msra.mxu0 %v316
      %486 = vmatmul.f32.gmra.mxu0 %v306
      %v487 = vpop.f32.mrf.mxu0
      %v488 = vadd.f32 %v382, %v487
      %489 = vmatmul.f32.gmra.mxu0 %v307
      %v490 = vpop.f32.mrf.mxu0
      %v491 = vadd.f32 %v382, %v490
      %492 = vmatmul.f32.gmra.mxu0 %v308
      %v493 = vpop.f32.mrf.mxu0
      %v494 = vadd.f32 %v382, %v493
      %495 = vmatmul.f32.gmra.mxu0 %v309
      %v496 = vpop.f32.mrf.mxu0
      %v497 = vadd.f32 %v382, %v496
      %498 = vmatmul.f32.gmra.mxu0 %v310
      %v499 = vpop.f32.mrf.mxu0
      %v500 = vadd.f32 %v382, %v499
      %501 = vmatmul.f32.gmra.mxu0 %v311
      %v502 = vpop.f32.mrf.mxu0
      %v503 = vadd.f32 %v382, %v502
      %504 = vmatmul.f32.gmra.mxu0 %v312
      %v505 = vpop.f32.mrf.mxu0
      %v506 = vadd.f32 %v382, %v505
      %507 = vmatmul.f32.gmra.mxu0 %v313
      %v508 = vpop.f32.mrf.mxu0
      %v509 = vadd.f32 %v382, %v508
      %510 = vdwg.mxu0
      %511 = vmatpush.msra.mxu0 %v377
      %512 = vmatpush.msra.mxu0 %v373
      %513 = vmatpush.msra.mxu0 %v369
      %514 = vmatpush.msra.mxu0 %v365
      %515 = vmatpush.msra.mxu0 %v361
      %516 = vmatpush.msra.mxu0 %v357
      %517 = vmatpush.msra.mxu0 %v353
      %518 = vmatpush.msra.mxu0 %v349
      %519 = vmatpush.msra.mxu0 %v345
      %520 = vmatpush.msra.mxu0 %v341
      %521 = vmatpush.msra.mxu0 %v337
      %522 = vmatpush.msra.mxu0 %v333
      %523 = vmatpush.msra.mxu0 %v329
      %524 = vmatpush.msra.mxu0 %v325
      %525 = vmatpush.msra.mxu0 %v321
      %526 = vmatpush.msra.mxu0 %v317
      %527 = vmatmul.f32.gmra.mxu0 %v306
      %v528 = vpop.f32.mrf.mxu0
      %v529 = vadd.f32 %v383, %v528
      %530 = vmatmul.f32.gmra.mxu0 %v307
      %v531 = vpop.f32.mrf.mxu0
      %v532 = vadd.f32 %v383, %v531
      %533 = vmatmul.f32.gmra.mxu0 %v308
      %v534 = vpop.f32.mrf.mxu0
      %v535 = vadd.f32 %v383, %v534
      %536 = vmatmul.f32.gmra.mxu0 %v309
      %v537 = vpop.f32.mrf.mxu0
      %v538 = vadd.f32 %v383, %v537
      %539 = vmatmul.f32.gmra.mxu0 %v310
      %v540 = vpop.f32.mrf.mxu0
      %v541 = vadd.f32 %v383, %v540
      %542 = vmatmul.f32.gmra.mxu0 %v311
      %v543 = vpop.f32.mrf.mxu0
      %v544 = vadd.f32 %v383, %v543
      %545 = vmatmul.f32.gmra.mxu0 %v312
      %v546 = vpop.f32.mrf.mxu0
      %v547 = vadd.f32 %v383, %v546
      %548 = vmatmul.f32.gmra.mxu0 %v313
      %v549 = vpop.f32.mrf.mxu0
      %v550 = vadd.f32 %v383, %v549
      %551 = vdwg.mxu0
      %v568 = vrot.slane %v447, 4
      %v569 = vrot.slane %v450, 4
      %v570 = vrot.slane %v453, 4
      %v571 = vrot.slane %v456, 4
      %v572 = vrot.slane %v459, 4
      %v573 = vrot.slane %v462, 4
      %v574 = vrot.slane %v465, 4
      %v575 = vrot.slane %v468, 4
      %vm576 = vcmask 1043456
      %v577 = vsel %vm576, %v406, %v568
      %v578 = vsel %vm576, %v568, %v406
      %v579 = vrot.slane %v578, 4
      %v580 = vsel %vm576, %v409, %v569
      %v581 = vsel %vm576, %v569, %v409
      %v582 = vrot.slane %v581, 4
      %v583 = vsel %vm576, %v412, %v570
      %v584 = vsel %vm576, %v570, %v412
      %v585 = vrot.slane %v584, 4
      %v586 = vsel %vm576, %v415, %v571
      %v587 = vsel %vm576, %v571, %v415
      %v588 = vrot.slane %v587, 4
      %v589 = vsel %vm576, %v418, %v572
      %v590 = vsel %vm576, %v572, %v418
      %v591 = vrot.slane %v590, 4
      %v592 = vsel %vm576, %v421, %v573
      %v593 = vsel %vm576, %v573, %v421
      %v594 = vrot.slane %v593, 4
      %v595 = vsel %vm576, %v424, %v574
      %v596 = vsel %vm576, %v574, %v424
      %v597 = vrot.slane %v596, 4
      %v598 = vsel %vm576, %v427, %v575
      %v599 = vsel %vm576, %v575, %v427
      %v600 = vrot.slane %v599, 4
      %v618 = vunpack.c.l.s4 1935823168
      %v619 = vunpack.c.0.s8 %v618
      %v620 = vperm.slane %v577, %v619
      %v622 = vunpack.c.l.s4 1935823168
      %v623 = vunpack.c.0.s8 %v622
      %v624 = vperm.slane %v579, %v623
      %v626 = vunpack.c.l.s4 1935823168
      %v627 = vunpack.c.0.s8 %v626
      %v628 = vperm.slane %v580, %v627
      %v630 = vunpack.c.l.s4 1935823168
      %v631 = vunpack.c.0.s8 %v630
      %v632 = vperm.slane %v582, %v631
      %v634 = vunpack.c.l.s4 1935823168
      %v635 = vunpack.c.0.s8 %v634
      %v636 = vperm.slane %v583, %v635
      %v638 = vunpack.c.l.s4 1935823168
      %v639 = vunpack.c.0.s8 %v638
      %v640 = vperm.slane %v585, %v639
      %v642 = vunpack.c.l.s4 1935823168
      %v643 = vunpack.c.0.s8 %v642
      %v644 = vperm.slane %v586, %v643
      %v646 = vunpack.c.l.s4 1935823168
      %v647 = vunpack.c.0.s8 %v646
      %v648 = vperm.slane %v588, %v647
      %v650 = vunpack.c.l.s4 1935823168
      %v651 = vunpack.c.0.s8 %v650
      %v652 = vperm.slane %v589, %v651
      %v654 = vunpack.c.l.s4 1935823168
      %v655 = vunpack.c.0.s8 %v654
      %v656 = vperm.slane %v591, %v655
      %v658 = vunpack.c.l.s4 1935823168
      %v659 = vunpack.c.0.s8 %v658
      %v660 = vperm.slane %v592, %v659
      %v662 = vunpack.c.l.s4 1935823168
      %v663 = vunpack.c.0.s8 %v662
      %v664 = vperm.slane %v594, %v663
      %v666 = vunpack.c.l.s4 1935823168
      %v667 = vunpack.c.0.s8 %v666
      %v668 = vperm.slane %v595, %v667
      %v670 = vunpack.c.l.s4 1935823168
      %v671 = vunpack.c.0.s8 %v670
      %v672 = vperm.slane %v597, %v671
      %v674 = vunpack.c.l.s4 1935823168
      %v675 = vunpack.c.0.s8 %v674
      %v676 = vperm.slane %v598, %v675
      %v678 = vunpack.c.l.s4 1935823168
      %v679 = vunpack.c.0.s8 %v678
      %v680 = vperm.slane %v600, %v679
      %v697 = vrot.slane %v529, 4
      %v698 = vrot.slane %v532, 4
      %v699 = vrot.slane %v535, 4
      %v700 = vrot.slane %v538, 4
      %v701 = vrot.slane %v541, 4
      %v702 = vrot.slane %v544, 4
      %v703 = vrot.slane %v547, 4
      %v704 = vrot.slane %v550, 4
      %v705 = vsel %vm576, %v488, %v697
      %v706 = vsel %vm576, %v697, %v488
      %v707 = vrot.slane %v706, 4
      %v708 = vsel %vm576, %v491, %v698
      %v709 = vsel %vm576, %v698, %v491
      %v710 = vrot.slane %v709, 4
      %v711 = vsel %vm576, %v494, %v699
      %v712 = vsel %vm576, %v699, %v494
      %v713 = vrot.slane %v712, 4
      %v714 = vsel %vm576, %v497, %v700
      %v715 = vsel %vm576, %v700, %v497
      %v716 = vrot.slane %v715, 4
      %v717 = vsel %vm576, %v500, %v701
      %v718 = vsel %vm576, %v701, %v500
      %v719 = vrot.slane %v718, 4
      %v720 = vsel %vm576, %v503, %v702
      %v721 = vsel %vm576, %v702, %v503
      %v722 = vrot.slane %v721, 4
      %v723 = vsel %vm576, %v506, %v703
      %v724 = vsel %vm576, %v703, %v506
      %v725 = vrot.slane %v724, 4
      %v726 = vsel %vm576, %v509, %v704
      %v727 = vsel %vm576, %v704, %v509
      %v728 = vrot.slane %v727, 4
      %v746 = vunpack.c.l.s4 1935823168
      %v747 = vunpack.c.0.s8 %v746
      %v748 = vperm.slane %v705, %v747
      %v750 = vunpack.c.l.s4 1935823168
      %v751 = vunpack.c.0.s8 %v750
      %v752 = vperm.slane %v707, %v751
      %v754 = vunpack.c.l.s4 1935823168
      %v755 = vunpack.c.0.s8 %v754
      %v756 = vperm.slane %v708, %v755
      %v758 = vunpack.c.l.s4 1935823168
      %v759 = vunpack.c.0.s8 %v758
      %v760 = vperm.slane %v710, %v759
      %v762 = vunpack.c.l.s4 1935823168
      %v763 = vunpack.c.0.s8 %v762
      %v764 = vperm.slane %v711, %v763
      %v766 = vunpack.c.l.s4 1935823168
      %v767 = vunpack.c.0.s8 %v766
      %v768 = vperm.slane %v713, %v767
      %v770 = vunpack.c.l.s4 1935823168
      %v771 = vunpack.c.0.s8 %v770
      %v772 = vperm.slane %v714, %v771
      %v774 = vunpack.c.l.s4 1935823168
      %v775 = vunpack.c.0.s8 %v774
      %v776 = vperm.slane %v716, %v775
      %v778 = vunpack.c.l.s4 1935823168
      %v779 = vunpack.c.0.s8 %v778
      %v780 = vperm.slane %v717, %v779
      %v782 = vunpack.c.l.s4 1935823168
      %v783 = vunpack.c.0.s8 %v782
      %v784 = vperm.slane %v719, %v783
      %v786 = vunpack.c.l.s4 1935823168
      %v787 = vunpack.c.0.s8 %v786
      %v788 = vperm.slane %v720, %v787
      %v790 = vunpack.c.l.s4 1935823168
      %v791 = vunpack.c.0.s8 %v790
      %v792 = vperm.slane %v722, %v791
      %v794 = vunpack.c.l.s4 1935823168
      %v795 = vunpack.c.0.s8 %v794
      %v796 = vperm.slane %v723, %v795
      %v798 = vunpack.c.l.s4 1935823168
      %v799 = vunpack.c.0.s8 %v798
      %v800 = vperm.slane %v725, %v799
      %v802 = vunpack.c.l.s4 1935823168
      %v803 = vunpack.c.0.s8 %v802
      %v804 = vperm.slane %v726, %v803
      %v806 = vunpack.c.l.s4 1935823168
      %v807 = vunpack.c.0.s8 %v806
      %v808 = vperm.slane %v728, %v807
      %809 = vst [vmem:[%s290] sm:$0xff] %v620
      %810 = vst [vmem:[%s290 + $0x8] sm:$0xff] %v624
      %811 = vst [vmem:[%s290 + $0x10] sm:$0xff] %v628
      %812 = vst [vmem:[%s290 + $0x18] sm:$0xff] %v632
      %813 = vst [vmem:[%s290 + $0x20] sm:$0xff] %v748
      %814 = vst [vmem:[%s290 + $0x28] sm:$0xff] %v752
      %815 = vst [vmem:[%s290 + $0x30] sm:$0xff] %v756
      %816 = vst [vmem:[%s290 + $0x38] sm:$0xff] %v760
      %817 = vst [vmem:[%s290 + $0x40] sm:$0xff] %v636
      %818 = vst [vmem:[%s290 + $0x48] sm:$0xff] %v640
      %819 = vst [vmem:[%s290 + $0x50] sm:$0xff] %v644
      %820 = vst [vmem:[%s290 + $0x58] sm:$0xff] %v648
      %821 = vst [vmem:[%s290 + $0x60] sm:$0xff] %v764
      %822 = vst [vmem:[%s290 + $0x68] sm:$0xff] %v768
      %823 = vst [vmem:[%s290 + $0x70] sm:$0xff] %v772
      %824 = vst [vmem:[%s290 + $0x78] sm:$0xff] %v776
      %825 = vst [vmem:[%s290 + $0x80] sm:$0xff] %v652
      %826 = vst [vmem:[%s290 + $0x88] sm:$0xff] %v656
      %827 = vst [vmem:[%s290 + $0x90] sm:$0xff] %v660
      %828 = vst [vmem:[%s290 + $0x98] sm:$0xff] %v664
      %829 = vst [vmem:[%s290 + $0xa0] sm:$0xff] %v780
      %830 = vst [vmem:[%s290 + $0xa8] sm:$0xff] %v784
      %831 = vst [vmem:[%s290 + $0xb0] sm:$0xff] %v788
      %832 = vst [vmem:[%s290 + $0xb8] sm:$0xff] %v792
      %833 = vst [vmem:[%s290 + $0xc0] sm:$0xff] %v668
      %834 = vst [vmem:[%s290 + $0xc8] sm:$0xff] %v672
      %835 = vst [vmem:[%s290 + $0xd0] sm:$0xff] %v676
      %836 = vst [vmem:[%s290 + $0xd8] sm:$0xff] %v680
      %837 = vst [vmem:[%s290 + $0xe0] sm:$0xff] %v796
      %838 = vst [vmem:[%s290 + $0xe8] sm:$0xff] %v800
      %839 = vst [vmem:[%s290 + $0xf0] sm:$0xff] %v804
      %840 = vst [vmem:[%s290 + $0xf8] sm:$0xff] %v808
      %v841 = vadd.f32 %v620, %v748
      %v842 = vadd.f32 %v841, %v636
      %v843 = vadd.f32 %v842, %v764
      %v844 = vadd.f32 %v843, %v652
      %v845 = vadd.f32 %v844, %v780
      %v846 = vadd.f32 %v845, %v668
      %v847 = vadd.f32 %v846, %v796
      %v848 = vadd.f32 %v624, %v752
      %v849 = vadd.f32 %v848, %v640
      %v850 = vadd.f32 %v849, %v768
      %v851 = vadd.f32 %v850, %v656
      %v852 = vadd.f32 %v851, %v784
      %v853 = vadd.f32 %v852, %v672
      %v854 = vadd.f32 %v853, %v800
      %v855 = vadd.f32 %v628, %v756
      %v856 = vadd.f32 %v855, %v644
      %v857 = vadd.f32 %v856, %v772
      %v858 = vadd.f32 %v857, %v660
      %v859 = vadd.f32 %v858, %v788
      %v860 = vadd.f32 %v859, %v676
      %v861 = vadd.f32 %v860, %v804
      %v862 = vadd.f32 %v632, %v760
      %v863 = vadd.f32 %v862, %v648
      %v864 = vadd.f32 %v863, %v776
      %v865 = vadd.f32 %v864, %v664
      %v866 = vadd.f32 %v865, %v792
      %v867 = vadd.f32 %v866, %v680
      %v868 = vadd.f32 %v867, %v808
      %v869 = vadd.f32 %v847, %v854
      %v870 = vadd.f32 %v869, %v861
      %v871 = vadd.f32 %v870, %v868
      %v872 = vrot.slane %v871, 4
      %v873 = vadd.f32 %v871, %v872
      %v874 = vrot.slane %v873, 2
      %v875 = vadd.f32 %v873, %v874
      %v876 = vrot.slane %v875, 1
      %v877 = vadd.f32 %v875, %v876
      %878 = vst [vmem:[%s296] sm:$0x1] %v877
      %v879 = vmul.f32 %v620, %v620
      %v880 = vmul.f32 %v624, %v624
      %v881 = vmul.f32 %v628, %v628
      %v882 = vmul.f32 %v632, %v632
      %v883 = vmul.f32 %v748, %v748
      %v884 = vmul.f32 %v752, %v752
      %v885 = vmul.f32 %v756, %v756
      %v886 = vmul.f32 %v760, %v760
      %v887 = vmul.f32 %v636, %v636
      %v888 = vmul.f32 %v640, %v640
      %v889 = vmul.f32 %v644, %v644
      %v890 = vmul.f32 %v648, %v648
      %v891 = vmul.f32 %v764, %v764
      %v892 = vmul.f32 %v768, %v768
      %v893 = vmul.f32 %v772, %v772
      %v894 = vmul.f32 %v776, %v776
      %v895 = vmul.f32 %v652, %v652
      %v896 = vmul.f32 %v656, %v656
      %v897 = vmul.f32 %v660, %v660
      %v898 = vmul.f32 %v664, %v664
      %v899 = vmul.f32 %v780, %v780
      %v900 = vmul.f32 %v784, %v784
      %v901 = vmul.f32 %v788, %v788
      %v902 = vmul.f32 %v792, %v792
      %v903 = vmul.f32 %v668, %v668
      %v904 = vmul.f32 %v672, %v672
      %v905 = vmul.f32 %v676, %v676
      %v906 = vmul.f32 %v680, %v680
      %v907 = vmul.f32 %v796, %v796
      %v908 = vmul.f32 %v800, %v800
      %v909 = vmul.f32 %v804, %v804
      %v910 = vmul.f32 %v808, %v808
      %v911 = vadd.f32 %v879, %v883
      %v912 = vadd.f32 %v911, %v887
      %v913 = vadd.f32 %v912, %v891
      %v914 = vadd.f32 %v913, %v895
      %v915 = vadd.f32 %v914, %v899
      %v916 = vadd.f32 %v915, %v903
      %v917 = vadd.f32 %v916, %v907
      %v918 = vadd.f32 %v880, %v884
      %v919 = vadd.f32 %v918, %v888
      %v920 = vadd.f32 %v919, %v892
      %v921 = vadd.f32 %v920, %v896
      %v922 = vadd.f32 %v921, %v900
      %v923 = vadd.f32 %v922, %v904
      %v924 = vadd.f32 %v923, %v908
      %v925 = vadd.f32 %v881, %v885
      %v926 = vadd.f32 %v925, %v889
      %v927 = vadd.f32 %v926, %v893
      %v928 = vadd.f32 %v927, %v897
      %v929 = vadd.f32 %v928, %v901
      %v930 = vadd.f32 %v929, %v905
      %v931 = vadd.f32 %v930, %v909
      %v932 = vadd.f32 %v882, %v886
      %v933 = vadd.f32 %v932, %v890
      %v934 = vadd.f32 %v933, %v894
      %v935 = vadd.f32 %v934, %v898
      %v936 = vadd.f32 %v935, %v902
      %v937 = vadd.f32 %v936, %v906
      %v938 = vadd.f32 %v937, %v910
      %v939 = vadd.f32 %v917, %v924
      %v940 = vadd.f32 %v939, %v931
      %v941 = vadd.f32 %v940, %v938
      %v942 = vrot.slane %v941, 4
      %v943 = vadd.f32 %v941, %v942
      %v944 = vrot.slane %v943, 2
      %v945 = vadd.f32 %v943, %v944
      %v946 = vrot.slane %v945, 1
      %v947 = vadd.f32 %v945, %v946
      %948 = vst [vmem:[%s303] sm:$0x1] %v947
      %s949 = smul.u32 8, %s22
      %p950 = scmp.lt.s32.totalorder %s21, 1
      %s951 = scalar_select %p950, %s21, 1
      %p952 = scmp.lt.s32.totalorder %s949, 31
      %s953 = scalar_select %p952, %s949, 31
      %s954 = smul.addr %s953, 4
      %s955 = smul.addr %s951, 128
      %s956 = sadd.s32 %s954, %s955
      %s957 = smul.addr %s956, 8
      %s958 = scalar_lea.vmem %s3, %s957
      %s959 = smul.u32 %s21, 4
      %s960 = sadd.s32 %s959, %s22
      %p961 = scmp.lt.s32.totalorder %s960, 7
      %s962 = scalar_select %p961, %s960, 7
      %s963 = scalar_lea.vmem %s4, %s962
      %s964 = smul.u32 %s21, 4
      %s965 = sadd.s32 %s964, %s22
      %p966 = scmp.lt.s32.totalorder %s965, 7
      %s967 = scalar_select %p966, %s965, 7
      %s968 = scalar_lea.vmem %s5, %s967
      // Predicated region
      $region33: #{dconv_block_forward.3} parent=31 // pred_check
        %p969 = pneg %p119
      $region34: #{dconv_block_forward.3} parent=31 // pred_check_branch
        %971 = sbr.rel (%p969) target = $region36
      $region35: #{dconv_block_forward.3} parent=31 // pred_region
        %s972 = smul.u32 8, %s22
      $region36: #{dconv_block_forward.3} parent=31 // pred_fallthru
        _
      // Predicated region
      $region37: #{dconv_block_forward.3} parent=31 // pred_check
        %p973 = pneg %p149
      $region38: #{dconv_block_forward.3} parent=31 // pred_check_branch
        %975 = sbr.rel (%p973) target = $region40
      $region39: #{dconv_block_forward.3} parent=31 // pred_region
        %s976 = smul.u32 %s21, 4
        %s977 = sadd.s32 %s976, %s22
      $region40: #{dconv_block_forward.3} parent=31 // pred_fallthru
        _
      // Predicated region
      $region41: #{dconv_block_forward.3} parent=31 // pred_check
        %p978 = pneg %p179
      $region42: #{dconv_block_forward.3} parent=31 // pred_check_branch
        %980 = sbr.rel (%p978) target = $region44
      $region43: #{dconv_block_forward.3} parent=31 // pred_region
        %s981 = smul.u32 %s21, 4
        %s982 = sadd.s32 %s981, %s22
      $region44: #{dconv_block_forward.3} parent=31 // pred_fallthru
        _
    $region32: #{dconv_block_forward.3} parent=5 // pred_fallthru
      _
    %p983 = scmp.le.s32.totalorder 2, %s12
    // Predicated region
    $region45: #{dconv_block_forward.3} parent=5 // pred_check
      %p984 = pneg %p983
    $region46: #{dconv_block_forward.3} parent=5 // pred_check_branch
      %986 = sbr.rel (%p984) target = $region48
    $region47: #{dconv_block_forward.3} parent=5 // pred_region
      %s987 = ssub.s32 %s12, 2
      // Predicated region
      $region49: #{dconv_block_forward.3} parent=47 // pred_check
        %p988 = pneg %p125
      $region50: #{dconv_block_forward.3} parent=47 // pred_check_branch
        %990 = sbr.rel (%p988) target = $region52
      $region51: #{dconv_block_forward.3} parent=47 // pred_region
        %s991 = smul.u32 8, %s24
        %p992 = scmp.lt.s32.totalorder %s23, 1
        %s993 = scalar_select %p992, %s23, 1
        %p994 = scmp.lt.s32.totalorder %s991, 31
        %s995 = scalar_select %p994, %s991, 31
        %s996 = smul.addr %s995, 4
        %s997 = smul.addr %s993, 128
        %s998 = sadd.s32 %s996, %s997
        %s999 = smul.addr %s998, 8
        %s1000 = scalar_lea.vmem %s3, %s999
      $region52: #{dconv_block_forward.3} parent=47 // pred_fallthru
        _
      // Predicated region
      $region53: #{dconv_block_forward.3} parent=47 // pred_check
        %p1001 = pneg %p155
      $region54: #{dconv_block_forward.3} parent=47 // pred_check_branch
        %1003 = sbr.rel (%p1001) target = $region56
      $region55: #{dconv_block_forward.3} parent=47 // pred_region
        %s1004 = smul.u32 %s23, 4
        %s1005 = sadd.s32 %s1004, %s24
        %p1006 = scmp.lt.s32.totalorder %s1005, 7
        %s1007 = scalar_select %p1006, %s1005, 7
        %s1008 = scalar_lea.vmem %s4, %s1007
      $region56: #{dconv_block_forward.3} parent=47 // pred_fallthru
        _
      // Predicated region
      $region57: #{dconv_block_forward.3} parent=47 // pred_check
        %p1009 = pneg %p185
      $region58: #{dconv_block_forward.3} parent=47 // pred_check_branch
        %1011 = sbr.rel (%p1009) target = $region60
      $region59: #{dconv_block_forward.3} parent=47 // pred_region
        %s1012 = smul.u32 %s23, 4
        %s1013 = sadd.s32 %s1012, %s24
        %p1014 = scmp.lt.s32.totalorder %s1013, 7
        %s1015 = scalar_select %p1014, %s1013, 7
        %s1016 = scalar_lea.vmem %s5, %s1015
      $region60: #{dconv_block_forward.3} parent=47 // pred_fallthru
        _
    $region48: #{dconv_block_forward.3} parent=5 // pred_fallthru
      _
  $region6: #{dconv_block_forward.3} parent=0 // loop_footer
    %s16 = sadd.s32 1, %s12
  $region7: #{dconv_block_forward.3} parent=0 // loop_footer_branch
    %11 = sbr.rel target = $region3
  $region8: #{dconv_block_forward.3} parent=0 // loop_exit
    _

// kernel: dconv_block_forward.4
$region0: #{dconv_block_forward.4}
  #allocation0 [shape = 'u32[]', space=smem, size = 0x4, offset = 0x4, fixed_abs, tag = 'smem constant byte address 0x4 - core index']
  #allocation1 [shape = 'u32[72,128]{1,0:T(1,128)}', space=vmem, size = 0x9000, scoped, tag = 'internal scratch']
  %s0 = inlined_call_operand.vmem [shape: f32[2,32,32,128], index: 0, kind: input, shape index: {}, may-alias: {0,1,2}]
  %s1 = inlined_call_operand.vmem [shape: f32[2,32,32,128], index: 1, kind: input, shape index: {}, may-alias: {0,1,2}]
  %s2 = inlined_call_operand.vmem [shape: f32[2,32,32,128], index: 2, kind: input, shape index: {}, may-alias: {0,1,2}]
  %s3 = inlined_call_operand.vmem [shape: f32[1,128], index: 3, kind: input, shape index: {}]
  %s4 = inlined_call_operand.vmem [shape: f32[1,128], index: 4, kind: input, shape index: {}]
  %s5 = inlined_call_operand.vmem [shape: f32[9,128,128], index: 5, kind: input, shape index: {}]
  %s6 = inlined_call_operand.vmem [shape: f32[2,32,32,128], index: 6, kind: output, shape index: {0}]
  %s7 = inlined_call_operand.vmem [shape: f32[8,1,128], index: 7, kind: output, shape index: {1}]
  %s8 = inlined_call_operand.vmem [shape: f32[8,1,128], index: 8, kind: output, shape index: {2}]
  %9 = xla_tuple %s6, %s7, %s8
  %s10 = sld [smem:[#allocation0]]
  $region73: #{dconv_block_forward.4} parent=0
    _
  %s12 = ssub.s32 1, %s10
  %s13 = scalar_select 0, %s12, %s10
  loop: start=0, step=1, limit=10
  $region2: #{dconv_block_forward.4} parent=0 // loop_pre_header
    _
  $region3: #{dconv_block_forward.4} parent=0 // loop_header
    %s15 = sphi 0, %s19
    %p16 = scmp.ge.s32.totalorder %s15, 10
    %s22 = sphi 0, %s34
    %s23 = sphi 0, %s30
    %s24 = sphi 0, %s22
    %s25 = sphi 0, %s23
    %s26 = sphi 0, %s24
    %s27 = sphi 0, %s25
    %s39 = sphi 0, %s41
    %s42 = sphi 0, %s39
    %s43 = sphi 0, %s42
    %s59 = sphi 0, %s43
    %s75 = sphi 0, %s77
    %s78 = sphi 0, %s75
    %s79 = sphi 0, %s78
    %s95 = sphi 0, %s79
    %s111 = sphi 0, %s113
    %s114 = sphi 0, %s111
    %s115 = sphi 0, %s114
    %s131 = sphi 0, %s115
    %s135 = sphi 0, %s135
    %s137 = sphi 0, %s135
    %s138 = sphi 0, %s137
    %s152 = sphi 0, %s138
    %s156 = sphi 0, %s156
    %s158 = sphi 0, %s156
    %s159 = sphi 0, %s158
    %s173 = sphi 0, %s159
    %s177 = sphi 0, %s177
    %s179 = sphi 0, %s177
    %s180 = sphi 0, %s179
    %s194 = sphi 0, %s180
    %s202 = sphi 0, %s204
    %s205 = sphi 0, %s202
    %s206 = sphi 0, %s205
    %s222 = sphi 0, %s206
    %s232 = sphi 0, %s234
    %s235 = sphi 0, %s232
    %s236 = sphi 0, %s235
    %s252 = sphi 0, %s236
    %s262 = sphi 0, %s264
    %s265 = sphi 0, %s262
    %s266 = sphi 0, %s265
    %s282 = sphi 0, %s266
  $region4: #{dconv_block_forward.4} parent=0 // loop_header_branch
    %18 = sbr.rel (%p16) target = $region8
  $region5: #{dconv_block_forward.4} parent=0 // loop_body
    %s20 = ssub.s32 %s15, 1
    %s21 = ssub.s32 %s15, 2
    %s28 = sadd.s32 1, %s23
    %p29 = scmp.ge.s32.totalorder %s28, 4
    %s30 = scalar_select %p29, 0, %s28
    %s31 = sadd.s32 1, %s22
    %s32 = scalar_select %p29, %s31, %s22
    %p33 = scmp.ge.s32.totalorder %s32, 2
    %s34 = scalar_select %p33, 0, %s32
    %s35 = ssub.s32 %s22, %s34
    %s36 = ssub.s32 %s23, %s30
    %s37 = sor.u32 %s35, %s36
    %p38 = scmp.eq.s32.totalorder %s37, 0
    %s40 = sadd.s32 %s39, 1
    %s41 = scalar_select %p38, %s39, %s40
    %p44 = pneg %p38
    %p45 = scmp.eq.s32.totalorder %s15, 7
    %p46 = por %p44, %p45
    %p47 = scmp.ne.s32.totalorder %s39, %s42
    %p48 = scmp.eq.s32.totalorder %s15, 0
    %p49 = por %p47, %p48
    %p50 = scmp.ne.s32.totalorder %s39, %s42
    %p51 = scmp.eq.s32.totalorder %s20, 7
    %p52 = por %p50, %p51
    %p53 = scmp.ne.s32.totalorder %s42, %s43
    %p54 = scmp.eq.s32.totalorder %s20, 0
    %p55 = por %p53, %p54
    %p56 = scmp.ne.s32.totalorder %s42, %s43
    %p57 = scmp.eq.s32.totalorder %s21, 7
    %p58 = por %p56, %p57
    %p60 = scmp.ne.s32.totalorder %s43, %s59
    %p61 = scmp.eq.s32.totalorder %s21, 0
    %p62 = por %p60, %p61
    %s63 = smul.u32 %s23, 8
    %s64 = ssub.s32 %s63, 1
    %p65 = scmp.gt.s32.totalorder %s64, 0
    %s66 = scalar_select %p65, %s64, 0
    %s67 = smul.u32 %s30, 8
    %s68 = ssub.s32 %s67, 1
    %p69 = scmp.gt.s32.totalorder %s68, 0
    %s70 = scalar_select %p69, %s68, 0
    %s71 = ssub.s32 %s22, %s34
    %s72 = ssub.s32 %s66, %s70
    %s73 = sor.u32 %s71, %s72
    %p74 = scmp.eq.s32.totalorder %s73, 0
    %s76 = sadd.s32 %s75, 1
    %s77 = scalar_select %p74, %s75, %s76
    %p80 = pneg %p74
    %p81 = scmp.eq.s32.totalorder %s15, 7
    %p82 = por %p80, %p81
    %p83 = scmp.ne.s32.totalorder %s75, %s78
    %p84 = scmp.eq.s32.totalorder %s15, 0
    %p85 = por %p83, %p84
    %p86 = scmp.ne.s32.totalorder %s75, %s78
    %p87 = scmp.eq.s32.totalorder %s20, 7
    %p88 = por %p86, %p87
    %p89 = scmp.ne.s32.totalorder %s78, %s79
    %p90 = scmp.eq.s32.totalorder %s20, 0
    %p91 = por %p89, %p90
    %p92 = scmp.ne.s32.totalorder %s78, %s79
    %p93 = scmp.eq.s32.totalorder %s21, 7
    %p94 = por %p92, %p93
    %p96 = scmp.ne.s32.totalorder %s79, %s95
    %p97 = scmp.eq.s32.totalorder %s21, 0
    %p98 = por %p96, %p97
    %s99 = smul.u32 %s23, 8
    %s100 = sadd.s32 %s99, 8
    %p101 = scmp.lt.s32.totalorder %s100, 31
    %s102 = scalar_select %p101, %s100, 31
    %s103 = smul.u32 %s30, 8
    %s104 = sadd.s32 %s103, 8
    %p105 = scmp.lt.s32.totalorder %s104, 31
    %s106 = scalar_select %p105, %s104, 31
    %s107 = ssub.s32 %s22, %s34
    %s108 = ssub.s32 %s102, %s106
    %s109 = sor.u32 %s107, %s108
    %p110 = scmp.eq.s32.totalorder %s109, 0
    %s112 = sadd.s32 %s111, 1
    %s113 = scalar_select %p110, %s111, %s112
    %p116 = pneg %p110
    %p117 = scmp.eq.s32.totalorder %s15, 7
    %p118 = por %p116, %p117
    %p119 = scmp.ne.s32.totalorder %s111, %s114
    %p120 = scmp.eq.s32.totalorder %s15, 0
    %p121 = por %p119, %p120
    %p122 = scmp.ne.s32.totalorder %s111, %s114
    %p123 = scmp.eq.s32.totalorder %s20, 7
    %p124 = por %p122, %p123
    %p125 = scmp.ne.s32.totalorder %s114, %s115
    %p126 = scmp.eq.s32.totalorder %s20, 0
    %p127 = por %p125, %p126
    %p128 = scmp.ne.s32.totalorder %s114, %s115
    %p129 = scmp.eq.s32.totalorder %s21, 7
    %p130 = por %p128, %p129
    %p132 = scmp.ne.s32.totalorder %s115, %s131
    %p133 = scmp.eq.s32.totalorder %s21, 0
    %p134 = por %p132, %p133
    %s136 = sadd.s32 %s135, 1
    %p139 = scmp.eq.s32.totalorder %s15, 7
    %p140 = scmp.ne.s32.totalorder %s135, %s137
    %p141 = scmp.eq.s32.totalorder %s15, 0
    %p142 = por %p140, %p141
    %p143 = scmp.ne.s32.totalorder %s135, %s137
    %p144 = scmp.eq.s32.totalorder %s20, 7
    %p145 = por %p143, %p144
    %p146 = scmp.ne.s32.totalorder %s137, %s138
    %p147 = scmp.eq.s32.totalorder %s20, 0
    %p148 = por %p146, %p147
    %p149 = scmp.ne.s32.totalorder %s137, %s138
    %p150 = scmp.eq.s32.totalorder %s21, 7
    %p151 = por %p149, %p150
    %p153 = scmp.ne.s32.totalorder %s138, %s152
    %p154 = scmp.eq.s32.totalorder %s21, 0
    %p155 = por %p153, %p154
    %s157 = sadd.s32 %s156, 1
    %p160 = scmp.eq.s32.totalorder %s15, 7
    %p161 = scmp.ne.s32.totalorder %s156, %s158
    %p162 = scmp.eq.s32.totalorder %s15, 0
    %p163 = por %p161, %p162
    %p164 = scmp.ne.s32.totalorder %s156, %s158
    %p165 = scmp.eq.s32.totalorder %s20, 7
    %p166 = por %p164, %p165
    %p167 = scmp.ne.s32.totalorder %s158, %s159
    %p168 = scmp.eq.s32.totalorder %s20, 0
    %p169 = por %p167, %p168
    %p170 = scmp.ne.s32.totalorder %s158, %s159
    %p171 = scmp.eq.s32.totalorder %s21, 7
    %p172 = por %p170, %p171
    %p174 = scmp.ne.s32.totalorder %s159, %s173
    %p175 = scmp.eq.s32.totalorder %s21, 0
    %p176 = por %p174, %p175
    %s178 = sadd.s32 %s177, 1
    %p181 = scmp.eq.s32.totalorder %s15, 7
    %p182 = scmp.ne.s32.totalorder %s177, %s179
    %p183 = scmp.eq.s32.totalorder %s15, 0
    %p184 = por %p182, %p183
    %p185 = scmp.ne.s32.totalorder %s177, %s179
    %p186 = scmp.eq.s32.totalorder %s20, 7
    %p187 = por %p185, %p186
    %p188 = scmp.ne.s32.totalorder %s179, %s180
    %p189 = scmp.eq.s32.totalorder %s20, 0
    %p190 = por %p188, %p189
    %p191 = scmp.ne.s32.totalorder %s179, %s180
    %p192 = scmp.eq.s32.totalorder %s21, 7
    %p193 = por %p191, %p192
    %p195 = scmp.ne.s32.totalorder %s180, %s194
    %p196 = scmp.eq.s32.totalorder %s21, 0
    %p197 = por %p195, %p196
    %s198 = ssub.s32 %s22, %s34
    %s199 = ssub.s32 %s23, %s30
    %s200 = sor.u32 %s198, %s199
    %p201 = scmp.eq.s32.totalorder %s200, 0
    %s203 = sadd.s32 %s202, 1
    %s204 = scalar_select %p201, %s202, %s203
    %p207 = pneg %p201
    %p208 = scmp.eq.s32.totalorder %s15, 7
    %p209 = por %p207, %p208
    %p210 = scmp.ne.s32.totalorder %s202, %s205
    %p211 = scmp.eq.s32.totalorder %s15, 0
    %p212 = por %p210, %p211
    %p213 = scmp.ne.s32.totalorder %s202, %s205
    %p214 = scmp.eq.s32.totalorder %s20, 7
    %p215 = por %p213, %p214
    %p216 = scmp.ne.s32.totalorder %s205, %s206
    %p217 = scmp.eq.s32.totalorder %s20, 0
    %p218 = por %p216, %p217
    %p219 = scmp.ne.s32.totalorder %s205, %s206
    %p220 = scmp.eq.s32.totalorder %s21, 7
    %p221 = por %p219, %p220
    %p223 = scmp.ne.s32.totalorder %s206, %s222
    %p224 = scmp.eq.s32.totalorder %s21, 0
    %p225 = por %p223, %p224
    %s226 = smul.u32 %s22, 4
    %s227 = sadd.s32 %s226, %s23
    %s228 = smul.u32 %s34, 4
    %s229 = sadd.s32 %s228, %s30
    %s230 = ssub.s32 %s227, %s229
    %p231 = scmp.eq.s32.totalorder %s230, 0
    %s233 = sadd.s32 %s232, 1
    %s234 = scalar_select %p231, %s232, %s233
    %p237 = pneg %p231
    %p238 = scmp.eq.s32.totalorder %s15, 7
    %p239 = por %p237, %p238
    %p240 = scmp.ne.s32.totalorder %s232, %s235
    %p241 = scmp.eq.s32.totalorder %s15, 0
    %p242 = por %p240, %p241
    %p243 = scmp.ne.s32.totalorder %s232, %s235
    %p244 = scmp.eq.s32.totalorder %s20, 7
    %p245 = por %p243, %p244
    %p246 = scmp.ne.s32.totalorder %s235, %s236
    %p247 = scmp.eq.s32.totalorder %s20, 0
    %p248 = por %p246, %p247
    %p249 = scmp.ne.s32.totalorder %s235, %s236
    %p250 = scmp.eq.s32.totalorder %s21, 7
    %p251 = por %p249, %p250
    %p253 = scmp.ne.s32.totalorder %s236, %s252
    %p254 = scmp.eq.s32.totalorder %s21, 0
    %p255 = por %p253, %p254
    %s256 = smul.u32 %s22, 4
    %s257 = sadd.s32 %s256, %s23
    %s258 = smul.u32 %s34, 4
    %s259 = sadd.s32 %s258, %s30
    %s260 = ssub.s32 %s257, %s259
    %p261 = scmp.eq.s32.totalorder %s260, 0
    %s263 = sadd.s32 %s262, 1
    %s264 = scalar_select %p261, %s262, %s263
    %p267 = pneg %p261
    %p268 = scmp.eq.s32.totalorder %s15, 7
    %p269 = por %p267, %p268
    %p270 = scmp.ne.s32.totalorder %s262, %s265
    %p271 = scmp.eq.s32.totalorder %s15, 0
    %p272 = por %p270, %p271
    %p273 = scmp.ne.s32.totalorder %s262, %s265
    %p274 = scmp.eq.s32.totalorder %s20, 7
    %p275 = por %p273, %p274
    %p276 = scmp.ne.s32.totalorder %s265, %s266
    %p277 = scmp.eq.s32.totalorder %s20, 0
    %p278 = por %p276, %p277
    %p279 = scmp.ne.s32.totalorder %s265, %s266
    %p280 = scmp.eq.s32.totalorder %s21, 7
    %p281 = por %p279, %p280
    %p283 = scmp.ne.s32.totalorder %s266, %s282
    %p284 = scmp.eq.s32.totalorder %s21, 0
    %p285 = por %p283, %p284
    %p286 = scmp.le.s32.totalorder 1, %s15
    %p287 = scmp.lt.s32.totalorder %s15, 9
    %p288 = pnand %p286, %p287
    %p289 = pneg %p288
    // Predicated region
    $region9: #{dconv_block_forward.4} parent=5 // pred_check
      _
    $region10: #{dconv_block_forward.4} parent=5 // pred_check_branch
      %291 = sbr.rel (%p288) target = $region12
    $region11: #{dconv_block_forward.4} parent=5 // pred_region
      %s292 = ssub.s32 %s15, 1
      // Predicated region
      $region13: #{dconv_block_forward.4} parent=11 // pred_check
        %p293 = pneg %p148
      $region14: #{dconv_block_forward.4} parent=11 // pred_check_branch
        %295 = sbr.rel (%p293) target = $region16
      $region15: #{dconv_block_forward.4} parent=11 // pred_region
        _
      $region16: #{dconv_block_forward.4} parent=11 // pred_fallthru
        _
      // Predicated region
      $region17: #{dconv_block_forward.4} parent=11 // pred_check
        %p296 = pneg %p169
      $region18: #{dconv_block_forward.4} parent=11 // pred_check_branch
        %298 = sbr.rel (%p296) target = $region20
      $region19: #{dconv_block_forward.4} parent=11 // pred_region
        _
      $region20: #{dconv_block_forward.4} parent=11 // pred_fallthru
        _
      // Predicated region
      $region21: #{dconv_block_forward.4} parent=11 // pred_check
        %p299 = pneg %p190
      $region22: #{dconv_block_forward.4} parent=11 // pred_check_branch
        %301 = sbr.rel (%p299) target = $region24
      $region23: #{dconv_block_forward.4} parent=11 // pred_region
        _
      $region24: #{dconv_block_forward.4} parent=11 // pred_fallthru
        _
    $region12: #{dconv_block_forward.4} parent=5 // pred_fallthru
      _
    %p302 = scmp.lt.s32.totalorder %s15, 8
    // Predicated region
    $region25: #{dconv_block_forward.4} parent=5 // pred_check
      %p303 = pneg %p302
    $region26: #{dconv_block_forward.4} parent=5 // pred_check_branch
      %305 = sbr.rel (%p303) target = $region28
    $region27: #{dconv_block_forward.4} parent=5 // pred_region
      // Predicated region
      $region29: #{dconv_block_forward.4} parent=27 // pred_check
        %p306 = pneg %p49
      $region30: #{dconv_block_forward.4} parent=27 // pred_check_branch
        %308 = sbr.rel (%p306) target = $region32
      $region31: #{dconv_block_forward.4} parent=27 // pred_region
        %s309 = smul.u32 8, %s23
        %p310 = scmp.lt.s32.totalorder %s22, 1
        %s311 = scalar_select %p310, %s22, 1
        %p312 = scmp.lt.s32.totalorder %s309, 31
        %s313 = scalar_select %p312, %s309, 31
        %s314 = smul.addr %s313, 4
        %s315 = smul.addr %s311, 128
        %s316 = sadd.s32 %s314, %s315
        %s317 = smul.addr %s316, 8
        %s318 = scalar_lea.vmem %s0, %s317
        %s319 = smul.u32 8, %s23
      $region32: #{dconv_block_forward.4} parent=27 // pred_fallthru
        _
      // Predicated region
      $region33: #{dconv_block_forward.4} parent=27 // pred_check
        %p320 = pneg %p85
      $region34: #{dconv_block_forward.4} parent=27 // pred_check_branch
        %322 = sbr.rel (%p320) target = $region36
      $region35: #{dconv_block_forward.4} parent=27 // pred_region
        %s323 = smul.u32 %s23, 8
        %s324 = ssub.s32 %s323, 1
        %p325 = scmp.gt.s32.totalorder %s324, 0
        %s326 = scalar_select %p325, %s324, 0
        %p327 = scmp.lt.s32.totalorder %s22, 1
        %s328 = scalar_select %p327, %s22, 1
        %p329 = scmp.lt.s32.totalorder %s326, 31
        %s330 = scalar_select %p329, %s326, 31
        %s331 = smul.addr %s330, 4
        %s332 = smul.addr %s328, 128
        %s333 = sadd.s32 %s331, %s332
        %s334 = smul.addr %s333, 8
        %s335 = scalar_lea.vmem %s1, %s334
        %s336 = smul.u32 %s23, 8
        %s337 = ssub.s32 %s336, 1
        %p338 = scmp.gt.s32.totalorder %s337, 0
        %s339 = scalar_select %p338, %s337, 0
      $region36: #{dconv_block_forward.4} parent=27 // pred_fallthru
        _
      // Predicated region
      $region37: #{dconv_block_forward.4} parent=27 // pred_check
        %p340 = pneg %p121
      $region38: #{dconv_block_forward.4} parent=27 // pred_check_branch
        %342 = sbr.rel (%p340) target = $region40
      $region39: #{dconv_block_forward.4} parent=27 // pred_region
        %s343 = smul.u32 %s23, 8
        %s344 = sadd.s32 %s343, 8
        %p345 = scmp.lt.s32.totalorder %s344, 31
        %s346 = scalar_select %p345, %s344, 31
        %p347 = scmp.lt.s32.totalorder %s22, 1
        %s348 = scalar_select %p347, %s22, 1
        %p349 = scmp.lt.s32.totalorder %s346, 31
        %s350 = scalar_select %p349, %s346, 31
        %s351 = smul.addr %s350, 4
        %s352 = smul.addr %s348, 128
        %s353 = sadd.s32 %s351, %s352
        %s354 = smul.addr %s353, 8
        %s355 = scalar_lea.vmem %s2, %s354
        %s356 = smul.u32 %s23, 8
        %s357 = sadd.s32 %s356, 8
        %p358 = scmp.lt.s32.totalorder %s357, 31
        %s359 = scalar_select %p358, %s357, 31
      $region40: #{dconv_block_forward.4} parent=27 // pred_fallthru
        _
    $region28: #{dconv_block_forward.4} parent=5 // pred_fallthru
      _
    %p360 = scmp.le.s32.totalorder 1, %s15
    %p361 = scmp.lt.s32.totalorder %s15, 9
    %p362 = pnand %p360, %p361
    %p363 = pneg %p362
    // Predicated region
    $region41: #{dconv_block_forward.4} parent=5 // pred_check
      _
    $region42: #{dconv_block_forward.4} parent=5 // pred_check_branch
      %365 = sbr.rel (%p362) target = $region44
    $region43: #{dconv_block_forward.4} parent=5 // pred_region
      %s366 = ssub.s32 %s15, 1
      %s367 = smul.u32 8, %s25
      %p368 = scmp.lt.s32.totalorder %s24, 1
      %s369 = scalar_select %p368, %s24, 1
      %p370 = scmp.lt.s32.totalorder %s367, 31
      %s371 = scalar_select %p370, %s367, 31
      %s372 = smul.addr %s371, 4
      %s373 = smul.addr %s369, 128
      %s374 = sadd.s32 %s372, %s373
      %s375 = smul.addr %s374, 8
      %s376 = scalar_lea.vmem %s0, %s375
      %p377 = pneg %p55
      %p378 = pneg %p52
      %s379 = smul.u32 %s25, 8
      %s380 = ssub.s32 %s379, 1
      %p381 = scmp.gt.s32.totalorder %s380, 0
      %s382 = scalar_select %p381, %s380, 0
      %p383 = scmp.lt.s32.totalorder %s24, 1
      %s384 = scalar_select %p383, %s24, 1
      %p385 = scmp.lt.s32.totalorder %s382, 31
      %s386 = scalar_select %p385, %s382, 31
      %s387 = smul.addr %s386, 4
      %s388 = smul.addr %s384, 128
      %s389 = sadd.s32 %s387, %s388
      %s390 = smul.addr %s389, 8
      %s391 = scalar_lea.vmem %s1, %s390
      %p392 = pneg %p91
      %p393 = pneg %p88
      %s394 = smul.u32 %s25, 8
      %s395 = sadd.s32 %s394, 8
      %p396 = scmp.lt.s32.totalorder %s395, 31
      %s397 = scalar_select %p396, %s395, 31
      %p398 = scmp.lt.s32.totalorder %s24, 1
      %s399 = scalar_select %p398, %s24, 1
      %p400 = scmp.lt.s32.totalorder %s397, 31
      %s401 = scalar_select %p400, %s397, 31
      %s402 = smul.addr %s401, 4
      %s403 = smul.addr %s399, 128
      %s404 = sadd.s32 %s402, %s403
      %s405 = smul.addr %s404, 8
      %s406 = scalar_lea.vmem %s2, %s405
      %p407 = pneg %p127
      %p408 = pneg %p124
      %p409 = pneg %p148
      %p410 = pneg %p145
      %p411 = pneg %p169
      %p412 = pneg %p166
      %p413 = pneg %p190
      %p414 = pneg %p187
      %p415 = pneg %p218
      %p416 = pneg %p215
      %s417 = smul.u32 8, %s25
      %p418 = scmp.lt.s32.totalorder %s24, 1
      %s419 = scalar_select %p418, %s24, 1
      %p420 = scmp.lt.s32.totalorder %s417, 31
      %s421 = scalar_select %p420, %s417, 31
      %s422 = smul.addr %s421, 4
      %s423 = smul.addr %s419, 128
      %s424 = sadd.s32 %s422, %s423
      %s425 = smul.addr %s424, 8
      %s426 = scalar_lea.vmem %s6, %s425
      %p427 = pneg %p248
      %p428 = pneg %p245
      %s429 = smul.u32 %s24, 4
      %s430 = sadd.s32 %s429, %s25
      %p431 = scmp.lt.s32.totalorder %s430, 7
      %s432 = scalar_select %p431, %s430, 7
      %s433 = scalar_lea.vmem %s7, %s432
      %p434 = pneg %p278
      %p435 = pneg %p275
      %s436 = smul.u32 %s24, 4
      %s437 = sadd.s32 %s436, %s25
      %p438 = scmp.lt.s32.totalorder %s437, 7
      %s439 = scalar_select %p438, %s437, 7
      %s440 = scalar_lea.vmem %s8, %s439
      %s441 = smul.u32 8, %s25
      %p442 = scmp.lt.s32.totalorder %s24, 1
      %s443 = scalar_select %p442, %s24, 1
      %p444 = scmp.lt.s32.totalorder %s441, 31
      %s445 = scalar_select %p444, %s441, 31
      %s446 = smul.addr %s445, 4
      %s447 = smul.addr %s443, 128
      %s448 = sadd.s32 %s446, %s447
      %s449 = smul.addr %s448, 8
      %s450 = scalar_lea.vmem %s0, %s449
      %s451 = smul.u32 8, %s25
      %s452 = smul.u32 %s25, 8
      %s453 = ssub.s32 %s452, 1
      %p454 = scmp.gt.s32.totalorder %s453, 0
      %s455 = scalar_select %p454, %s453, 0
      %p456 = scmp.lt.s32.totalorder %s24, 1
      %s457 = scalar_select %p456, %s24, 1
      %p458 = scmp.lt.s32.totalorder %s455, 31
      %s459 = scalar_select %p458, %s455, 31
      %s460 = smul.addr %s459, 4
      %s461 = smul.addr %s457, 128
      %s462 = sadd.s32 %s460, %s461
      %s463 = smul.addr %s462, 8
      %s464 = scalar_lea.vmem %s1, %s463
      %s465 = smul.u32 %s25, 8
      %s466 = ssub.s32 %s465, 1
      %p467 = scmp.gt.s32.totalorder %s466, 0
      %s468 = scalar_select %p467, %s466, 0
      %s469 = smul.u32 %s25, 8
      %s470 = sadd.s32 %s469, 8
      %p471 = scmp.lt.s32.totalorder %s470, 31
      %s472 = scalar_select %p471, %s470, 31
      %p473 = scmp.lt.s32.totalorder %s24, 1
      %s474 = scalar_select %p473, %s24, 1
      %p475 = scmp.lt.s32.totalorder %s472, 31
      %s476 = scalar_select %p475, %s472, 31
      %s477 = smul.addr %s476, 4
      %s478 = smul.addr %s474, 128
      %s479 = sadd.s32 %s477, %s478
      %s480 = smul.addr %s479, 8
      %s481 = scalar_lea.vmem %s2, %s480
      %s482 = smul.u32 %s25, 8
      %s483 = sadd.s32 %s482, 8
      %p484 = scmp.lt.s32.totalorder %s483, 31
      %s485 = scalar_select %p484, %s483, 31
      %s486 = smul.u32 8, %s25
      %p487 = scmp.lt.s32.totalorder %s24, 1
      %s488 = scalar_select %p487, %s24, 1
      %p489 = scmp.lt.s32.totalorder %s486, 31
      %s490 = scalar_select %p489, %s486, 31
      %s491 = smul.addr %s490, 4
      %s492 = smul.addr %s488, 128
      %s493 = sadd.s32 %s491, %s492
      %s494 = smul.addr %s493, 8
      %s495 = scalar_lea.vmem %s6, %s494
      %s496 = smul.u32 8, %s25
      %s497 = smul.u32 %s24, 4
      %s498 = sadd.s32 %s497, %s25
      %p499 = scmp.lt.s32.totalorder %s498, 7
      %s500 = scalar_select %p499, %s498, 7
      %s501 = scalar_lea.vmem %s7, %s500
      %s502 = smul.u32 %s24, 4
      %s503 = sadd.s32 %s502, %s25
      %s504 = smul.u32 %s24, 4
      %s505 = sadd.s32 %s504, %s25
      %p506 = scmp.lt.s32.totalorder %s505, 7
      %s507 = scalar_select %p506, %s505, 7
      %s508 = scalar_lea.vmem %s8, %s507
      %s509 = smul.u32 %s24, 4
      %s510 = sadd.s32 %s509, %s25
      %v511 = vld [vmem:[%s3] sm:$0x1]
      %v512 = vld [vmem:[%s4] sm:$0x1]
      %v513 = vld [vmem:[%s450] sm:$0xff]
      %v514 = vld [vmem:[%s450 + $0x8] sm:$0xff]
      %v515 = vld [vmem:[%s450 + $0x10] sm:$0xff]
      %v516 = vld [vmem:[%s450 + $0x18] sm:$0xff]
      %v517 = vld [vmem:[%s450 + $0x20] sm:$0xff]
      %v518 = vld [vmem:[%s450 + $0x28] sm:$0xff]
      %v519 = vld [vmem:[%s450 + $0x30] sm:$0xff]
      %v520 = vld [vmem:[%s450 + $0x38] sm:$0xff]
      %v521 = vld [vmem:[%s450 + $0x40] sm:$0xff]
      %v522 = vld [vmem:[%s450 + $0x48] sm:$0xff]
      %v523 = vld [vmem:[%s450 + $0x50] sm:$0xff]
      %v524 = vld [vmem:[%s450 + $0x58] sm:$0xff]
      %v525 = vld [vmem:[%s450 + $0x60] sm:$0xff]
      %v526 = vld [vmem:[%s450 + $0x68] sm:$0xff]
      %v527 = vld [vmem:[%s450 + $0x70] sm:$0xff]
      %v528 = vld [vmem:[%s450 + $0x78] sm:$0xff]
      %v529 = vld [vmem:[%s450 + $0x80] sm:$0xff]
      %v530 = vld [vmem:[%s450 + $0x88] sm:$0xff]
      %v531 = vld [vmem:[%s450 + $0x90] sm:$0xff]
      %v532 = vld [vmem:[%s450 + $0x98] sm:$0xff]
      %v533 = vld [vmem:[%s450 + $0xa0] sm:$0xff]
      %v534 = vld [vmem:[%s450 + $0xa8] sm:$0xff]
      %v535 = vld [vmem:[%s450 + $0xb0] sm:$0xff]
      %v536 = vld [vmem:[%s450 + $0xb8] sm:$0xff]
      %v537 = vld [vmem:[%s450 + $0xc0] sm:$0xff]
      %v538 = vld [vmem:[%s450 + $0xc8] sm:$0xff]
      %v539 = vld [vmem:[%s450 + $0xd0] sm:$0xff]
      %v540 = vld [vmem:[%s450 + $0xd8] sm:$0xff]
      %v541 = vld [vmem:[%s450 + $0xe0] sm:$0xff]
      %v542 = vld [vmem:[%s450 + $0xe8] sm:$0xff]
      %v543 = vld [vmem:[%s450 + $0xf0] sm:$0xff]
      %v544 = vld [vmem:[%s450 + $0xf8] sm:$0xff]
      %v546 = vperm.slane %v511, 0
      %v548 = vmul.f32 %v513, %v546
      %v549 = vmul.f32 %v514, %v546
      %v550 = vmul.f32 %v515, %v546
      %v551 = vmul.f32 %v516, %v546
      %v552 = vmul.f32 %v517, %v546
      %v553 = vmul.f32 %v518, %v546
      %v554 = vmul.f32 %v519, %v546
      %v555 = vmul.f32 %v520, %v546
      %v556 = vmul.f32 %v521, %v546
      %v557 = vmul.f32 %v522, %v546
      %v558 = vmul.f32 %v523, %v546
      %v559 = vmul.f32 %v524, %v546
      %v560 = vmul.f32 %v525, %v546
      %v561 = vmul.f32 %v526, %v546
      %v562 = vmul.f32 %v527, %v546
      %v563 = vmul.f32 %v528, %v546
      %v564 = vmul.f32 %v529, %v546
      %v565 = vmul.f32 %v530, %v546
      %v566 = vmul.f32 %v531, %v546
      %v567 = vmul.f32 %v532, %v546
      %v568 = vmul.f32 %v533, %v546
      %v569 = vmul.f32 %v534, %v546
      %v570 = vmul.f32 %v535, %v546
      %v571 = vmul.f32 %v536, %v546
      %v572 = vmul.f32 %v537, %v546
      %v573 = vmul.f32 %v538, %v546
      %v574 = vmul.f32 %v539, %v546
      %v575 = vmul.f32 %v540, %v546
      %v576 = vmul.f32 %v541, %v546
      %v577 = vmul.f32 %v542, %v546
      %v578 = vmul.f32 %v543, %v546
      %v579 = vmul.f32 %v544, %v546
      %v581 = vperm.slane %v512, 0
      %v583 = vadd.f32 %v548, %v581
      %v584 = vadd.f32 %v549, %v581
      %v585 = vadd.f32 %v550, %v581
      %v586 = vadd.f32 %v551, %v581
      %v587 = vadd.f32 %v552, %v581
      %v588 = vadd.f32 %v553, %v581
      %v589 = vadd.f32 %v554, %v581
      %v590 = vadd.f32 %v555, %v581
      %v591 = vadd.f32 %v556, %v581
      %v592 = vadd.f32 %v557, %v581
      %v593 = vadd.f32 %v558, %v581
      %v594 = vadd.f32 %v559, %v581
      %v595 = vadd.f32 %v560, %v581
      %v596 = vadd.f32 %v561, %v581
      %v597 = vadd.f32 %v562, %v581
      %v598 = vadd.f32 %v563, %v581
      %v599 = vadd.f32 %v564, %v581
      %v600 = vadd.f32 %v565, %v581
      %v601 = vadd.f32 %v566, %v581
      %v602 = vadd.f32 %v567, %v581
      %v603 = vadd.f32 %v568, %v581
      %v604 = vadd.f32 %v569, %v581
      %v605 = vadd.f32 %v570, %v581
      %v606 = vadd.f32 %v571, %v581
      %v607 = vadd.f32 %v572, %v581
      %v608 = vadd.f32 %v573, %v581
      %v609 = vadd.f32 %v574, %v581
      %v610 = vadd.f32 %v575, %v581
      %v611 = vadd.f32 %v576, %v581
      %v612 = vadd.f32 %v577, %v581
      %v613 = vadd.f32 %v578, %v581
      %v614 = vadd.f32 %v579, %v581
      %v615 = vmax.f32 %v583, 0.0
      %v616 = vmax.f32 %v584, 0.0
      %v617 = vmax.f32 %v585, 0.0
      %v618 = vmax.f32 %v586, 0.0
      %v619 = vmax.f32 %v587, 0.0
      %v620 = vmax.f32 %v588, 0.0
      %v621 = vmax.f32 %v589, 0.0
      %v622 = vmax.f32 %v590, 0.0
      %v623 = vmax.f32 %v591, 0.0
      %v624 = vmax.f32 %v592, 0.0
      %v625 = vmax.f32 %v593, 0.0
      %v626 = vmax.f32 %v594, 0.0
      %v627 = vmax.f32 %v595, 0.0
      %v628 = vmax.f32 %v596, 0.0
      %v629 = vmax.f32 %v597, 0.0
      %v630 = vmax.f32 %v598, 0.0
      %v631 = vmax.f32 %v599, 0.0
      %v632 = vmax.f32 %v600, 0.0
      %v633 = vmax.f32 %v601, 0.0
      %v634 = vmax.f32 %v602, 0.0
      %v635 = vmax.f32 %v603, 0.0
      %v636 = vmax.f32 %v604, 0.0
      %v637 = vmax.f32 %v605, 0.0
      %v638 = vmax.f32 %v606, 0.0
      %v639 = vmax.f32 %v607, 0.0
      %v640 = vmax.f32 %v608, 0.0
      %v641 = vmax.f32 %v609, 0.0
      %v642 = vmax.f32 %v610, 0.0
      %v643 = vmax.f32 %v611, 0.0
      %v644 = vmax.f32 %v612, 0.0
      %v645 = vmax.f32 %v613, 0.0
      %v646 = vmax.f32 %v614, 0.0
      %v647 = vld [vmem:[%s464] sm:$0xff]
      %v648 = vld [vmem:[%s464 + $0x8] sm:$0xff]
      %v649 = vld [vmem:[%s464 + $0x10] sm:$0xff]
      %v650 = vld [vmem:[%s464 + $0x18] sm:$0xff]
      %v651 = vmul.f32 %v647, %v546
      %v652 = vmul.f32 %v648, %v546
      %v653 = vmul.f32 %v649, %v546
      %v654 = vmul.f32 %v650, %v546
      %v655 = vadd.f32 %v651, %v581
      %v656 = vadd.f32 %v652, %v581
      %v657 = vadd.f32 %v653, %v581
      %v658 = vadd.f32 %v654, %v581
      %v659 = vmax.f32 %v655, 0.0
      %v660 = vmax.f32 %v656, 0.0
      %v661 = vmax.f32 %v657, 0.0
      %v662 = vmax.f32 %v658, 0.0
      %v663 = vld [vmem:[%s481] sm:$0xff]
      %v664 = vld [vmem:[%s481 + $0x8] sm:$0xff]
      %v665 = vld [vmem:[%s481 + $0x10] sm:$0xff]
      %v666 = vld [vmem:[%s481 + $0x18] sm:$0xff]
      %v667 = vmul.f32 %v663, %v546
      %v668 = vmul.f32 %v664, %v546
      %v669 = vmul.f32 %v665, %v546
      %v670 = vmul.f32 %v666, %v546
      %v671 = vadd.f32 %v667, %v581
      %v672 = vadd.f32 %v668, %v581
      %v673 = vadd.f32 %v669, %v581
      %v674 = vadd.f32 %v670, %v581
      %v675 = vmax.f32 %v671, 0.0
      %v676 = vmax.f32 %v672, 0.0
      %v677 = vmax.f32 %v673, 0.0
      %v678 = vmax.f32 %v674, 0.0
      %p679 = scmp.eq.s32.totalorder %s25, 0
      %s680 = scalar_select %p679, 1, 0
      %v681 = vstv %s680
      %vm682 = vcmp.eq.s32.totalorder %v681, 1
      %v683 = vsel %vm682, 0.0, %v659
      %v684 = vsel %vm682, 0.0, %v660
      %v685 = vsel %vm682, 0.0, %v661
      %v686 = vsel %vm682, 0.0, %v662
      %p687 = scmp.eq.s32.totalorder %s25, 3
      %s688 = scalar_select %p687, 1, 0
      %v689 = vstv %s688
      %vm690 = vcmp.eq.s32.totalorder %v689, 1
      %v691 = vsel %vm690, 0.0, %v675
      %v692 = vsel %vm690, 0.0, %v676
      %v693 = vsel %vm690, 0.0, %v677
      %v694 = vsel %vm690, 0.0, %v678
      %v695 = vlaneseq
      %v696 = vshrl.u32 %v695, 7
      %v697 = vadd.s32 %v696, 8
      %v698 = vadd.s32 %v696, 16
      %v699 = vadd.s32 %v696, 24
      %vm700 = vcmp.ge.s32.totalorder %v696, 1
      %vm701 = vcmp.ge.s32.totalorder %v697, 1
      %vm702 = vcmp.ge.s32.totalorder %v698, 1
      %vm703 = vcmp.ge.s32.totalorder %v699, 1
      %v714 = vrot.slane %v686, 7
      %v715 = vrot.slane %v618, 7
      %v716 = vrot.slane %v622, 7
      %v717 = vrot.slane %v626, 7
      %v718 = vrot.slane %v630, 7
      %v719 = vrot.slane %v634, 7
      %v720 = vrot.slane %v638, 7
      %v721 = vrot.slane %v642, 7
      %v722 = vrot.slane %v646, 7
      %v723 = vrot.slane %v694, 7
      %vm764 = vcmask 1040384
      %v765 = vrot.slane %v683, 7
      %v766 = vrot.slane %v684, 7
      %v767 = vsel %vm764, %v765, %v766
      %v768 = vrot.slane %v685, 7
      %v769 = vsel %vm764, %v766, %v768
      %v770 = vsel %vm764, %v768, %v714
      %v771 = vrot.slane %v615, 7
      %v772 = vrot.slane %v616, 7
      %v773 = vsel %vm764, %v771, %v772
      %v774 = vrot.slane %v617, 7
      %v775 = vsel %vm764, %v772, %v774
      %v776 = vsel %vm764, %v774, %v715
      %v777 = vrot.slane %v619, 7
      %v778 = vrot.slane %v620, 7
      %v779 = vsel %vm764, %v777, %v778
      %v780 = vrot.slane %v621, 7
      %v781 = vsel %vm764, %v778, %v780
      %v782 = vsel %vm764, %v780, %v716
      %v783 = vrot.slane %v623, 7
      %v784 = vrot.slane %v624, 7
      %v785 = vsel %vm764, %v783, %v784
      %v786 = vrot.slane %v625, 7
      %v787 = vsel %vm764, %v784, %v786
      %v788 = vsel %vm764, %v786, %v717
      %v789 = vrot.slane %v627, 7
      %v790 = vrot.slane %v628, 7
      %v791 = vsel %vm764, %v789, %v790
      %v792 = vrot.slane %v629, 7
      %v793 = vsel %vm764, %v790, %v792
      %v794 = vsel %vm764, %v792, %v718
      %v795 = vrot.slane %v631, 7
      %v796 = vrot.slane %v632, 7
      %v797 = vsel %vm764, %v795, %v796
      %v798 = vrot.slane %v633, 7
      %v799 = vsel %vm764, %v796, %v798
      %v800 = vsel %vm764, %v798, %v719
      %v801 = vrot.slane %v635, 7
      %v802 = vrot.slane %v636, 7
      %v803 = vsel %vm764, %v801, %v802
      %v804 = vrot.slane %v637, 7
      %v805 = vsel %vm764, %v802, %v804
      %v806 = vsel %vm764, %v804, %v720
      %v807 = vrot.slane %v639, 7
      %v808 = vrot.slane %v640, 7
      %v809 = vsel %vm764, %v807, %v808
      %v810 = vrot.slane %v641, 7
      %v811 = vsel %vm764, %v808, %v810
      %v812 = vsel %vm764, %v810, %v721
      %v813 = vrot.slane %v643, 7
      %v814 = vrot.slane %v644, 7
      %v815 = vsel %vm764, %v813, %v814
      %v816 = vrot.slane %v645, 7
      %v817 = vsel %vm764, %v814, %v816
      %v818 = vsel %vm764, %v816, %v722
      %v819 = vrot.slane %v691, 7
      %v820 = vrot.slane %v692, 7
      %v821 = vsel %vm764, %v819, %v820
      %v822 = vrot.slane %v693, 7
      %v823 = vsel %vm764, %v820, %v822
      %v824 = vsel %vm764, %v822, %v723
      %v865 = vsel %vm764, %v714, %v765
      %v866 = vsel %vm764, %v715, %v771
      %v867 = vsel %vm764, %v716, %v777
      %v868 = vsel %vm764, %v717, %v783
      %v869 = vsel %vm764, %v718, %v789
      %v870 = vsel %vm764, %v719, %v795
      %v871 = vsel %vm764, %v720, %v801
      %v872 = vsel %vm764, %v721, %v807
      %v873 = vsel %vm764, %v722, %v813
      %v874 = vsel %vm764, %v723, %v819
      %v875 = vsel %vm700, %v865, 0.0
      %v876 = vsel %vm701, %v767, 0.0
      %v877 = vsel %vm702, %v769, 0.0
      %v878 = vsel %vm703, %v770, 0.0
      %v879 = vsel %vm700, %v866, 0.0
      %v880 = vsel %vm701, %v773, 0.0
      %v881 = vsel %vm702, %v775, 0.0
      %v882 = vsel %vm703, %v776, 0.0
      %v883 = vsel %vm700, %v867, 0.0
      %v884 = vsel %vm701, %v779, 0.0
      %v885 = vsel %vm702, %v781, 0.0
      %v886 = vsel %vm703, %v782, 0.0
      %v887 = vsel %vm700, %v868, 0.0
      %v888 = vsel %vm701, %v785, 0.0
      %v889 = vsel %vm702, %v787, 0.0
      %v890 = vsel %vm703, %v788, 0.0
      %v891 = vsel %vm700, %v869, 0.0
      %v892 = vsel %vm701, %v791, 0.0
      %v893 = vsel %vm702, %v793, 0.0
      %v894 = vsel %vm703, %v794, 0.0
      %v895 = vsel %vm700, %v870, 0.0
      %v896 = vsel %vm701, %v797, 0.0
      %v897 = vsel %vm702, %v799, 0.0
      %v898 = vsel %vm703, %v800, 0.0
      %v899 = vsel %vm700, %v871, 0.0
      %v900 = vsel %vm701, %v803, 0.0
      %v901 = vsel %vm702, %v805, 0.0
      %v902 = vsel %vm703, %v806, 0.0
      %v903 = vsel %vm700, %v872, 0.0
      %v904 = vsel %vm701, %v809, 0.0
      %v905 = vsel %vm702, %v811, 0.0
      %v906 = vsel %vm703, %v812, 0.0
      %v907 = vsel %vm700, %v873, 0.0
      %v908 = vsel %vm701, %v815, 0.0
      %v909 = vsel %vm702, %v817, 0.0
      %v910 = vsel %vm703, %v818, 0.0
      %v911 = vsel %vm700, %v874, 0.0
      %v912 = vsel %vm701, %v821, 0.0
      %v913 = vsel %vm702, %v823, 0.0
      %v914 = vsel %vm703, %v824, 0.0
      %vm915 = vcmp.le.s32.totalorder %v696, 30
      %vm916 = vcmp.le.s32.totalorder %v697, 30
      %vm917 = vcmp.le.s32.totalorder %v698, 30
      %vm918 = vcmp.le.s32.totalorder %v699, 30
      %vm919 = vcmask 1046528
      %v920 = vrot.slane %v683, 1
      %v921 = vrot.slane %v684, 1
      %v922 = vsel %vm919, %v920, %v921
      %v923 = vrot.slane %v685, 1
      %v924 = vsel %vm919, %v921, %v923
      %v925 = vrot.slane %v686, 1
      %v926 = vsel %vm919, %v923, %v925
      %v927 = vrot.slane %v615, 1
      %v928 = vrot.slane %v616, 1
      %v929 = vsel %vm919, %v927, %v928
      %v930 = vrot.slane %v617, 1
      %v931 = vsel %vm919, %v928, %v930
      %v932 = vrot.slane %v618, 1
      %v933 = vsel %vm919, %v930, %v932
      %v934 = vrot.slane %v619, 1
      %v935 = vrot.slane %v620, 1
      %v936 = vsel %vm919, %v934, %v935
      %v937 = vrot.slane %v621, 1
      %v938 = vsel %vm919, %v935, %v937
      %v939 = vrot.slane %v622, 1
      %v940 = vsel %vm919, %v937, %v939
      %v941 = vrot.slane %v623, 1
      %v942 = vrot.slane %v624, 1
      %v943 = vsel %vm919, %v941, %v942
      %v944 = vrot.slane %v625, 1
      %v945 = vsel %vm919, %v942, %v944
      %v946 = vrot.slane %v626, 1
      %v947 = vsel %vm919, %v944, %v946
      %v948 = vrot.slane %v627, 1
      %v949 = vrot.slane %v628, 1
      %v950 = vsel %vm919, %v948, %v949
      %v951 = vrot.slane %v629, 1
      %v952 = vsel %vm919, %v949, %v951
      %v953 = vrot.slane %v630, 1
      %v954 = vsel %vm919, %v951, %v953
      %v955 = vrot.slane %v631, 1
      %v956 = vrot.slane %v632, 1
      %v957 = vsel %vm919, %v955, %v956
      %v958 = vrot.slane %v633, 1
      %v959 = vsel %vm919, %v956, %v958
      %v960 = vrot.slane %v634, 1
      %v961 = vsel %vm919, %v958, %v960
      %v962 = vrot.slane %v635, 1
      %v963 = vrot.slane %v636, 1
      %v964 = vsel %vm919, %v962, %v963
      %v965 = vrot.slane %v637, 1
      %v966 = vsel %vm919, %v963, %v965
      %v967 = vrot.slane %v638, 1
      %v968 = vsel %vm919, %v965, %v967
      %v969 = vrot.slane %v639, 1
      %v970 = vrot.slane %v640, 1
      %v971 = vsel %vm919, %v969, %v970
      %v972 = vrot.slane %v641, 1
      %v973 = vsel %vm919, %v970, %v972
      %v974 = vrot.slane %v642, 1
      %v975 = vsel %vm919, %v972, %v974
      %v976 = vrot.slane %v643, 1
      %v977 = vrot.slane %v644, 1
      %v978 = vsel %vm919, %v976, %v977
      %v979 = vrot.slane %v645, 1
      %v980 = vsel %vm919, %v977, %v979
      %v981 = vrot.slane %v646, 1
      %v982 = vsel %vm919, %v979, %v981
      %v983 = vrot.slane %v691, 1
      %v984 = vrot.slane %v692, 1
      %v985 = vsel %vm919, %v983, %v984
      %v986 = vrot.slane %v693, 1
      %v987 = vsel %vm919, %v984, %v986
      %v988 = vrot.slane %v694, 1
      %v989 = vsel %vm919, %v986, %v988
      %v1040 = vsel %vm919, %v925, %v920
      %v1041 = vsel %vm919, %v932, %v927
      %v1042 = vsel %vm919, %v939, %v934
      %v1043 = vsel %vm919, %v946, %v941
      %v1044 = vsel %vm919, %v953, %v948
      %v1045 = vsel %vm919, %v960, %v955
      %v1046 = vsel %vm919, %v967, %v962
      %v1047 = vsel %vm919, %v974, %v969
      %v1048 = vsel %vm919, %v981, %v976
      %v1049 = vsel %vm919, %v988, %v983
      %v1050 = vsel %vm915, %v922, 0.0
      %v1051 = vsel %vm916, %v924, 0.0
      %v1052 = vsel %vm917, %v926, 0.0
      %v1053 = vsel %vm918, %v1040, 0.0
      %v1054 = vsel %vm915, %v929, 0.0
      %v1055 = vsel %vm916, %v931, 0.0
      %v1056 = vsel %vm917, %v933, 0.0
      %v1057 = vsel %vm918, %v1041, 0.0
      %v1058 = vsel %vm915, %v936, 0.0
      %v1059 = vsel %vm916, %v938, 0.0
      %v1060 = vsel %vm917, %v940, 0.0
      %v1061 = vsel %vm918, %v1042, 0.0
      %v1062 = vsel %vm915, %v943, 0.0
      %v1063 = vsel %vm916, %v945, 0.0
      %v1064 = vsel %vm917, %v947, 0.0
      %v1065 = vsel %vm918, %v1043, 0.0
      %v1066 = vsel %vm915, %v950, 0.0
      %v1067 = vsel %vm916, %v952, 0.0
      %v1068 = vsel %vm917, %v954, 0.0
      %v1069 = vsel %vm918, %v1044, 0.0
      %v1070 = vsel %vm915, %v957, 0.0
      %v1071 = vsel %vm916, %v959, 0.0
      %v1072 = vsel %vm917, %v961, 0.0
      %v1073 = vsel %vm918, %v1045, 0.0
      %v1074 = vsel %vm915, %v964, 0.0
      %v1075 = vsel %vm916, %v966, 0.0
      %v1076 = vsel %vm917, %v968, 0.0
      %v1077 = vsel %vm918, %v1046, 0.0
      %v1078 = vsel %vm915, %v971, 0.0
      %v1079 = vsel %vm916, %v973, 0.0
      %v1080 = vsel %vm917, %v975, 0.0
      %v1081 = vsel %vm918, %v1047, 0.0
      %v1082 = vsel %vm915, %v978, 0.0
      %v1083 = vsel %vm916, %v980, 0.0
      %v1084 = vsel %vm917, %v982, 0.0
      %v1085 = vsel %vm918, %v1048, 0.0
      %v1086 = vsel %vm915, %v985, 0.0
      %v1087 = vsel %vm916, %v987, 0.0
      %v1088 = vsel %vm917, %v989, 0.0
      %v1089 = vsel %vm918, %v1049, 0.0
      %v1090 = vld [vmem:[%s5] sm:$0xff]
      %v1091 = vld [vmem:[%s5 + $0x8] sm:$0xff]
      %v1092 = vld [vmem:[%s5 + $0x10] sm:$0xff]
      %v1093 = vld [vmem:[%s5 + $0x18] sm:$0xff]
      %v1094 = vld [vmem:[%s5 + $0x20] sm:$0xff]
      %v1095 = vld [vmem:[%s5 + $0x28] sm:$0xff]
      %v1096 = vld [vmem:[%s5 + $0x30] sm:$0xff]
      %v1097 = vld [vmem:[%s5 + $0x38] sm:$0xff]
      %v1098 = vld [vmem:[%s5 + $0x40] sm:$0xff]
      %v1099 = vld [vmem:[%s5 + $0x48] sm:$0xff]
      %v1100 = vld [vmem:[%s5 + $0x50] sm:$0xff]
      %v1101 = vld [vmem:[%s5 + $0x58] sm:$0xff]
      %v1102 = vld [vmem:[%s5 + $0x60] sm:$0xff]
      %v1103 = vld [vmem:[%s5 + $0x68] sm:$0xff]
      %v1104 = vld [vmem:[%s5 + $0x70] sm:$0xff]
      %v1105 = vld [vmem:[%s5 + $0x78] sm:$0xff]
      %s1106 = scalar_lea.vmem %s5, 128
      %v1107 = vld [vmem:[%s1106] sm:$0xff]
      %v1108 = vld [vmem:[%s1106 + $0x8] sm:$0xff]
      %v1109 = vld [vmem:[%s1106 + $0x10] sm:$0xff]
      %v1110 = vld [vmem:[%s1106 + $0x18] sm:$0xff]
      %v1111 = vld [vmem:[%s1106 + $0x20] sm:$0xff]
      %v1112 = vld [vmem:[%s1106 + $0x28] sm:$0xff]
      %v1113 = vld [vmem:[%s1106 + $0x30] sm:$0xff]
      %v1114 = vld [vmem:[%s1106 + $0x38] sm:$0xff]
      %v1115 = vld [vmem:[%s1106 + $0x40] sm:$0xff]
      %v1116 = vld [vmem:[%s1106 + $0x48] sm:$0xff]
      %v1117 = vld [vmem:[%s1106 + $0x50] sm:$0xff]
      %v1118 = vld [vmem:[%s1106 + $0x58] sm:$0xff]
      %v1119 = vld [vmem:[%s1106 + $0x60] sm:$0xff]
      %v1120 = vld [vmem:[%s1106 + $0x68] sm:$0xff]
      %v1121 = vld [vmem:[%s1106 + $0x70] sm:$0xff]
      %v1122 = vld [vmem:[%s1106 + $0x78] sm:$0xff]
      %1123 = vmatpush.msra.mxu0 %v1122
      %1124 = vmatpush.msra.mxu0 %v1121
      %1125 = vmatpush.msra.mxu0 %v1120
      %1126 = vmatpush.msra.mxu0 %v1119
      %1127 = vmatpush.msra.mxu0 %v1118
      %1128 = vmatpush.msra.mxu0 %v1117
      %1129 = vmatpush.msra.mxu0 %v1116
      %1130 = vmatpush.msra.mxu0 %v1115
      %1131 = vmatpush.msra.mxu0 %v1114
      %1132 = vmatpush.msra.mxu0 %v1113
      %1133 = vmatpush.msra.mxu0 %v1112
      %1134 = vmatpush.msra.mxu0 %v1111
      %1135 = vmatpush.msra.mxu0 %v1110
      %1136 = vmatpush.msra.mxu0 %v1109
      %1137 = vmatpush.msra.mxu0 %v1108
      %1138 = vmatpush.msra.mxu0 %v1107
      %1139 = vmatmul.f32.gmra.mxu0 %v683
      %v1140 = vpop.f32.mrf.mxu0
      %v1141 = vadd.f32 0.0, %v1140
      %1142 = vmatmul.f32.gmra.mxu0 %v684
      %v1143 = vpop.f32.mrf.mxu0
      %v1144 = vadd.f32 0.0, %v1143
      %1145 = vmatmul.f32.gmra.mxu0 %v685
      %v1146 = vpop.f32.mrf.mxu0
      %v1147 = vadd.f32 0.0, %v1146
      %1148 = vmatmul.f32.gmra.mxu0 %v686
      %v1149 = vpop.f32.mrf.mxu0
      %v1150 = vadd.f32 0.0, %v1149
      %1151 = vmatmul.f32.gmra.mxu0 %v615
      %v1152 = vpop.f32.mrf.mxu0
      %v1153 = vadd.f32 0.0, %v1152
      %1154 = vmatmul.f32.gmra.mxu0 %v616
      %v1155 = vpop.f32.mrf.mxu0
      %v1156 = vadd.f32 0.0, %v1155
      %1157 = vmatmul.f32.gmra.mxu0 %v617
      %v1158 = vpop.f32.mrf.mxu0
      %v1159 = vadd.f32 0.0, %v1158
      %1160 = vmatmul.f32.gmra.mxu0 %v618
      %v1161 = vpop.f32.mrf.mxu0
      %v1162 = vadd.f32 0.0, %v1161
      %1163 = vmatmul.f32.gmra.mxu0 %v619
      %v1164 = vpop.f32.mrf.mxu0
      %v1165 = vadd.f32 0.0, %v1164
      %1166 = vmatmul.f32.gmra.mxu0 %v620
      %v1167 = vpop.f32.mrf.mxu0
      %v1168 = vadd.f32 0.0, %v1167
      %1169 = vmatmul.f32.gmra.mxu0 %v621
      %v1170 = vpop.f32.mrf.mxu0
      %v1171 = vadd.f32 0.0, %v1170
      %1172 = vmatmul.f32.gmra.mxu0 %v622
      %v1173 = vpop.f32.mrf.mxu0
      %v1174 = vadd.f32 0.0, %v1173
      %1175 = vmatmul.f32.gmra.mxu0 %v623
      %v1176 = vpop.f32.mrf.mxu0
      %v1177 = vadd.f32 0.0, %v1176
      %1178 = vmatmul.f32.gmra.mxu0 %v624
      %v1179 = vpop.f32.mrf.mxu0
      %v1180 = vadd.f32 0.0, %v1179
      %1181 = vmatmul.f32.gmra.mxu0 %v625
      %v1182 = vpop.f32.mrf.mxu0
      %v1183 = vadd.f32 0.0, %v1182
      %1184 = vmatmul.f32.gmra.mxu0 %v626
      %v1185 = vpop.f32.mrf.mxu0
      %v1186 = vadd.f32 0.0, %v1185
      %1187 = vmatmul.f32.gmra.mxu0 %v627
      %v1188 = vpop.f32.mrf.mxu0
      %v1189 = vadd.f32 0.0, %v1188
      %1190 = vmatmul.f32.gmra.mxu0 %v628
      %v1191 = vpop.f32.mrf.mxu0
      %v1192 = vadd.f32 0.0, %v1191
      %1193 = vmatmul.f32.gmra.mxu0 %v629
      %v1194 = vpop.f32.mrf.mxu0
      %v1195 = vadd.f32 0.0, %v1194
      %1196 = vmatmul.f32.gmra.mxu0 %v630
      %v1197 = vpop.f32.mrf.mxu0
      %v1198 = vadd.f32 0.0, %v1197
      %1199 = vmatmul.f32.gmra.mxu0 %v631
      %v1200 = vpop.f32.mrf.mxu0
      %v1201 = vadd.f32 0.0, %v1200
      %1202 = vmatmul.f32.gmra.mxu0 %v632
      %v1203 = vpop.f32.mrf.mxu0
      %v1204 = vadd.f32 0.0, %v1203
      %1205 = vmatmul.f32.gmra.mxu0 %v633
      %v1206 = vpop.f32.mrf.mxu0
      %v1207 = vadd.f32 0.0, %v1206
      %1208 = vmatmul.f32.gmra.mxu0 %v634
      %v1209 = vpop.f32.mrf.mxu0
      %v1210 = vadd.f32 0.0, %v1209
      %1211 = vmatmul.f32.gmra.mxu0 %v635
      %v1212 = vpop.f32.mrf.mxu0
      %v1213 = vadd.f32 0.0, %v1212
      %1214 = vmatmul.f32.gmra.mxu0 %v636
      %v1215 = vpop.f32.mrf.mxu0
      %v1216 = vadd.f32 0.0, %v1215
      %1217 = vmatmul.f32.gmra.mxu0 %v637
      %v1218 = vpop.f32.mrf.mxu0
      %v1219 = vadd.f32 0.0, %v1218
      %1220 = vmatmul.f32.gmra.mxu0 %v638
      %v1221 = vpop.f32.mrf.mxu0
      %v1222 = vadd.f32 0.0, %v1221
      %1223 = vmatmul.f32.gmra.mxu0 %v639
      %v1224 = vpop.f32.mrf.mxu0
      %v1225 = vadd.f32 0.0, %v1224
      %1226 = vmatmul.f32.gmra.mxu0 %v640
      %v1227 = vpop.f32.mrf.mxu0
      %v1228 = vadd.f32 0.0, %v1227
      %1229 = vmatmul.f32.gmra.mxu0 %v641
      %v1230 = vpop.f32.mrf.mxu0
      %v1231 = vadd.f32 0.0, %v1230
      %1232 = vmatmul.f32.gmra.mxu0 %v642
      %v1233 = vpop.f32.mrf.mxu0
      %v1234 = vadd.f32 0.0, %v1233
      %1235 = vdwg.mxu0
      %1236 = vmatpush.msra.mxu0 %v1105
      %1237 = vmatpush.msra.mxu0 %v1104
      %1238 = vmatpush.msra.mxu0 %v1103
      %1239 = vmatpush.msra.mxu0 %v1102
      %1240 = vmatpush.msra.mxu0 %v1101
      %1241 = vmatpush.msra.mxu0 %v1100
      %1242 = vmatpush.msra.mxu0 %v1099
      %1243 = vmatpush.msra.mxu0 %v1098
      %1244 = vmatpush.msra.mxu0 %v1097
      %1245 = vmatpush.msra.mxu0 %v1096
      %1246 = vmatpush.msra.mxu0 %v1095
      %1247 = vmatpush.msra.mxu0 %v1094
      %1248 = vmatpush.msra.mxu0 %v1093
      %1249 = vmatpush.msra.mxu0 %v1092
      %1250 = vmatpush.msra.mxu0 %v1091
      %1251 = vmatpush.msra.mxu0 %v1090
      %1252 = vmatmul.f32.gmra.mxu0 %v875
      %v1253 = vpop.f32.mrf.mxu0
      %v1254 = vadd.f32 %v1141, %v1253
      %1255 = vmatmul.f32.gmra.mxu0 %v876
      %v1256 = vpop.f32.mrf.mxu0
      %v1257 = vadd.f32 %v1144, %v1256
      %1258 = vmatmul.f32.gmra.mxu0 %v877
      %v1259 = vpop.f32.mrf.mxu0
      %v1260 = vadd.f32 %v1147, %v1259
      %1261 = vmatmul.f32.gmra.mxu0 %v878
      %v1262 = vpop.f32.mrf.mxu0
      %v1263 = vadd.f32 %v1150, %v1262
      %1264 = vmatmul.f32.gmra.mxu0 %v879
      %v1265 = vpop.f32.mrf.mxu0
      %v1266 = vadd.f32 %v1153, %v1265
      %1267 = vmatmul.f32.gmra.mxu0 %v880
      %v1268 = vpop.f32.mrf.mxu0
      %v1269 = vadd.f32 %v1156, %v1268
      %1270 = vmatmul.f32.gmra.mxu0 %v881
      %v1271 = vpop.f32.mrf.mxu0
      %v1272 = vadd.f32 %v1159, %v1271
      %1273 = vmatmul.f32.gmra.mxu0 %v882
      %v1274 = vpop.f32.mrf.mxu0
      %v1275 = vadd.f32 %v1162, %v1274
      %1276 = vmatmul.f32.gmra.mxu0 %v883
      %v1277 = vpop.f32.mrf.mxu0
      %v1278 = vadd.f32 %v1165, %v1277
      %1279 = vmatmul.f32.gmra.mxu0 %v884
      %v1280 = vpop.f32.mrf.mxu0
      %v1281 = vadd.f32 %v1168, %v1280
      %1282 = vmatmul.f32.gmra.mxu0 %v885
      %v1283 = vpop.f32.mrf.mxu0
      %v1284 = vadd.f32 %v1171, %v1283
      %1285 = vmatmul.f32.gmra.mxu0 %v886
      %v1286 = vpop.f32.mrf.mxu0
      %v1287 = vadd.f32 %v1174, %v1286
      %1288 = vmatmul.f32.gmra.mxu0 %v887
      %v1289 = vpop.f32.mrf.mxu0
      %v1290 = vadd.f32 %v1177, %v1289
      %1291 = vmatmul.f32.gmra.mxu0 %v888
      %v1292 = vpop.f32.mrf.mxu0
      %v1293 = vadd.f32 %v1180, %v1292
      %1294 = vmatmul.f32.gmra.mxu0 %v889
      %v1295 = vpop.f32.mrf.mxu0
      %v1296 = vadd.f32 %v1183, %v1295
      %1297 = vmatmul.f32.gmra.mxu0 %v890
      %v1298 = vpop.f32.mrf.mxu0
      %v1299 = vadd.f32 %v1186, %v1298
      %1300 = vmatmul.f32.gmra.mxu0 %v891
      %v1301 = vpop.f32.mrf.mxu0
      %v1302 = vadd.f32 %v1189, %v1301
      %1303 = vmatmul.f32.gmra.mxu0 %v892
      %v1304 = vpop.f32.mrf.mxu0
      %v1305 = vadd.f32 %v1192, %v1304
      %1306 = vmatmul.f32.gmra.mxu0 %v893
      %v1307 = vpop.f32.mrf.mxu0
      %v1308 = vadd.f32 %v1195, %v1307
      %1309 = vmatmul.f32.gmra.mxu0 %v894
      %v1310 = vpop.f32.mrf.mxu0
      %v1311 = vadd.f32 %v1198, %v1310
      %1312 = vmatmul.f32.gmra.mxu0 %v895
      %v1313 = vpop.f32.mrf.mxu0
      %v1314 = vadd.f32 %v1201, %v1313
      %1315 = vmatmul.f32.gmra.mxu0 %v896
      %v1316 = vpop.f32.mrf.mxu0
      %v1317 = vadd.f32 %v1204, %v1316
      %1318 = vmatmul.f32.gmra.mxu0 %v897
      %v1319 = vpop.f32.mrf.mxu0
      %v1320 = vadd.f32 %v1207, %v1319
      %1321 = vmatmul.f32.gmra.mxu0 %v898
      %v1322 = vpop.f32.mrf.mxu0
      %v1323 = vadd.f32 %v1210, %v1322
      %1324 = vmatmul.f32.gmra.mxu0 %v899
      %v1325 = vpop.f32.mrf.mxu0
      %v1326 = vadd.f32 %v1213, %v1325
      %1327 = vmatmul.f32.gmra.mxu0 %v900
      %v1328 = vpop.f32.mrf.mxu0
      %v1329 = vadd.f32 %v1216, %v1328
      %1330 = vmatmul.f32.gmra.mxu0 %v901
      %v1331 = vpop.f32.mrf.mxu0
      %v1332 = vadd.f32 %v1219, %v1331
      %1333 = vmatmul.f32.gmra.mxu0 %v902
      %v1334 = vpop.f32.mrf.mxu0
      %v1335 = vadd.f32 %v1222, %v1334
      %1336 = vmatmul.f32.gmra.mxu0 %v903
      %v1337 = vpop.f32.mrf.mxu0
      %v1338 = vadd.f32 %v1225, %v1337
      %1339 = vmatmul.f32.gmra.mxu0 %v904
      %v1340 = vpop.f32.mrf.mxu0
      %v1341 = vadd.f32 %v1228, %v1340
      %1342 = vmatmul.f32.gmra.mxu0 %v905
      %v1343 = vpop.f32.mrf.mxu0
      %v1344 = vadd.f32 %v1231, %v1343
      %1345 = vmatmul.f32.gmra.mxu0 %v906
      %v1346 = vpop.f32.mrf.mxu0
      %v1347 = vadd.f32 %v1234, %v1346
      %1348 = vdwg.mxu0
      %s1349 = scalar_lea.vmem %s5, 256
      %v1350 = vld [vmem:[%s1349] sm:$0xff]
      %v1351 = vld [vmem:[%s1349 + $0x8] sm:$0xff]
      %v1352 = vld [vmem:[%s1349 + $0x10] sm:$0xff]
      %v1353 = vld [vmem:[%s1349 + $0x18] sm:$0xff]
      %v1354 = vld [vmem:[%s1349 + $0x20] sm:$0xff]
      %v1355 = vld [vmem:[%s1349 + $0x28] sm:$0xff]
      %v1356 = vld [vmem:[%s1349 + $0x30] sm:$0xff]
      %v1357 = vld [vmem:[%s1349 + $0x38] sm:$0xff]
      %v1358 = vld [vmem:[%s1349 + $0x40] sm:$0xff]
      %v1359 = vld [vmem:[%s1349 + $0x48] sm:$0xff]
      %v1360 = vld [vmem:[%s1349 + $0x50] sm:$0xff]
      %v1361 = vld [vmem:[%s1349 + $0x58] sm:$0xff]
      %v1362 = vld [vmem:[%s1349 + $0x60] sm:$0xff]
      %v1363 = vld [vmem:[%s1349 + $0x68] sm:$0xff]
      %v1364 = vld [vmem:[%s1349 + $0x70] sm:$0xff]
      %v1365 = vld [vmem:[%s1349 + $0x78] sm:$0xff]
      %1366 = vmatpush.msra.mxu0 %v1365
      %1367 = vmatpush.msra.mxu0 %v1364
      %1368 = vmatpush.msra.mxu0 %v1363
      %1369 = vmatpush.msra.mxu0 %v1362
      %1370 = vmatpush.msra.mxu0 %v1361
      %1371 = vmatpush.msra.mxu0 %v1360
      %1372 = vmatpush.msra.mxu0 %v1359
      %1373 = vmatpush.msra.mxu0 %v1358
      %1374 = vmatpush.msra.mxu0 %v1357
      %1375 = vmatpush.msra.mxu0 %v1356
      %1376 = vmatpush.msra.mxu0 %v1355
      %1377 = vmatpush.msra.mxu0 %v1354
      %1378 = vmatpush.msra.mxu0 %v1353
      %1379 = vmatpush.msra.mxu0 %v1352
      %1380 = vmatpush.msra.mxu0 %v1351
      %1381 = vmatpush.msra.mxu0 %v1350
      %1382 = vmatmul.f32.gmra.mxu0 %v1050
      %v1383 = vpop.f32.mrf.mxu0
      %v1384 = vadd.f32 0.0, %v1383
      %1385 = vmatmul.f32.gmra.mxu0 %v1051
      %v1386 = vpop.f32.mrf.mxu0
      %v1387 = vadd.f32 0.0, %v1386
      %1388 = vmatmul.f32.gmra.mxu0 %v1052
      %v1389 = vpop.f32.mrf.mxu0
      %v1390 = vadd.f32 0.0, %v1389
      %1391 = vmatmul.f32.gmra.mxu0 %v1053
      %v1392 = vpop.f32.mrf.mxu0
      %v1393 = vadd.f32 0.0, %v1392
      %1394 = vmatmul.f32.gmra.mxu0 %v1054
      %v1395 = vpop.f32.mrf.mxu0
      %v1396 = vadd.f32 0.0, %v1395
      %1397 = vmatmul.f32.gmra.mxu0 %v1055
      %v1398 = vpop.f32.mrf.mxu0
      %v1399 = vadd.f32 0.0, %v1398
      %1400 = vmatmul.f32.gmra.mxu0 %v1056
      %v1401 = vpop.f32.mrf.mxu0
      %v1402 = vadd.f32 0.0, %v1401
      %1403 = vmatmul.f32.gmra.mxu0 %v1057
      %v1404 = vpop.f32.mrf.mxu0
      %v1405 = vadd.f32 0.0, %v1404
      %1406 = vmatmul.f32.gmra.mxu0 %v1058
      %v1407 = vpop.f32.mrf.mxu0
      %v1408 = vadd.f32 0.0, %v1407
      %1409 = vmatmul.f32.gmra.mxu0 %v1059
      %v1410 = vpop.f32.mrf.mxu0
      %v1411 = vadd.f32 0.0, %v1410
      %1412 = vmatmul.f32.gmra.mxu0 %v1060
      %v1413 = vpop.f32.mrf.mxu0
      %v1414 = vadd.f32 0.0, %v1413
      %1415 = vmatmul.f32.gmra.mxu0 %v1061
      %v1416 = vpop.f32.mrf.mxu0
      %v1417 = vadd.f32 0.0, %v1416
      %1418 = vmatmul.f32.gmra.mxu0 %v1062
      %v1419 = vpop.f32.mrf.mxu0
      %v1420 = vadd.f32 0.0, %v1419
      %1421 = vmatmul.f32.gmra.mxu0 %v1063
      %v1422 = vpop.f32.mrf.mxu0
      %v1423 = vadd.f32 0.0, %v1422
      %1424 = vmatmul.f32.gmra.mxu0 %v1064
      %v1425 = vpop.f32.mrf.mxu0
      %v1426 = vadd.f32 0.0, %v1425
      %1427 = vmatmul.f32.gmra.mxu0 %v1065
      %v1428 = vpop.f32.mrf.mxu0
      %v1429 = vadd.f32 0.0, %v1428
      %1430 = vmatmul.f32.gmra.mxu0 %v1066
      %v1431 = vpop.f32.mrf.mxu0
      %v1432 = vadd.f32 0.0, %v1431
      %1433 = vmatmul.f32.gmra.mxu0 %v1067
      %v1434 = vpop.f32.mrf.mxu0
      %v1435 = vadd.f32 0.0, %v1434
      %1436 = vmatmul.f32.gmra.mxu0 %v1068
      %v1437 = vpop.f32.mrf.mxu0
      %v1438 = vadd.f32 0.0, %v1437
      %1439 = vmatmul.f32.gmra.mxu0 %v1069
      %v1440 = vpop.f32.mrf.mxu0
      %v1441 = vadd.f32 0.0, %v1440
      %1442 = vmatmul.f32.gmra.mxu0 %v1070
      %v1443 = vpop.f32.mrf.mxu0
      %v1444 = vadd.f32 0.0, %v1443
      %1445 = vmatmul.f32.gmra.mxu0 %v1071
      %v1446 = vpop.f32.mrf.mxu0
      %v1447 = vadd.f32 0.0, %v1446
      %1448 = vmatmul.f32.gmra.mxu0 %v1072
      %v1449 = vpop.f32.mrf.mxu0
      %v1450 = vadd.f32 0.0, %v1449
      %1451 = vmatmul.f32.gmra.mxu0 %v1073
      %v1452 = vpop.f32.mrf.mxu0
      %v1453 = vadd.f32 0.0, %v1452
      %1454 = vmatmul.f32.gmra.mxu0 %v1074
      %v1455 = vpop.f32.mrf.mxu0
      %v1456 = vadd.f32 0.0, %v1455
      %1457 = vmatmul.f32.gmra.mxu0 %v1075
      %v1458 = vpop.f32.mrf.mxu0
      %v1459 = vadd.f32 0.0, %v1458
      %1460 = vmatmul.f32.gmra.mxu0 %v1076
      %v1461 = vpop.f32.mrf.mxu0
      %v1462 = vadd.f32 0.0, %v1461
      %1463 = vmatmul.f32.gmra.mxu0 %v1077
      %v1464 = vpop.f32.mrf.mxu0
      %v1465 = vadd.f32 0.0, %v1464
      %1466 = vmatmul.f32.gmra.mxu0 %v1078
      %v1467 = vpop.f32.mrf.mxu0
      %v1468 = vadd.f32 0.0, %v1467
      %1469 = vmatmul.f32.gmra.mxu0 %v1079
      %v1470 = vpop.f32.mrf.mxu0
      %v1471 = vadd.f32 0.0, %v1470
      %1472 = vmatmul.f32.gmra.mxu0 %v1080
      %v1473 = vpop.f32.mrf.mxu0
      %v1474 = vadd.f32 0.0, %v1473
      %1475 = vmatmul.f32.gmra.mxu0 %v1081
      %v1476 = vpop.f32.mrf.mxu0
      %v1477 = vadd.f32 0.0, %v1476
      %1478 = vdwg.mxu0
      %v1479 = vadd.f32 %v1254, %v1384
      %v1480 = vadd.f32 %v1257, %v1387
      %v1481 = vadd.f32 %v1260, %v1390
      %v1482 = vadd.f32 %v1263, %v1393
      %v1483 = vadd.f32 %v1266, %v1396
      %v1484 = vadd.f32 %v1269, %v1399
      %v1485 = vadd.f32 %v1272, %v1402
      %v1486 = vadd.f32 %v1275, %v1405
      %v1487 = vadd.f32 %v1278, %v1408
      %v1488 = vadd.f32 %v1281, %v1411
      %v1489 = vadd.f32 %v1284, %v1414
      %v1490 = vadd.f32 %v1287, %v1417
      %v1491 = vadd.f32 %v1290, %v1420
      %v1492 = vadd.f32 %v1293, %v1423
      %v1493 = vadd.f32 %v1296, %v1426
      %v1494 = vadd.f32 %v1299, %v1429
      %v1495 = vadd.f32 %v1302, %v1432
      %v1496 = vadd.f32 %v1305, %v1435
      %v1497 = vadd.f32 %v1308, %v1438
      %v1498 = vadd.f32 %v1311, %v1441
      %v1499 = vadd.f32 %v1314, %v1444
      %v1500 = vadd.f32 %v1317, %v1447
      %v1501 = vadd.f32 %v1320, %v1450
      %v1502 = vadd.f32 %v1323, %v1453
      %v1503 = vadd.f32 %v1326, %v1456
      %v1504 = vadd.f32 %v1329, %v1459
      %v1505 = vadd.f32 %v1332, %v1462
      %v1506 = vadd.f32 %v1335, %v1465
      %v1507 = vadd.f32 %v1338, %v1468
      %v1508 = vadd.f32 %v1341, %v1471
      %v1509 = vadd.f32 %v1344, %v1474
      %v1510 = vadd.f32 %v1347, %v1477
      %s1511 = scalar_lea.vmem %s5, 384
      %v1512 = vld [vmem:[%s1511] sm:$0xff]
      %v1513 = vld [vmem:[%s1511 + $0x8] sm:$0xff]
      %v1514 = vld [vmem:[%s1511 + $0x10] sm:$0xff]
      %v1515 = vld [vmem:[%s1511 + $0x18] sm:$0xff]
      %v1516 = vld [vmem:[%s1511 + $0x20] sm:$0xff]
      %v1517 = vld [vmem:[%s1511 + $0x28] sm:$0xff]
      %v1518 = vld [vmem:[%s1511 + $0x30] sm:$0xff]
      %v1519 = vld [vmem:[%s1511 + $0x38] sm:$0xff]
      %v1520 = vld [vmem:[%s1511 + $0x40] sm:$0xff]
      %v1521 = vld [vmem:[%s1511 + $0x48] sm:$0xff]
      %v1522 = vld [vmem:[%s1511 + $0x50] sm:$0xff]
      %v1523 = vld [vmem:[%s1511 + $0x58] sm:$0xff]
      %v1524 = vld [vmem:[%s1511 + $0x60] sm:$0xff]
      %v1525 = vld [vmem:[%s1511 + $0x68] sm:$0xff]
      %v1526 = vld [vmem:[%s1511 + $0x70] sm:$0xff]
      %v1527 = vld [vmem:[%s1511 + $0x78] sm:$0xff]
      %1528 = vmatpush.msra.mxu0 %v1527
      %1529 = vmatpush.msra.mxu0 %v1526
      %1530 = vmatpush.msra.mxu0 %v1525
      %1531 = vmatpush.msra.mxu0 %v1524
      %1532 = vmatpush.msra.mxu0 %v1523
      %1533 = vmatpush.msra.mxu0 %v1522
      %1534 = vmatpush.msra.mxu0 %v1521
      %1535 = vmatpush.msra.mxu0 %v1520
      %1536 = vmatpush.msra.mxu0 %v1519
      %1537 = vmatpush.msra.mxu0 %v1518
      %1538 = vmatpush.msra.mxu0 %v1517
      %1539 = vmatpush.msra.mxu0 %v1516
      %1540 = vmatpush.msra.mxu0 %v1515
      %1541 = vmatpush.msra.mxu0 %v1514
      %1542 = vmatpush.msra.mxu0 %v1513
      %1543 = vmatpush.msra.mxu0 %v1512
      %1544 = vmatmul.f32.gmra.mxu0 %v879
      %v1545 = vpop.f32.mrf.mxu0
      %v1546 = vadd.f32 0.0, %v1545
      %1547 = vmatmul.f32.gmra.mxu0 %v880
      %v1548 = vpop.f32.mrf.mxu0
      %v1549 = vadd.f32 0.0, %v1548
      %1550 = vmatmul.f32.gmra.mxu0 %v881
      %v1551 = vpop.f32.mrf.mxu0
      %v1552 = vadd.f32 0.0, %v1551
      %1553 = vmatmul.f32.gmra.mxu0 %v882
      %v1554 = vpop.f32.mrf.mxu0
      %v1555 = vadd.f32 0.0, %v1554
      %1556 = vmatmul.f32.gmra.mxu0 %v883
      %v1557 = vpop.f32.mrf.mxu0
      %v1558 = vadd.f32 0.0, %v1557
      %1559 = vmatmul.f32.gmra.mxu0 %v884
      %v1560 = vpop.f32.mrf.mxu0
      %v1561 = vadd.f32 0.0, %v1560
      %1562 = vmatmul.f32.gmra.mxu0 %v885
      %v1563 = vpop.f32.mrf.mxu0
      %v1564 = vadd.f32 0.0, %v1563
      %1565 = vmatmul.f32.gmra.mxu0 %v886
      %v1566 = vpop.f32.mrf.mxu0
      %v1567 = vadd.f32 0.0, %v1566
      %1568 = vmatmul.f32.gmra.mxu0 %v887
      %v1569 = vpop.f32.mrf.mxu0
      %v1570 = vadd.f32 0.0, %v1569
      %1571 = vmatmul.f32.gmra.mxu0 %v888
      %v1572 = vpop.f32.mrf.mxu0
      %v1573 = vadd.f32 0.0, %v1572
      %1574 = vmatmul.f32.gmra.mxu0 %v889
      %v1575 = vpop.f32.mrf.mxu0
      %v1576 = vadd.f32 0.0, %v1575
      %1577 = vmatmul.f32.gmra.mxu0 %v890
      %v1578 = vpop.f32.mrf.mxu0
      %v1579 = vadd.f32 0.0, %v1578
      %1580 = vmatmul.f32.gmra.mxu0 %v891
      %v1581 = vpop.f32.mrf.mxu0
      %v1582 = vadd.f32 0.0, %v1581
      %1583 = vmatmul.f32.gmra.mxu0 %v892
      %v1584 = vpop.f32.mrf.mxu0
      %v1585 = vadd.f32 0.0, %v1584
      %1586 = vmatmul.f32.gmra.mxu0 %v893
      %v1587 = vpop.f32.mrf.mxu0
      %v1588 = vadd.f32 0.0, %v1587
      %1589 = vmatmul.f32.gmra.mxu0 %v894
      %v1590 = vpop.f32.mrf.mxu0
      %v1591 = vadd.f32 0.0, %v1590
      %1592 = vmatmul.f32.gmra.mxu0 %v895
      %v1593 = vpop.f32.mrf.mxu0
      %v1594 = vadd.f32 0.0, %v1593
      %1595 = vmatmul.f32.gmra.mxu0 %v896
      %v1596 = vpop.f32.mrf.mxu0
      %v1597 = vadd.f32 0.0, %v1596
      %1598 = vmatmul.f32.gmra.mxu0 %v897
      %v1599 = vpop.f32.mrf.mxu0
      %v1600 = vadd.f32 0.0, %v1599
      %1601 = vmatmul.f32.gmra.mxu0 %v898
      %v1602 = vpop.f32.mrf.mxu0
      %v1603 = vadd.f32 0.0, %v1602
      %1604 = vmatmul.f32.gmra.mxu0 %v899
      %v1605 = vpop.f32.mrf.mxu0
      %v1606 = vadd.f32 0.0, %v1605
      %1607 = vmatmul.f32.gmra.mxu0 %v900
      %v1608 = vpop.f32.mrf.mxu0
      %v1609 = vadd.f32 0.0, %v1608
      %1610 = vmatmul.f32.gmra.mxu0 %v901
      %v1611 = vpop.f32.mrf.mxu0
      %v1612 = vadd.f32 0.0, %v1611
      %1613 = vmatmul.f32.gmra.mxu0 %v902
      %v1614 = vpop.f32.mrf.mxu0
      %v1615 = vadd.f32 0.0, %v1614
      %1616 = vmatmul.f32.gmra.mxu0 %v903
      %v1617 = vpop.f32.mrf.mxu0
      %v1618 = vadd.f32 0.0, %v1617
      %1619 = vmatmul.f32.gmra.mxu0 %v904
      %v1620 = vpop.f32.mrf.mxu0
      %v1621 = vadd.f32 0.0, %v1620
      %1622 = vmatmul.f32.gmra.mxu0 %v905
      %v1623 = vpop.f32.mrf.mxu0
      %v1624 = vadd.f32 0.0, %v1623
      %1625 = vmatmul.f32.gmra.mxu0 %v906
      %v1626 = vpop.f32.mrf.mxu0
      %v1627 = vadd.f32 0.0, %v1626
      %1628 = vmatmul.f32.gmra.mxu0 %v907
      %v1629 = vpop.f32.mrf.mxu0
      %v1630 = vadd.f32 0.0, %v1629
      %1631 = vmatmul.f32.gmra.mxu0 %v908
      %v1632 = vpop.f32.mrf.mxu0
      %v1633 = vadd.f32 0.0, %v1632
      %1634 = vmatmul.f32.gmra.mxu0 %v909
      %v1635 = vpop.f32.mrf.mxu0
      %v1636 = vadd.f32 0.0, %v1635
      %1637 = vmatmul.f32.gmra.mxu0 %v910
      %v1638 = vpop.f32.mrf.mxu0
      %v1639 = vadd.f32 0.0, %v1638
      %1640 = vdwg.mxu0
      %v1641 = vadd.f32 %v1479, %v1546
      %v1642 = vadd.f32 %v1480, %v1549
      %v1643 = vadd.f32 %v1481, %v1552
      %v1644 = vadd.f32 %v1482, %v1555
      %v1645 = vadd.f32 %v1483, %v1558
      %v1646 = vadd.f32 %v1484, %v1561
      %v1647 = vadd.f32 %v1485, %v1564
      %v1648 = vadd.f32 %v1486, %v1567
      %v1649 = vadd.f32 %v1487, %v1570
      %v1650 = vadd.f32 %v1488, %v1573
      %v1651 = vadd.f32 %v1489, %v1576
      %v1652 = vadd.f32 %v1490, %v1579
      %v1653 = vadd.f32 %v1491, %v1582
      %v1654 = vadd.f32 %v1492, %v1585
      %v1655 = vadd.f32 %v1493, %v1588
      %v1656 = vadd.f32 %v1494, %v1591
      %v1657 = vadd.f32 %v1495, %v1594
      %v1658 = vadd.f32 %v1496, %v1597
      %v1659 = vadd.f32 %v1497, %v1600
      %v1660 = vadd.f32 %v1498, %v1603
      %v1661 = vadd.f32 %v1499, %v1606
      %v1662 = vadd.f32 %v1500, %v1609
      %v1663 = vadd.f32 %v1501, %v1612
      %v1664 = vadd.f32 %v1502, %v1615
      %v1665 = vadd.f32 %v1503, %v1618
      %v1666 = vadd.f32 %v1504, %v1621
      %v1667 = vadd.f32 %v1505, %v1624
      %v1668 = vadd.f32 %v1506, %v1627
      %v1669 = vadd.f32 %v1507, %v1630
      %v1670 = vadd.f32 %v1508, %v1633
      %v1671 = vadd.f32 %v1509, %v1636
      %v1672 = vadd.f32 %v1510, %v1639
      %s1673 = scalar_lea.vmem %s5, 512
      %v1674 = vld [vmem:[%s1673] sm:$0xff]
      %v1675 = vld [vmem:[%s1673 + $0x8] sm:$0xff]
      %v1676 = vld [vmem:[%s1673 + $0x10] sm:$0xff]
      %v1677 = vld [vmem:[%s1673 + $0x18] sm:$0xff]
      %v1678 = vld [vmem:[%s1673 + $0x20] sm:$0xff]
      %v1679 = vld [vmem:[%s1673 + $0x28] sm:$0xff]
      %v1680 = vld [vmem:[%s1673 + $0x30] sm:$0xff]
      %v1681 = vld [vmem:[%s1673 + $0x38] sm:$0xff]
      %v1682 = vld [vmem:[%s1673 + $0x40] sm:$0xff]
      %v1683 = vld [vmem:[%s1673 + $0x48] sm:$0xff]
      %v1684 = vld [vmem:[%s1673 + $0x50] sm:$0xff]
      %v1685 = vld [vmem:[%s1673 + $0x58] sm:$0xff]
      %v1686 = vld [vmem:[%s1673 + $0x60] sm:$0xff]
      %v1687 = vld [vmem:[%s1673 + $0x68] sm:$0xff]
      %v1688 = vld [vmem:[%s1673 + $0x70] sm:$0xff]
      %v1689 = vld [vmem:[%s1673 + $0x78] sm:$0xff]
      %1690 = vmatpush.msra.mxu0 %v1689
      %1691 = vmatpush.msra.mxu0 %v1688
      %1692 = vmatpush.msra.mxu0 %v1687
      %1693 = vmatpush.msra.mxu0 %v1686
      %1694 = vmatpush.msra.mxu0 %v1685
      %1695 = vmatpush.msra.mxu0 %v1684
      %1696 = vmatpush.msra.mxu0 %v1683
      %1697 = vmatpush.msra.mxu0 %v1682
      %1698 = vmatpush.msra.mxu0 %v1681
      %1699 = vmatpush.msra.mxu0 %v1680
      %1700 = vmatpush.msra.mxu0 %v1679
      %1701 = vmatpush.msra.mxu0 %v1678
      %1702 = vmatpush.msra.mxu0 %v1677
      %1703 = vmatpush.msra.mxu0 %v1676
      %1704 = vmatpush.msra.mxu0 %v1675
      %1705 = vmatpush.msra.mxu0 %v1674
      %1706 = vmatmul.f32.gmra.mxu0 %v615
      %v1707 = vpop.f32.mrf.mxu0
      %v1708 = vadd.f32 0.0, %v1707
      %1709 = vmatmul.f32.gmra.mxu0 %v616
      %v1710 = vpop.f32.mrf.mxu0
      %v1711 = vadd.f32 0.0, %v1710
      %1712 = vmatmul.f32.gmra.mxu0 %v617
      %v1713 = vpop.f32.mrf.mxu0
      %v1714 = vadd.f32 0.0, %v1713
      %1715 = vmatmul.f32.gmra.mxu0 %v618
      %v1716 = vpop.f32.mrf.mxu0
      %v1717 = vadd.f32 0.0, %v1716
      %1718 = vmatmul.f32.gmra.mxu0 %v619
      %v1719 = vpop.f32.mrf.mxu0
      %v1720 = vadd.f32 0.0, %v1719
      %1721 = vmatmul.f32.gmra.mxu0 %v620
      %v1722 = vpop.f32.mrf.mxu0
      %v1723 = vadd.f32 0.0, %v1722
      %1724 = vmatmul.f32.gmra.mxu0 %v621
      %v1725 = vpop.f32.mrf.mxu0
      %v1726 = vadd.f32 0.0, %v1725
      %1727 = vmatmul.f32.gmra.mxu0 %v622
      %v1728 = vpop.f32.mrf.mxu0
      %v1729 = vadd.f32 0.0, %v1728
      %1730 = vmatmul.f32.gmra.mxu0 %v623
      %v1731 = vpop.f32.mrf.mxu0
      %v1732 = vadd.f32 0.0, %v1731
      %1733 = vmatmul.f32.gmra.mxu0 %v624
      %v1734 = vpop.f32.mrf.mxu0
      %v1735 = vadd.f32 0.0, %v1734
      %1736 = vmatmul.f32.gmra.mxu0 %v625
      %v1737 = vpop.f32.mrf.mxu0
      %v1738 = vadd.f32 0.0, %v1737
      %1739 = vmatmul.f32.gmra.mxu0 %v626
      %v1740 = vpop.f32.mrf.mxu0
      %v1741 = vadd.f32 0.0, %v1740
      %1742 = vmatmul.f32.gmra.mxu0 %v627
      %v1743 = vpop.f32.mrf.mxu0
      %v1744 = vadd.f32 0.0, %v1743
      %1745 = vmatmul.f32.gmra.mxu0 %v628
      %v1746 = vpop.f32.mrf.mxu0
      %v1747 = vadd.f32 0.0, %v1746
      %1748 = vmatmul.f32.gmra.mxu0 %v629
      %v1749 = vpop.f32.mrf.mxu0
      %v1750 = vadd.f32 0.0, %v1749
      %1751 = vmatmul.f32.gmra.mxu0 %v630
      %v1752 = vpop.f32.mrf.mxu0
      %v1753 = vadd.f32 0.0, %v1752
      %1754 = vmatmul.f32.gmra.mxu0 %v631
      %v1755 = vpop.f32.mrf.mxu0
      %v1756 = vadd.f32 0.0, %v1755
      %1757 = vmatmul.f32.gmra.mxu0 %v632
      %v1758 = vpop.f32.mrf.mxu0
      %v1759 = vadd.f32 0.0, %v1758
      %1760 = vmatmul.f32.gmra.mxu0 %v633
      %v1761 = vpop.f32.mrf.mxu0
      %v1762 = vadd.f32 0.0, %v1761
      %1763 = vmatmul.f32.gmra.mxu0 %v634
      %v1764 = vpop.f32.mrf.mxu0
      %v1765 = vadd.f32 0.0, %v1764
      %1766 = vmatmul.f32.gmra.mxu0 %v635
      %v1767 = vpop.f32.mrf.mxu0
      %v1768 = vadd.f32 0.0, %v1767
      %1769 = vmatmul.f32.gmra.mxu0 %v636
      %v1770 = vpop.f32.mrf.mxu0
      %v1771 = vadd.f32 0.0, %v1770
      %1772 = vmatmul.f32.gmra.mxu0 %v637
      %v1773 = vpop.f32.mrf.mxu0
      %v1774 = vadd.f32 0.0, %v1773
      %1775 = vmatmul.f32.gmra.mxu0 %v638
      %v1776 = vpop.f32.mrf.mxu0
      %v1777 = vadd.f32 0.0, %v1776
      %1778 = vmatmul.f32.gmra.mxu0 %v639
      %v1779 = vpop.f32.mrf.mxu0
      %v1780 = vadd.f32 0.0, %v1779
      %1781 = vmatmul.f32.gmra.mxu0 %v640
      %v1782 = vpop.f32.mrf.mxu0
      %v1783 = vadd.f32 0.0, %v1782
      %1784 = vmatmul.f32.gmra.mxu0 %v641
      %v1785 = vpop.f32.mrf.mxu0
      %v1786 = vadd.f32 0.0, %v1785
      %1787 = vmatmul.f32.gmra.mxu0 %v642
      %v1788 = vpop.f32.mrf.mxu0
      %v1789 = vadd.f32 0.0, %v1788
      %1790 = vmatmul.f32.gmra.mxu0 %v643
      %v1791 = vpop.f32.mrf.mxu0
      %v1792 = vadd.f32 0.0, %v1791
      %1793 = vmatmul.f32.gmra.mxu0 %v644
      %v1794 = vpop.f32.mrf.mxu0
      %v1795 = vadd.f32 0.0, %v1794
      %1796 = vmatmul.f32.gmra.mxu0 %v645
      %v1797 = vpop.f32.mrf.mxu0
      %v1798 = vadd.f32 0.0, %v1797
      %1799 = vmatmul.f32.gmra.mxu0 %v646
      %v1800 = vpop.f32.mrf.mxu0
      %v1801 = vadd.f32 0.0, %v1800
      %1802 = vdwg.mxu0
      %v1803 = vadd.f32 %v1641, %v1708
      %v1804 = vadd.f32 %v1642, %v1711
      %v1805 = vadd.f32 %v1643, %v1714
      %v1806 = vadd.f32 %v1644, %v1717
      %v1807 = vadd.f32 %v1645, %v1720
      %v1808 = vadd.f32 %v1646, %v1723
      %v1809 = vadd.f32 %v1647, %v1726
      %v1810 = vadd.f32 %v1648, %v1729
      %v1811 = vadd.f32 %v1649, %v1732
      %v1812 = vadd.f32 %v1650, %v1735
      %v1813 = vadd.f32 %v1651, %v1738
      %v1814 = vadd.f32 %v1652, %v1741
      %v1815 = vadd.f32 %v1653, %v1744
      %v1816 = vadd.f32 %v1654, %v1747
      %v1817 = vadd.f32 %v1655, %v1750
      %v1818 = vadd.f32 %v1656, %v1753
      %v1819 = vadd.f32 %v1657, %v1756
      %v1820 = vadd.f32 %v1658, %v1759
      %v1821 = vadd.f32 %v1659, %v1762
      %v1822 = vadd.f32 %v1660, %v1765
      %v1823 = vadd.f32 %v1661, %v1768
      %v1824 = vadd.f32 %v1662, %v1771
      %v1825 = vadd.f32 %v1663, %v1774
      %v1826 = vadd.f32 %v1664, %v1777
      %v1827 = vadd.f32 %v1665, %v1780
      %v1828 = vadd.f32 %v1666, %v1783
      %v1829 = vadd.f32 %v1667, %v1786
      %v1830 = vadd.f32 %v1668, %v1789
      %v1831 = vadd.f32 %v1669, %v1792
      %v1832 = vadd.f32 %v1670, %v1795
      %v1833 = vadd.f32 %v1671, %v1798
      %v1834 = vadd.f32 %v1672, %v1801
      %s1835 = scalar_lea.vmem %s5, 640
      %v1836 = vld [vmem:[%s1835] sm:$0xff]
      %v1837 = vld [vmem:[%s1835 + $0x8] sm:$0xff]
      %v1838 = vld [vmem:[%s1835 + $0x10] sm:$0xff]
      %v1839 = vld [vmem:[%s1835 + $0x18] sm:$0xff]
      %v1840 = vld [vmem:[%s1835 + $0x20] sm:$0xff]
      %v1841 = vld [vmem:[%s1835 + $0x28] sm:$0xff]
      %v1842 = vld [vmem:[%s1835 + $0x30] sm:$0xff]
      %v1843 = vld [vmem:[%s1835 + $0x38] sm:$0xff]
      %v1844 = vld [vmem:[%s1835 + $0x40] sm:$0xff]
      %v1845 = vld [vmem:[%s1835 + $0x48] sm:$0xff]
      %v1846 = vld [vmem:[%s1835 + $0x50] sm:$0xff]
      %v1847 = vld [vmem:[%s1835 + $0x58] sm:$0xff]
      %v1848 = vld [vmem:[%s1835 + $0x60] sm:$0xff]
      %v1849 = vld [vmem:[%s1835 + $0x68] sm:$0xff]
      %v1850 = vld [vmem:[%s1835 + $0x70] sm:$0xff]
      %v1851 = vld [vmem:[%s1835 + $0x78] sm:$0xff]
      %1852 = vmatpush.msra.mxu0 %v1851
      %1853 = vmatpush.msra.mxu0 %v1850
      %1854 = vmatpush.msra.mxu0 %v1849
      %1855 = vmatpush.msra.mxu0 %v1848
      %1856 = vmatpush.msra.mxu0 %v1847
      %1857 = vmatpush.msra.mxu0 %v1846
      %1858 = vmatpush.msra.mxu0 %v1845
      %1859 = vmatpush.msra.mxu0 %v1844
      %1860 = vmatpush.msra.mxu0 %v1843
      %1861 = vmatpush.msra.mxu0 %v1842
      %1862 = vmatpush.msra.mxu0 %v1841
      %1863 = vmatpush.msra.mxu0 %v1840
      %1864 = vmatpush.msra.mxu0 %v1839
      %1865 = vmatpush.msra.mxu0 %v1838
      %1866 = vmatpush.msra.mxu0 %v1837
      %1867 = vmatpush.msra.mxu0 %v1836
      %1868 = vmatmul.f32.gmra.mxu0 %v1054
      %v1869 = vpop.f32.mrf.mxu0
      %v1870 = vadd.f32 0.0, %v1869
      %1871 = vmatmul.f32.gmra.mxu0 %v1055
      %v1872 = vpop.f32.mrf.mxu0
      %v1873 = vadd.f32 0.0, %v1872
      %1874 = vmatmul.f32.gmra.mxu0 %v1056
      %v1875 = vpop.f32.mrf.mxu0
      %v1876 = vadd.f32 0.0, %v1875
      %1877 = vmatmul.f32.gmra.mxu0 %v1057
      %v1878 = vpop.f32.mrf.mxu0
      %v1879 = vadd.f32 0.0, %v1878
      %1880 = vmatmul.f32.gmra.mxu0 %v1058
      %v1881 = vpop.f32.mrf.mxu0
      %v1882 = vadd.f32 0.0, %v1881
      %1883 = vmatmul.f32.gmra.mxu0 %v1059
      %v1884 = vpop.f32.mrf.mxu0
      %v1885 = vadd.f32 0.0, %v1884
      %1886 = vmatmul.f32.gmra.mxu0 %v1060
      %v1887 = vpop.f32.mrf.mxu0
      %v1888 = vadd.f32 0.0, %v1887
      %1889 = vmatmul.f32.gmra.mxu0 %v1061
      %v1890 = vpop.f32.mrf.mxu0
      %v1891 = vadd.f32 0.0, %v1890
      %1892 = vmatmul.f32.gmra.mxu0 %v1062
      %v1893 = vpop.f32.mrf.mxu0
      %v1894 = vadd.f32 0.0, %v1893
      %1895 = vmatmul.f32.gmra.mxu0 %v1063
      %v1896 = vpop.f32.mrf.mxu0
      %v1897 = vadd.f32 0.0, %v1896
      %1898 = vmatmul.f32.gmra.mxu0 %v1064
      %v1899 = vpop.f32.mrf.mxu0
      %v1900 = vadd.f32 0.0, %v1899
      %1901 = vmatmul.f32.gmra.mxu0 %v1065
      %v1902 = vpop.f32.mrf.mxu0
      %v1903 = vadd.f32 0.0, %v1902
      %1904 = vmatmul.f32.gmra.mxu0 %v1066
      %v1905 = vpop.f32.mrf.mxu0
      %v1906 = vadd.f32 0.0, %v1905
      %1907 = vmatmul.f32.gmra.mxu0 %v1067
      %v1908 = vpop.f32.mrf.mxu0
      %v1909 = vadd.f32 0.0, %v1908
      %1910 = vmatmul.f32.gmra.mxu0 %v1068
      %v1911 = vpop.f32.mrf.mxu0
      %v1912 = vadd.f32 0.0, %v1911
      %1913 = vmatmul.f32.gmra.mxu0 %v1069
      %v1914 = vpop.f32.mrf.mxu0
      %v1915 = vadd.f32 0.0, %v1914
      %1916 = vmatmul.f32.gmra.mxu0 %v1070
      %v1917 = vpop.f32.mrf.mxu0
      %v1918 = vadd.f32 0.0, %v1917
      %1919 = vmatmul.f32.gmra.mxu0 %v1071
      %v1920 = vpop.f32.mrf.mxu0
      %v1921 = vadd.f32 0.0, %v1920
      %1922 = vmatmul.f32.gmra.mxu0 %v1072
      %v1923 = vpop.f32.mrf.mxu0
      %v1924 = vadd.f32 0.0, %v1923
      %1925 = vmatmul.f32.gmra.mxu0 %v1073
      %v1926 = vpop.f32.mrf.mxu0
      %v1927 = vadd.f32 0.0, %v1926
      %1928 = vmatmul.f32.gmra.mxu0 %v1074
      %v1929 = vpop.f32.mrf.mxu0
      %v1930 = vadd.f32 0.0, %v1929
      %1931 = vmatmul.f32.gmra.mxu0 %v1075
      %v1932 = vpop.f32.mrf.mxu0
      %v1933 = vadd.f32 0.0, %v1932
      %1934 = vmatmul.f32.gmra.mxu0 %v1076
      %v1935 = vpop.f32.mrf.mxu0
      %v1936 = vadd.f32 0.0, %v1935
      %1937 = vmatmul.f32.gmra.mxu0 %v1077
      %v1938 = vpop.f32.mrf.mxu0
      %v1939 = vadd.f32 0.0, %v1938
      %1940 = vmatmul.f32.gmra.mxu0 %v1078
      %v1941 = vpop.f32.mrf.mxu0
      %v1942 = vadd.f32 0.0, %v1941
      %1943 = vmatmul.f32.gmra.mxu0 %v1079
      %v1944 = vpop.f32.mrf.mxu0
      %v1945 = vadd.f32 0.0, %v1944
      %1946 = vmatmul.f32.gmra.mxu0 %v1080
      %v1947 = vpop.f32.mrf.mxu0
      %v1948 = vadd.f32 0.0, %v1947
      %1949 = vmatmul.f32.gmra.mxu0 %v1081
      %v1950 = vpop.f32.mrf.mxu0
      %v1951 = vadd.f32 0.0, %v1950
      %1952 = vmatmul.f32.gmra.mxu0 %v1082
      %v1953 = vpop.f32.mrf.mxu0
      %v1954 = vadd.f32 0.0, %v1953
      %1955 = vmatmul.f32.gmra.mxu0 %v1083
      %v1956 = vpop.f32.mrf.mxu0
      %v1957 = vadd.f32 0.0, %v1956
      %1958 = vmatmul.f32.gmra.mxu0 %v1084
      %v1959 = vpop.f32.mrf.mxu0
      %v1960 = vadd.f32 0.0, %v1959
      %1961 = vmatmul.f32.gmra.mxu0 %v1085
      %v1962 = vpop.f32.mrf.mxu0
      %v1963 = vadd.f32 0.0, %v1962
      %1964 = vdwg.mxu0
      %v1965 = vadd.f32 %v1803, %v1870
      %v1966 = vadd.f32 %v1804, %v1873
      %v1967 = vadd.f32 %v1805, %v1876
      %v1968 = vadd.f32 %v1806, %v1879
      %v1969 = vadd.f32 %v1807, %v1882
      %v1970 = vadd.f32 %v1808, %v1885
      %v1971 = vadd.f32 %v1809, %v1888
      %v1972 = vadd.f32 %v1810, %v1891
      %v1973 = vadd.f32 %v1811, %v1894
      %v1974 = vadd.f32 %v1812, %v1897
      %v1975 = vadd.f32 %v1813, %v1900
      %v1976 = vadd.f32 %v1814, %v1903
      %v1977 = vadd.f32 %v1815, %v1906
      %v1978 = vadd.f32 %v1816, %v1909
      %v1979 = vadd.f32 %v1817, %v1912
      %v1980 = vadd.f32 %v1818, %v1915
      %v1981 = vadd.f32 %v1819, %v1918
      %v1982 = vadd.f32 %v1820, %v1921
      %v1983 = vadd.f32 %v1821, %v1924
      %v1984 = vadd.f32 %v1822, %v1927
      %v1985 = vadd.f32 %v1823, %v1930
      %v1986 = vadd.f32 %v1824, %v1933
      %v1987 = vadd.f32 %v1825, %v1936
      %v1988 = vadd.f32 %v1826, %v1939
      %v1989 = vadd.f32 %v1827, %v1942
      %v1990 = vadd.f32 %v1828, %v1945
      %v1991 = vadd.f32 %v1829, %v1948
      %v1992 = vadd.f32 %v1830, %v1951
      %v1993 = vadd.f32 %v1831, %v1954
      %v1994 = vadd.f32 %v1832, %v1957
      %v1995 = vadd.f32 %v1833, %v1960
      %v1996 = vadd.f32 %v1834, %v1963
      %s1997 = scalar_lea.vmem %s5, 768
      %v1998 = vld [vmem:[%s1997] sm:$0xff]
      %v1999 = vld [vmem:[%s1997 + $0x8] sm:$0xff]
      %v2000 = vld [vmem:[%s1997 + $0x10] sm:$0xff]
      %v2001 = vld [vmem:[%s1997 + $0x18] sm:$0xff]
      %v2002 = vld [vmem:[%s1997 + $0x20] sm:$0xff]
      %v2003 = vld [vmem:[%s1997 + $0x28] sm:$0xff]
      %v2004 = vld [vmem:[%s1997 + $0x30] sm:$0xff]
      %v2005 = vld [vmem:[%s1997 + $0x38] sm:$0xff]
      %v2006 = vld [vmem:[%s1997 + $0x40] sm:$0xff]
      %v2007 = vld [vmem:[%s1997 + $0x48] sm:$0xff]
      %v2008 = vld [vmem:[%s1997 + $0x50] sm:$0xff]
      %v2009 = vld [vmem:[%s1997 + $0x58] sm:$0xff]
      %v2010 = vld [vmem:[%s1997 + $0x60] sm:$0xff]
      %v2011 = vld [vmem:[%s1997 + $0x68] sm:$0xff]
      %v2012 = vld [vmem:[%s1997 + $0x70] sm:$0xff]
      %v2013 = vld [vmem:[%s1997 + $0x78] sm:$0xff]
      %2014 = vmatpush.msra.mxu0 %v2013
      %2015 = vmatpush.msra.mxu0 %v2012
      %2016 = vmatpush.msra.mxu0 %v2011
      %2017 = vmatpush.msra.mxu0 %v2010
      %2018 = vmatpush.msra.mxu0 %v2009
      %2019 = vmatpush.msra.mxu0 %v2008
      %2020 = vmatpush.msra.mxu0 %v2007
      %2021 = vmatpush.msra.mxu0 %v2006
      %2022 = vmatpush.msra.mxu0 %v2005
      %2023 = vmatpush.msra.mxu0 %v2004
      %2024 = vmatpush.msra.mxu0 %v2003
      %2025 = vmatpush.msra.mxu0 %v2002
      %2026 = vmatpush.msra.mxu0 %v2001
      %2027 = vmatpush.msra.mxu0 %v2000
      %2028 = vmatpush.msra.mxu0 %v1999
      %2029 = vmatpush.msra.mxu0 %v1998
      %2030 = vmatmul.f32.gmra.mxu0 %v883
      %v2031 = vpop.f32.mrf.mxu0
      %v2032 = vadd.f32 0.0, %v2031
      %2033 = vmatmul.f32.gmra.mxu0 %v884
      %v2034 = vpop.f32.mrf.mxu0
      %v2035 = vadd.f32 0.0, %v2034
      %2036 = vmatmul.f32.gmra.mxu0 %v885
      %v2037 = vpop.f32.mrf.mxu0
      %v2038 = vadd.f32 0.0, %v2037
      %2039 = vmatmul.f32.gmra.mxu0 %v886
      %v2040 = vpop.f32.mrf.mxu0
      %v2041 = vadd.f32 0.0, %v2040
      %2042 = vmatmul.f32.gmra.mxu0 %v887
      %v2043 = vpop.f32.mrf.mxu0
      %v2044 = vadd.f32 0.0, %v2043
      %2045 = vmatmul.f32.gmra.mxu0 %v888
      %v2046 = vpop.f32.mrf.mxu0
      %v2047 = vadd.f32 0.0, %v2046
      %2048 = vmatmul.f32.gmra.mxu0 %v889
      %v2049 = vpop.f32.mrf.mxu0
      %v2050 = vadd.f32 0.0, %v2049
      %2051 = vmatmul.f32.gmra.mxu0 %v890
      %v2052 = vpop.f32.mrf.mxu0
      %v2053 = vadd.f32 0.0, %v2052
      %2054 = vmatmul.f32.gmra.mxu0 %v891
      %v2055 = vpop.f32.mrf.mxu0
      %v2056 = vadd.f32 0.0, %v2055
      %2057 = vmatmul.f32.gmra.mxu0 %v892
      %v2058 = vpop.f32.mrf.mxu0
      %v2059 = vadd.f32 0.0, %v2058
      %2060 = vmatmul.f32.gmra.mxu0 %v893
      %v2061 = vpop.f32.mrf.mxu0
      %v2062 = vadd.f32 0.0, %v2061
      %2063 = vmatmul.f32.gmra.mxu0 %v894
      %v2064 = vpop.f32.mrf.mxu0
      %v2065 = vadd.f32 0.0, %v2064
      %2066 = vmatmul.f32.gmra.mxu0 %v895
      %v2067 = vpop.f32.mrf.mxu0
      %v2068 = vadd.f32 0.0, %v2067
      %2069 = vmatmul.f32.gmra.mxu0 %v896
      %v2070 = vpop.f32.mrf.mxu0
      %v2071 = vadd.f32 0.0, %v2070
      %2072 = vmatmul.f32.gmra.mxu0 %v897
      %v2073 = vpop.f32.mrf.mxu0
      %v2074 = vadd.f32 0.0, %v2073
      %2075 = vmatmul.f32.gmra.mxu0 %v898
      %v2076 = vpop.f32.mrf.mxu0
      %v2077 = vadd.f32 0.0, %v2076
      %2078 = vmatmul.f32.gmra.mxu0 %v899
      %v2079 = vpop.f32.mrf.mxu0
      %v2080 = vadd.f32 0.0, %v2079
      %2081 = vmatmul.f32.gmra.mxu0 %v900
      %v2082 = vpop.f32.mrf.mxu0
      %v2083 = vadd.f32 0.0, %v2082
      %2084 = vmatmul.f32.gmra.mxu0 %v901
      %v2085 = vpop.f32.mrf.mxu0
      %v2086 = vadd.f32 0.0, %v2085
      %2087 = vmatmul.f32.gmra.mxu0 %v902
      %v2088 = vpop.f32.mrf.mxu0
      %v2089 = vadd.f32 0.0, %v2088
      %2090 = vmatmul.f32.gmra.mxu0 %v903
      %v2091 = vpop.f32.mrf.mxu0
      %v2092 = vadd.f32 0.0, %v2091
      %2093 = vmatmul.f32.gmra.mxu0 %v904
      %v2094 = vpop.f32.mrf.mxu0
      %v2095 = vadd.f32 0.0, %v2094
      %2096 = vmatmul.f32.gmra.mxu0 %v905
      %v2097 = vpop.f32.mrf.mxu0
      %v2098 = vadd.f32 0.0, %v2097
      %2099 = vmatmul.f32.gmra.mxu0 %v906
      %v2100 = vpop.f32.mrf.mxu0
      %v2101 = vadd.f32 0.0, %v2100
      %2102 = vmatmul.f32.gmra.mxu0 %v907
      %v2103 = vpop.f32.mrf.mxu0
      %v2104 = vadd.f32 0.0, %v2103
      %2105 = vmatmul.f32.gmra.mxu0 %v908
      %v2106 = vpop.f32.mrf.mxu0
      %v2107 = vadd.f32 0.0, %v2106
      %2108 = vmatmul.f32.gmra.mxu0 %v909
      %v2109 = vpop.f32.mrf.mxu0
      %v2110 = vadd.f32 0.0, %v2109
      %2111 = vmatmul.f32.gmra.mxu0 %v910
      %v2112 = vpop.f32.mrf.mxu0
      %v2113 = vadd.f32 0.0, %v2112
      %2114 = vmatmul.f32.gmra.mxu0 %v911
      %v2115 = vpop.f32.mrf.mxu0
      %v2116 = vadd.f32 0.0, %v2115
      %2117 = vmatmul.f32.gmra.mxu0 %v912
      %v2118 = vpop.f32.mrf.mxu0
      %v2119 = vadd.f32 0.0, %v2118
      %2120 = vmatmul.f32.gmra.mxu0 %v913
      %v2121 = vpop.f32.mrf.mxu0
      %v2122 = vadd.f32 0.0, %v2121
      %2123 = vmatmul.f32.gmra.mxu0 %v914
      %v2124 = vpop.f32.mrf.mxu0
      %v2125 = vadd.f32 0.0, %v2124
      %2126 = vdwg.mxu0
      %v2127 = vadd.f32 %v1965, %v2032
      %v2128 = vadd.f32 %v1966, %v2035
      %v2129 = vadd.f32 %v1967, %v2038
      %v2130 = vadd.f32 %v1968, %v2041
      %v2131 = vadd.f32 %v1969, %v2044
      %v2132 = vadd.f32 %v1970, %v2047
      %v2133 = vadd.f32 %v1971, %v2050
      %v2134 = vadd.f32 %v1972, %v2053
      %v2135 = vadd.f32 %v1973, %v2056
      %v2136 = vadd.f32 %v1974, %v2059
      %v2137 = vadd.f32 %v1975, %v2062
      %v2138 = vadd.f32 %v1976, %v2065
      %v2139 = vadd.f32 %v1977, %v2068
      %v2140 = vadd.f32 %v1978, %v2071
      %v2141 = vadd.f32 %v1979, %v2074
      %v2142 = vadd.f32 %v1980, %v2077
      %v2143 = vadd.f32 %v1981, %v2080
      %v2144 = vadd.f32 %v1982, %v2083
      %v2145 = vadd.f32 %v1983, %v2086
      %v2146 = vadd.f32 %v1984, %v2089
      %v2147 = vadd.f32 %v1985, %v2092
      %v2148 = vadd.f32 %v1986, %v2095
      %v2149 = vadd.f32 %v1987, %v2098
      %v2150 = vadd.f32 %v1988, %v2101
      %v2151 = vadd.f32 %v1989, %v2104
      %v2152 = vadd.f32 %v1990, %v2107
      %v2153 = vadd.f32 %v1991, %v2110
      %v2154 = vadd.f32 %v1992, %v2113
      %v2155 = vadd.f32 %v1993, %v2116
      %v2156 = vadd.f32 %v1994, %v2119
      %v2157 = vadd.f32 %v1995, %v2122
      %v2158 = vadd.f32 %v1996, %v2125
      %s2159 = scalar_lea.vmem %s5, 896
      %v2160 = vld [vmem:[%s2159] sm:$0xff]
      %v2161 = vld [vmem:[%s2159 + $0x8] sm:$0xff]
      %v2162 = vld [vmem:[%s2159 + $0x10] sm:$0xff]
      %v2163 = vld [vmem:[%s2159 + $0x18] sm:$0xff]
      %v2164 = vld [vmem:[%s2159 + $0x20] sm:$0xff]
      %v2165 = vld [vmem:[%s2159 + $0x28] sm:$0xff]
      %v2166 = vld [vmem:[%s2159 + $0x30] sm:$0xff]
      %v2167 = vld [vmem:[%s2159 + $0x38] sm:$0xff]
      %v2168 = vld [vmem:[%s2159 + $0x40] sm:$0xff]
      %v2169 = vld [vmem:[%s2159 + $0x48] sm:$0xff]
      %v2170 = vld [vmem:[%s2159 + $0x50] sm:$0xff]
      %v2171 = vld [vmem:[%s2159 + $0x58] sm:$0xff]
      %v2172 = vld [vmem:[%s2159 + $0x60] sm:$0xff]
      %v2173 = vld [vmem:[%s2159 + $0x68] sm:$0xff]
      %v2174 = vld [vmem:[%s2159 + $0x70] sm:$0xff]
      %v2175 = vld [vmem:[%s2159 + $0x78] sm:$0xff]
      %2176 = vmatpush.msra.mxu0 %v2175
      %2177 = vmatpush.msra.mxu0 %v2174
      %2178 = vmatpush.msra.mxu0 %v2173
      %2179 = vmatpush.msra.mxu0 %v2172
      %2180 = vmatpush.msra.mxu0 %v2171
      %2181 = vmatpush.msra.mxu0 %v2170
      %2182 = vmatpush.msra.mxu0 %v2169
      %2183 = vmatpush.msra.mxu0 %v2168
      %2184 = vmatpush.msra.mxu0 %v2167
      %2185 = vmatpush.msra.mxu0 %v2166
      %2186 = vmatpush.msra.mxu0 %v2165
      %2187 = vmatpush.msra.mxu0 %v2164
      %2188 = vmatpush.msra.mxu0 %v2163
      %2189 = vmatpush.msra.mxu0 %v2162
      %2190 = vmatpush.msra.mxu0 %v2161
      %2191 = vmatpush.msra.mxu0 %v2160
      %2192 = vmatmul.f32.gmra.mxu0 %v619
      %v2193 = vpop.f32.mrf.mxu0
      %v2194 = vadd.f32 0.0, %v2193
      %2195 = vmatmul.f32.gmra.mxu0 %v620
      %v2196 = vpop.f32.mrf.mxu0
      %v2197 = vadd.f32 0.0, %v2196
      %2198 = vmatmul.f32.gmra.mxu0 %v621
      %v2199 = vpop.f32.mrf.mxu0
      %v2200 = vadd.f32 0.0, %v2199
      %2201 = vmatmul.f32.gmra.mxu0 %v622
      %v2202 = vpop.f32.mrf.mxu0
      %v2203 = vadd.f32 0.0, %v2202
      %2204 = vmatmul.f32.gmra.mxu0 %v623
      %v2205 = vpop.f32.mrf.mxu0
      %v2206 = vadd.f32 0.0, %v2205
      %2207 = vmatmul.f32.gmra.mxu0 %v624
      %v2208 = vpop.f32.mrf.mxu0
      %v2209 = vadd.f32 0.0, %v2208
      %2210 = vmatmul.f32.gmra.mxu0 %v625
      %v2211 = vpop.f32.mrf.mxu0
      %v2212 = vadd.f32 0.0, %v2211
      %2213 = vmatmul.f32.gmra.mxu0 %v626
      %v2214 = vpop.f32.mrf.mxu0
      %v2215 = vadd.f32 0.0, %v2214
      %2216 = vmatmul.f32.gmra.mxu0 %v627
      %v2217 = vpop.f32.mrf.mxu0
      %v2218 = vadd.f32 0.0, %v2217
      %2219 = vmatmul.f32.gmra.mxu0 %v628
      %v2220 = vpop.f32.mrf.mxu0
      %v2221 = vadd.f32 0.0, %v2220
      %2222 = vmatmul.f32.gmra.mxu0 %v629
      %v2223 = vpop.f32.mrf.mxu0
      %v2224 = vadd.f32 0.0, %v2223
      %2225 = vmatmul.f32.gmra.mxu0 %v630
      %v2226 = vpop.f32.mrf.mxu0
      %v2227 = vadd.f32 0.0, %v2226
      %2228 = vmatmul.f32.gmra.mxu0 %v631
      %v2229 = vpop.f32.mrf.mxu0
      %v2230 = vadd.f32 0.0, %v2229
      %2231 = vmatmul.f32.gmra.mxu0 %v632
      %v2232 = vpop.f32.mrf.mxu0
      %v2233 = vadd.f32 0.0, %v2232
      %2234 = vmatmul.f32.gmra.mxu0 %v633
      %v2235 = vpop.f32.mrf.mxu0
      %v2236 = vadd.f32 0.0, %v2235
      %2237 = vmatmul.f32.gmra.mxu0 %v634
      %v2238 = vpop.f32.mrf.mxu0
      %v2239 = vadd.f32 0.0, %v2238
      %2240 = vmatmul.f32.gmra.mxu0 %v635
      %v2241 = vpop.f32.mrf.mxu0
      %v2242 = vadd.f32 0.0, %v2241
      %2243 = vmatmul.f32.gmra.mxu0 %v636
      %v2244 = vpop.f32.mrf.mxu0
      %v2245 = vadd.f32 0.0, %v2244
      %2246 = vmatmul.f32.gmra.mxu0 %v637
      %v2247 = vpop.f32.mrf.mxu0
      %v2248 = vadd.f32 0.0, %v2247
      %2249 = vmatmul.f32.gmra.mxu0 %v638
      %v2250 = vpop.f32.mrf.mxu0
      %v2251 = vadd.f32 0.0, %v2250
      %2252 = vmatmul.f32.gmra.mxu0 %v639
      %v2253 = vpop.f32.mrf.mxu0
      %v2254 = vadd.f32 0.0, %v2253
      %2255 = vmatmul.f32.gmra.mxu0 %v640
      %v2256 = vpop.f32.mrf.mxu0
      %v2257 = vadd.f32 0.0, %v2256
      %2258 = vmatmul.f32.gmra.mxu0 %v641
      %v2259 = vpop.f32.mrf.mxu0
      %v2260 = vadd.f32 0.0, %v2259
      %2261 = vmatmul.f32.gmra.mxu0 %v642
      %v2262 = vpop.f32.mrf.mxu0
      %v2263 = vadd.f32 0.0, %v2262
      %2264 = vmatmul.f32.gmra.mxu0 %v643
      %v2265 = vpop.f32.mrf.mxu0
      %v2266 = vadd.f32 0.0, %v2265
      %2267 = vmatmul.f32.gmra.mxu0 %v644
      %v2268 = vpop.f32.mrf.mxu0
      %v2269 = vadd.f32 0.0, %v2268
      %2270 = vmatmul.f32.gmra.mxu0 %v645
      %v2271 = vpop.f32.mrf.mxu0
      %v2272 = vadd.f32 0.0, %v2271
      %2273 = vmatmul.f32.gmra.mxu0 %v646
      %v2274 = vpop.f32.mrf.mxu0
      %v2275 = vadd.f32 0.0, %v2274
      %2276 = vmatmul.f32.gmra.mxu0 %v691
      %v2277 = vpop.f32.mrf.mxu0
      %v2278 = vadd.f32 0.0, %v2277
      %2279 = vmatmul.f32.gmra.mxu0 %v692
      %v2280 = vpop.f32.mrf.mxu0
      %v2281 = vadd.f32 0.0, %v2280
      %2282 = vmatmul.f32.gmra.mxu0 %v693
      %v2283 = vpop.f32.mrf.mxu0
      %v2284 = vadd.f32 0.0, %v2283
      %2285 = vmatmul.f32.gmra.mxu0 %v694
      %v2286 = vpop.f32.mrf.mxu0
      %v2287 = vadd.f32 0.0, %v2286
      %2288 = vdwg.mxu0
      %v2289 = vadd.f32 %v2127, %v2194
      %v2290 = vadd.f32 %v2128, %v2197
      %v2291 = vadd.f32 %v2129, %v2200
      %v2292 = vadd.f32 %v2130, %v2203
      %v2293 = vadd.f32 %v2131, %v2206
      %v2294 = vadd.f32 %v2132, %v2209
      %v2295 = vadd.f32 %v2133, %v2212
      %v2296 = vadd.f32 %v2134, %v2215
      %v2297 = vadd.f32 %v2135, %v2218
      %v2298 = vadd.f32 %v2136, %v2221
      %v2299 = vadd.f32 %v2137, %v2224
      %v2300 = vadd.f32 %v2138, %v2227
      %v2301 = vadd.f32 %v2139, %v2230
      %v2302 = vadd.f32 %v2140, %v2233
      %v2303 = vadd.f32 %v2141, %v2236
      %v2304 = vadd.f32 %v2142, %v2239
      %v2305 = vadd.f32 %v2143, %v2242
      %v2306 = vadd.f32 %v2144, %v2245
      %v2307 = vadd.f32 %v2145, %v2248
      %v2308 = vadd.f32 %v2146, %v2251
      %v2309 = vadd.f32 %v2147, %v2254
      %v2310 = vadd.f32 %v2148, %v2257
      %v2311 = vadd.f32 %v2149, %v2260
      %v2312 = vadd.f32 %v2150, %v2263
      %v2313 = vadd.f32 %v2151, %v2266
      %v2314 = vadd.f32 %v2152, %v2269
      %v2315 = vadd.f32 %v2153, %v2272
      %v2316 = vadd.f32 %v2154, %v2275
      %v2317 = vadd.f32 %v2155, %v2278
      %v2318 = vadd.f32 %v2156, %v2281
      %v2319 = vadd.f32 %v2157, %v2284
      %v2320 = vadd.f32 %v2158, %v2287
      %s2321 = scalar_lea.vmem %s5, 1024
      %v2322 = vld [vmem:[%s2321] sm:$0xff]
      %v2323 = vld [vmem:[%s2321 + $0x8] sm:$0xff]
      %v2324 = vld [vmem:[%s2321 + $0x10] sm:$0xff]
      %v2325 = vld [vmem:[%s2321 + $0x18] sm:$0xff]
      %v2326 = vld [vmem:[%s2321 + $0x20] sm:$0xff]
      %v2327 = vld [vmem:[%s2321 + $0x28] sm:$0xff]
      %v2328 = vld [vmem:[%s2321 + $0x30] sm:$0xff]
      %v2329 = vld [vmem:[%s2321 + $0x38] sm:$0xff]
      %v2330 = vld [vmem:[%s2321 + $0x40] sm:$0xff]
      %v2331 = vld [vmem:[%s2321 + $0x48] sm:$0xff]
      %v2332 = vld [vmem:[%s2321 + $0x50] sm:$0xff]
      %v2333 = vld [vmem:[%s2321 + $0x58] sm:$0xff]
      %v2334 = vld [vmem:[%s2321 + $0x60] sm:$0xff]
      %v2335 = vld [vmem:[%s2321 + $0x68] sm:$0xff]
      %v2336 = vld [vmem:[%s2321 + $0x70] sm:$0xff]
      %v2337 = vld [vmem:[%s2321 + $0x78] sm:$0xff]
      %2338 = vmatpush.msra.mxu0 %v2337
      %2339 = vmatpush.msra.mxu0 %v2336
      %2340 = vmatpush.msra.mxu0 %v2335
      %2341 = vmatpush.msra.mxu0 %v2334
      %2342 = vmatpush.msra.mxu0 %v2333
      %2343 = vmatpush.msra.mxu0 %v2332
      %2344 = vmatpush.msra.mxu0 %v2331
      %2345 = vmatpush.msra.mxu0 %v2330
      %2346 = vmatpush.msra.mxu0 %v2329
      %2347 = vmatpush.msra.mxu0 %v2328
      %2348 = vmatpush.msra.mxu0 %v2327
      %2349 = vmatpush.msra.mxu0 %v2326
      %2350 = vmatpush.msra.mxu0 %v2325
      %2351 = vmatpush.msra.mxu0 %v2324
      %2352 = vmatpush.msra.mxu0 %v2323
      %2353 = vmatpush.msra.mxu0 %v2322
      %2354 = vmatmul.f32.gmra.mxu0 %v1058
      %v2355 = vpop.f32.mrf.mxu0
      %v2356 = vadd.f32 0.0, %v2355
      %2357 = vmatmul.f32.gmra.mxu0 %v1059
      %v2358 = vpop.f32.mrf.mxu0
      %v2359 = vadd.f32 0.0, %v2358
      %2360 = vmatmul.f32.gmra.mxu0 %v1060
      %v2361 = vpop.f32.mrf.mxu0
      %v2362 = vadd.f32 0.0, %v2361
      %2363 = vmatmul.f32.gmra.mxu0 %v1061
      %v2364 = vpop.f32.mrf.mxu0
      %v2365 = vadd.f32 0.0, %v2364
      %2366 = vmatmul.f32.gmra.mxu0 %v1062
      %v2367 = vpop.f32.mrf.mxu0
      %v2368 = vadd.f32 0.0, %v2367
      %2369 = vmatmul.f32.gmra.mxu0 %v1063
      %v2370 = vpop.f32.mrf.mxu0
      %v2371 = vadd.f32 0.0, %v2370
      %2372 = vmatmul.f32.gmra.mxu0 %v1064
      %v2373 = vpop.f32.mrf.mxu0
      %v2374 = vadd.f32 0.0, %v2373
      %2375 = vmatmul.f32.gmra.mxu0 %v1065
      %v2376 = vpop.f32.mrf.mxu0
      %v2377 = vadd.f32 0.0, %v2376
      %2378 = vmatmul.f32.gmra.mxu0 %v1066
      %v2379 = vpop.f32.mrf.mxu0
      %v2380 = vadd.f32 0.0, %v2379
      %2381 = vmatmul.f32.gmra.mxu0 %v1067
      %v2382 = vpop.f32.mrf.mxu0
      %v2383 = vadd.f32 0.0, %v2382
      %2384 = vmatmul.f32.gmra.mxu0 %v1068
      %v2385 = vpop.f32.mrf.mxu0
      %v2386 = vadd.f32 0.0, %v2385
      %2387 = vmatmul.f32.gmra.mxu0 %v1069
      %v2388 = vpop.f32.mrf.mxu0
      %v2389 = vadd.f32 0.0, %v2388
      %2390 = vmatmul.f32.gmra.mxu0 %v1070
      %v2391 = vpop.f32.mrf.mxu0
      %v2392 = vadd.f32 0.0, %v2391
      %2393 = vmatmul.f32.gmra.mxu0 %v1071
      %v2394 = vpop.f32.mrf.mxu0
      %v2395 = vadd.f32 0.0, %v2394
      %2396 = vmatmul.f32.gmra.mxu0 %v1072
      %v2397 = vpop.f32.mrf.mxu0
      %v2398 = vadd.f32 0.0, %v2397
      %2399 = vmatmul.f32.gmra.mxu0 %v1073
      %v2400 = vpop.f32.mrf.mxu0
      %v2401 = vadd.f32 0.0, %v2400
      %2402 = vmatmul.f32.gmra.mxu0 %v1074
      %v2403 = vpop.f32.mrf.mxu0
      %v2404 = vadd.f32 0.0, %v2403
      %2405 = vmatmul.f32.gmra.mxu0 %v1075
      %v2406 = vpop.f32.mrf.mxu0
      %v2407 = vadd.f32 0.0, %v2406
      %2408 = vmatmul.f32.gmra.mxu0 %v1076
      %v2409 = vpop.f32.mrf.mxu0
      %v2410 = vadd.f32 0.0, %v2409
      %2411 = vmatmul.f32.gmra.mxu0 %v1077
      %v2412 = vpop.f32.mrf.mxu0
      %v2413 = vadd.f32 0.0, %v2412
      %2414 = vmatmul.f32.gmra.mxu0 %v1078
      %v2415 = vpop.f32.mrf.mxu0
      %v2416 = vadd.f32 0.0, %v2415
      %2417 = vmatmul.f32.gmra.mxu0 %v1079
      %v2418 = vpop.f32.mrf.mxu0
      %v2419 = vadd.f32 0.0, %v2418
      %2420 = vmatmul.f32.gmra.mxu0 %v1080
      %v2421 = vpop.f32.mrf.mxu0
      %v2422 = vadd.f32 0.0, %v2421
      %2423 = vmatmul.f32.gmra.mxu0 %v1081
      %v2424 = vpop.f32.mrf.mxu0
      %v2425 = vadd.f32 0.0, %v2424
      %2426 = vmatmul.f32.gmra.mxu0 %v1082
      %v2427 = vpop.f32.mrf.mxu0
      %v2428 = vadd.f32 0.0, %v2427
      %2429 = vmatmul.f32.gmra.mxu0 %v1083
      %v2430 = vpop.f32.mrf.mxu0
      %v2431 = vadd.f32 0.0, %v2430
      %2432 = vmatmul.f32.gmra.mxu0 %v1084
      %v2433 = vpop.f32.mrf.mxu0
      %v2434 = vadd.f32 0.0, %v2433
      %2435 = vmatmul.f32.gmra.mxu0 %v1085
      %v2436 = vpop.f32.mrf.mxu0
      %v2437 = vadd.f32 0.0, %v2436
      %2438 = vmatmul.f32.gmra.mxu0 %v1086
      %v2439 = vpop.f32.mrf.mxu0
      %v2440 = vadd.f32 0.0, %v2439
      %2441 = vmatmul.f32.gmra.mxu0 %v1087
      %v2442 = vpop.f32.mrf.mxu0
      %v2443 = vadd.f32 0.0, %v2442
      %2444 = vmatmul.f32.gmra.mxu0 %v1088
      %v2445 = vpop.f32.mrf.mxu0
      %v2446 = vadd.f32 0.0, %v2445
      %2447 = vmatmul.f32.gmra.mxu0 %v1089
      %v2448 = vpop.f32.mrf.mxu0
      %v2449 = vadd.f32 0.0, %v2448
      %2450 = vdwg.mxu0
      %v2451 = vadd.f32 %v2289, %v2356
      %v2452 = vadd.f32 %v2290, %v2359
      %v2453 = vadd.f32 %v2291, %v2362
      %v2454 = vadd.f32 %v2292, %v2365
      %v2455 = vadd.f32 %v2293, %v2368
      %v2456 = vadd.f32 %v2294, %v2371
      %v2457 = vadd.f32 %v2295, %v2374
      %v2458 = vadd.f32 %v2296, %v2377
      %v2459 = vadd.f32 %v2297, %v2380
      %v2460 = vadd.f32 %v2298, %v2383
      %v2461 = vadd.f32 %v2299, %v2386
      %v2462 = vadd.f32 %v2300, %v2389
      %v2463 = vadd.f32 %v2301, %v2392
      %v2464 = vadd.f32 %v2302, %v2395
      %v2465 = vadd.f32 %v2303, %v2398
      %v2466 = vadd.f32 %v2304, %v2401
      %v2467 = vadd.f32 %v2305, %v2404
      %v2468 = vadd.f32 %v2306, %v2407
      %v2469 = vadd.f32 %v2307, %v2410
      %v2470 = vadd.f32 %v2308, %v2413
      %v2471 = vadd.f32 %v2309, %v2416
      %v2472 = vadd.f32 %v2310, %v2419
      %v2473 = vadd.f32 %v2311, %v2422
      %v2474 = vadd.f32 %v2312, %v2425
      %v2475 = vadd.f32 %v2313, %v2428
      %v2476 = vadd.f32 %v2314, %v2431
      %v2477 = vadd.f32 %v2315, %v2434
      %v2478 = vadd.f32 %v2316, %v2437
      %v2479 = vadd.f32 %v2317, %v2440
      %v2480 = vadd.f32 %v2318, %v2443
      %v2481 = vadd.f32 %v2319, %v2446
      %v2482 = vadd.f32 %v2320, %v2449
      %2483 = vst [vmem:[%s495] sm:$0xff] %v2451
      %2484 = vst [vmem:[%s495 + $0x8] sm:$0xff] %v2452
      %2485 = vst [vmem:[%s495 + $0x10] sm:$0xff] %v2453
      %2486 = vst [vmem:[%s495 + $0x18] sm:$0xff] %v2454
      %2487 = vst [vmem:[%s495 + $0x20] sm:$0xff] %v2455
      %2488 = vst [vmem:[%s495 + $0x28] sm:$0xff] %v2456
      %2489 = vst [vmem:[%s495 + $0x30] sm:$0xff] %v2457
      %2490 = vst [vmem:[%s495 + $0x38] sm:$0xff] %v2458
      %2491 = vst [vmem:[%s495 + $0x40] sm:$0xff] %v2459
      %2492 = vst [vmem:[%s495 + $0x48] sm:$0xff] %v2460
      %2493 = vst [vmem:[%s495 + $0x50] sm:$0xff] %v2461
      %2494 = vst [vmem:[%s495 + $0x58] sm:$0xff] %v2462
      %2495 = vst [vmem:[%s495 + $0x60] sm:$0xff] %v2463
      %2496 = vst [vmem:[%s495 + $0x68] sm:$0xff] %v2464
      %2497 = vst [vmem:[%s495 + $0x70] sm:$0xff] %v2465
      %2498 = vst [vmem:[%s495 + $0x78] sm:$0xff] %v2466
      %2499 = vst [vmem:[%s495 + $0x80] sm:$0xff] %v2467
      %2500 = vst [vmem:[%s495 + $0x88] sm:$0xff] %v2468
      %2501 = vst [vmem:[%s495 + $0x90] sm:$0xff] %v2469
      %2502 = vst [vmem:[%s495 + $0x98] sm:$0xff] %v2470
      %2503 = vst [vmem:[%s495 + $0xa0] sm:$0xff] %v2471
      %2504 = vst [vmem:[%s495 + $0xa8] sm:$0xff] %v2472
      %2505 = vst [vmem:[%s495 + $0xb0] sm:$0xff] %v2473
      %2506 = vst [vmem:[%s495 + $0xb8] sm:$0xff] %v2474
      %2507 = vst [vmem:[%s495 + $0xc0] sm:$0xff] %v2475
      %2508 = vst [vmem:[%s495 + $0xc8] sm:$0xff] %v2476
      %2509 = vst [vmem:[%s495 + $0xd0] sm:$0xff] %v2477
      %2510 = vst [vmem:[%s495 + $0xd8] sm:$0xff] %v2478
      %2511 = vst [vmem:[%s495 + $0xe0] sm:$0xff] %v2479
      %2512 = vst [vmem:[%s495 + $0xe8] sm:$0xff] %v2480
      %2513 = vst [vmem:[%s495 + $0xf0] sm:$0xff] %v2481
      %2514 = vst [vmem:[%s495 + $0xf8] sm:$0xff] %v2482
      %v2515 = vadd.f32 %v2451, %v2452
      %v2516 = vadd.f32 %v2515, %v2453
      %v2517 = vadd.f32 %v2516, %v2454
      %v2518 = vadd.f32 %v2517, %v2455
      %v2519 = vadd.f32 %v2518, %v2456
      %v2520 = vadd.f32 %v2519, %v2457
      %v2521 = vadd.f32 %v2520, %v2458
      %v2522 = vadd.f32 %v2521, %v2459
      %v2523 = vadd.f32 %v2522, %v2460
      %v2524 = vadd.f32 %v2523, %v2461
      %v2525 = vadd.f32 %v2524, %v2462
      %v2526 = vadd.f32 %v2525, %v2463
      %v2527 = vadd.f32 %v2526, %v2464
      %v2528 = vadd.f32 %v2527, %v2465
      %v2529 = vadd.f32 %v2528, %v2466
      %v2530 = vadd.f32 %v2529, %v2467
      %v2531 = vadd.f32 %v2530, %v2468
      %v2532 = vadd.f32 %v2531, %v2469
      %v2533 = vadd.f32 %v2532, %v2470
      %v2534 = vadd.f32 %v2533, %v2471
      %v2535 = vadd.f32 %v2534, %v2472
      %v2536 = vadd.f32 %v2535, %v2473
      %v2537 = vadd.f32 %v2536, %v2474
      %v2538 = vadd.f32 %v2537, %v2475
      %v2539 = vadd.f32 %v2538, %v2476
      %v2540 = vadd.f32 %v2539, %v2477
      %v2541 = vadd.f32 %v2540, %v2478
      %v2542 = vadd.f32 %v2541, %v2479
      %v2543 = vadd.f32 %v2542, %v2480
      %v2544 = vadd.f32 %v2543, %v2481
      %v2545 = vadd.f32 %v2544, %v2482
      %v2546 = vrot.slane %v2545, 4
      %v2547 = vadd.f32 %v2545, %v2546
      %v2548 = vrot.slane %v2547, 2
      %v2549 = vadd.f32 %v2547, %v2548
      %v2550 = vrot.slane %v2549, 1
      %v2551 = vadd.f32 %v2549, %v2550
      %2552 = vst [vmem:[%s501] sm:$0x1] %v2551
      %v2553 = vmul.f32 %v2451, %v2451
      %v2554 = vmul.f32 %v2452, %v2452
      %v2555 = vmul.f32 %v2453, %v2453
      %v2556 = vmul.f32 %v2454, %v2454
      %v2557 = vmul.f32 %v2455, %v2455
      %v2558 = vmul.f32 %v2456, %v2456
      %v2559 = vmul.f32 %v2457, %v2457
      %v2560 = vmul.f32 %v2458, %v2458
      %v2561 = vmul.f32 %v2459, %v2459
      %v2562 = vmul.f32 %v2460, %v2460
      %v2563 = vmul.f32 %v2461, %v2461
      %v2564 = vmul.f32 %v2462, %v2462
      %v2565 = vmul.f32 %v2463, %v2463
      %v2566 = vmul.f32 %v2464, %v2464
      %v2567 = vmul.f32 %v2465, %v2465
      %v2568 = vmul.f32 %v2466, %v2466
      %v2569 = vmul.f32 %v2467, %v2467
      %v2570 = vmul.f32 %v2468, %v2468
      %v2571 = vmul.f32 %v2469, %v2469
      %v2572 = vmul.f32 %v2470, %v2470
      %v2573 = vmul.f32 %v2471, %v2471
      %v2574 = vmul.f32 %v2472, %v2472
      %v2575 = vmul.f32 %v2473, %v2473
      %v2576 = vmul.f32 %v2474, %v2474
      %v2577 = vmul.f32 %v2475, %v2475
      %v2578 = vmul.f32 %v2476, %v2476
      %v2579 = vmul.f32 %v2477, %v2477
      %v2580 = vmul.f32 %v2478, %v2478
      %v2581 = vmul.f32 %v2479, %v2479
      %v2582 = vmul.f32 %v2480, %v2480
      %v2583 = vmul.f32 %v2481, %v2481
      %v2584 = vmul.f32 %v2482, %v2482
      %v2585 = vadd.f32 %v2553, %v2554
      %v2586 = vadd.f32 %v2585, %v2555
      %v2587 = vadd.f32 %v2586, %v2556
      %v2588 = vadd.f32 %v2587, %v2557
      %v2589 = vadd.f32 %v2588, %v2558
      %v2590 = vadd.f32 %v2589, %v2559
      %v2591 = vadd.f32 %v2590, %v2560
      %v2592 = vadd.f32 %v2591, %v2561
      %v2593 = vadd.f32 %v2592, %v2562
      %v2594 = vadd.f32 %v2593, %v2563
      %v2595 = vadd.f32 %v2594, %v2564
      %v2596 = vadd.f32 %v2595, %v2565
      %v2597 = vadd.f32 %v2596, %v2566
      %v2598 = vadd.f32 %v2597, %v2567
      %v2599 = vadd.f32 %v2598, %v2568
      %v2600 = vadd.f32 %v2599, %v2569
      %v2601 = vadd.f32 %v2600, %v2570
      %v2602 = vadd.f32 %v2601, %v2571
      %v2603 = vadd.f32 %v2602, %v2572
      %v2604 = vadd.f32 %v2603, %v2573
      %v2605 = vadd.f32 %v2604, %v2574
      %v2606 = vadd.f32 %v2605, %v2575
      %v2607 = vadd.f32 %v2606, %v2576
      %v2608 = vadd.f32 %v2607, %v2577
      %v2609 = vadd.f32 %v2608, %v2578
      %v2610 = vadd.f32 %v2609, %v2579
      %v2611 = vadd.f32 %v2610, %v2580
      %v2612 = vadd.f32 %v2611, %v2581
      %v2613 = vadd.f32 %v2612, %v2582
      %v2614 = vadd.f32 %v2613, %v2583
      %v2615 = vadd.f32 %v2614, %v2584
      %v2616 = vrot.slane %v2615, 4
      %v2617 = vadd.f32 %v2615, %v2616
      %v2618 = vrot.slane %v2617, 2
      %v2619 = vadd.f32 %v2617, %v2618
      %v2620 = vrot.slane %v2619, 1
      %v2621 = vadd.f32 %v2619, %v2620
      %2622 = vst [vmem:[%s508] sm:$0x1] %v2621
      %s2623 = smul.u32 8, %s25
      %p2624 = scmp.lt.s32.totalorder %s24, 1
      %s2625 = scalar_select %p2624, %s24, 1
      %p2626 = scmp.lt.s32.totalorder %s2623, 31
      %s2627 = scalar_select %p2626, %s2623, 31
      %s2628 = smul.addr %s2627, 4
      %s2629 = smul.addr %s2625, 128
      %s2630 = sadd.s32 %s2628, %s2629
      %s2631 = smul.addr %s2630, 8
      %s2632 = scalar_lea.vmem %s6, %s2631
      %s2633 = smul.u32 %s24, 4
      %s2634 = sadd.s32 %s2633, %s25
      %p2635 = scmp.lt.s32.totalorder %s2634, 7
      %s2636 = scalar_select %p2635, %s2634, 7
      %s2637 = scalar_lea.vmem %s7, %s2636
      %s2638 = smul.u32 %s24, 4
      %s2639 = sadd.s32 %s2638, %s25
      %p2640 = scmp.lt.s32.totalorder %s2639, 7
      %s2641 = scalar_select %p2640, %s2639, 7
      %s2642 = scalar_lea.vmem %s8, %s2641
      // Predicated region
      $region45: #{dconv_block_forward.4} parent=43 // pred_check
        %p2643 = pneg %p215
      $region46: #{dconv_block_forward.4} parent=43 // pred_check_branch
        %2645 = sbr.rel (%p2643) target = $region48
      $region47: #{dconv_block_forward.4} parent=43 // pred_region
        %s2646 = smul.u32 8, %s25
      $region48: #{dconv_block_forward.4} parent=43 // pred_fallthru
        _
      // Predicated region
      $region49: #{dconv_block_forward.4} parent=43 // pred_check
        %p2647 = pneg %p245
      $region50: #{dconv_block_forward.4} parent=43 // pred_check_branch
        %2649 = sbr.rel (%p2647) target = $region52
      $region51: #{dconv_block_forward.4} parent=43 // pred_region
        %s2650 = smul.u32 %s24, 4
        %s2651 = sadd.s32 %s2650, %s25
      $region52: #{dconv_block_forward.4} parent=43 // pred_fallthru
        _
      // Predicated region
      $region53: #{dconv_block_forward.4} parent=43 // pred_check
        %p2652 = pneg %p275
      $region54: #{dconv_block_forward.4} parent=43 // pred_check_branch
        %2654 = sbr.rel (%p2652) target = $region56
      $region55: #{dconv_block_forward.4} parent=43 // pred_region
        %s2655 = smul.u32 %s24, 4
        %s2656 = sadd.s32 %s2655, %s25
      $region56: #{dconv_block_forward.4} parent=43 // pred_fallthru
        _
    $region44: #{dconv_block_forward.4} parent=5 // pred_fallthru
      _
    %p2657 = scmp.le.s32.totalorder 2, %s15
    // Predicated region
    $region57: #{dconv_block_forward.4} parent=5 // pred_check
      %p2658 = pneg %p2657
    $region58: #{dconv_block_forward.4} parent=5 // pred_check_branch
      %2660 = sbr.rel (%p2658) target = $region60
    $region59: #{dconv_block_forward.4} parent=5 // pred_region
      %s2661 = ssub.s32 %s15, 2
      // Predicated region
      $region61: #{dconv_block_forward.4} parent=59 // pred_check
        %p2662 = pneg %p221
      $region62: #{dconv_block_forward.4} parent=59 // pred_check_branch
        %2664 = sbr.rel (%p2662) target = $region64
      $region63: #{dconv_block_forward.4} parent=59 // pred_region
        %s2665 = smul.u32 8, %s27
        %p2666 = scmp.lt.s32.totalorder %s26, 1
        %s2667 = scalar_select %p2666, %s26, 1
        %p2668 = scmp.lt.s32.totalorder %s2665, 31
        %s2669 = scalar_select %p2668, %s2665, 31
        %s2670 = smul.addr %s2669, 4
        %s2671 = smul.addr %s2667, 128
        %s2672 = sadd.s32 %s2670, %s2671
        %s2673 = smul.addr %s2672, 8
        %s2674 = scalar_lea.vmem %s6, %s2673
      $region64: #{dconv_block_forward.4} parent=59 // pred_fallthru
        _
      // Predicated region
      $region65: #{dconv_block_forward.4} parent=59 // pred_check
        %p2675 = pneg %p251
      $region66: #{dconv_block_forward.4} parent=59 // pred_check_branch
        %2677 = sbr.rel (%p2675) target = $region68
      $region67: #{dconv_block_forward.4} parent=59 // pred_region
        %s2678 = smul.u32 %s26, 4
        %s2679 = sadd.s32 %s2678, %s27
        %p2680 = scmp.lt.s32.totalorder %s2679, 7
        %s2681 = scalar_select %p2680, %s2679, 7
        %s2682 = scalar_lea.vmem %s7, %s2681
      $region68: #{dconv_block_forward.4} parent=59 // pred_fallthru
        _
      // Predicated region
      $region69: #{dconv_block_forward.4} parent=59 // pred_check
        %p2683 = pneg %p281
      $region70: #{dconv_block_forward.4} parent=59 // pred_check_branch
        %2685 = sbr.rel (%p2683) target = $region72
      $region71: #{dconv_block_forward.4} parent=59 // pred_region
        %s2686 = smul.u32 %s26, 4
        %s2687 = sadd.s32 %s2686, %s27
        %p2688 = scmp.lt.s32.totalorder %s2687, 7
        %s2689 = scalar_select %p2688, %s2687, 7
        %s2690 = scalar_lea.vmem %s8, %s2689
      $region72: #{dconv_block_forward.4} parent=59 // pred_fallthru
        _
    $region60: #{dconv_block_forward.4} parent=5 // pred_fallthru
      _
  $region6: #{dconv_block_forward.4} parent=0 // loop_footer
    %s19 = sadd.s32 1, %s15
  $region7: #{dconv_block_forward.4} parent=0 // loop_footer_branch
    %14 = sbr.rel target = $region3
  $region8: #{dconv_block_forward.4} parent=0 // loop_exit
    _

</llo_original>
